<compile_context>
chip_gen: v7x
topology: tpu7x:2x2x1
jax: 0.10.0
libtpu: 0.0.40
codegen_flags: <defaults>
</compile_context>

<pallas_src>
import jax
import jax.numpy as jnp
from jax import lax
from jax.experimental import pallas as pl
from jax.experimental.pallas import tpu as pltpu


def _round_up(x, m):
    return (x + m - 1) // m * m


# ----------------------------------------------------------------------------
# Fused kernel: conv1+BN+ReLU -> conv2+BN+ReLU for one (batch, depth-tile)
# ----------------------------------------------------------------------------
def _double_conv3d_kernel(x_ref, w1_ref, b1_ref, w2_ref, b2_ref, o_ref,
                          xp1_ref, y1_ref, xp2_ref):
    """
    x_ref  : (D, H, W*Cin)        bf16 full-depth sample (lanes = W*Cin)
    w1_ref : (3, 3*CB1, W*Cmid)   bf16 conv1 structured weights (kh, K, N)
    b1_ref : (1, W*Cmid)          f32  conv1 folded BN bias
    w2_ref : (3, 3*CB2, W*Cout)   bf16 conv2 structured weights
    b2_ref : (1, W*Cout)          f32  conv2 folded BN bias
    o_ref  : (TD, H, W*Cout)      f32  output tile (lane-dense)
    xp1_ref: (TDm*RP+1, 3*CB1)    bf16 scratch: conv1 LHS (kd slabs on lanes)
    y1_ref : (M1, W*Cmid)         bf16 scratch: conv1 activations
    xp2_ref: (TD*RP+1, 3*CB2)     bf16 scratch: conv2 LHS
    """
    D, H, WCin = x_ref.shape
    TD, _, WCout = o_ref.shape
    WCmid = y1_ref.shape[1]
    CB1 = xp1_ref.shape[1] // 3
    CB2 = xp2_ref.shape[1] // 3
    RP = H + 1                      # row pitch: H data rows + 1 shared zero row
    TDm = TD + 2                    # conv1 output depths needed (incl. halo)
    M1 = (TDm - 1) * RP + H         # rows fed to the conv1 dots
    M2 = (TD - 1) * RP + H          # rows fed to the conv2 dots
    d0 = pl.program_id(1) * TD      # first output depth of this tile

    # Zero-fill staging buffers once per step (one aligned full-width store
    # each).  This provides the shared H-halo zero rows, the lane padding of
    # every kd block, and the D-boundary zero slabs -- no masked single-row
    # stores or per-slab mask multiplies needed.
    xp1_ref[...] = jnp.zeros(xp1_ref.shape, xp1_ref.dtype)
    xp2_ref[...] = jnp.zeros(xp2_ref.shape, xp2_ref.dtype)

    # ---- stage conv1 LHS ----------------------------------------------------
    # Block md (conv1 output depth d0+md-1) holds its 3 input depth slabs
    # (kd = 0,1,2) side by side on lanes.  Each distinct input depth is loaded
    # once and scattered to <= 3 destinations; out-of-range depths are skipped
    # (zeros from the fill above == zero padding of x along D).
    for s in range(TDm + 2):                        # input depth d0 + s - 2
        d_in = d0 + s - 2
        in_range = jnp.logical_and(d_in >= 0, d_in < D)

        @pl.when(in_range)
        def _(s=s, d_in=d_in):
            slab = x_ref[jnp.clip(d_in, 0, D - 1)]            # (H, W*Cin)
            for kd in range(3):
                md = s - kd
                if 0 <= md < TDm:
                    r0 = md * RP + 1
                    xp1_ref[r0:r0 + H, kd * CB1:kd * CB1 + WCin] = slab

    # ---- conv1: 3 MXU dots (K = 3*CB1), folded BN bias + ReLU ---------------
    acc = jnp.dot(xp1_ref[0:M1, :], w1_ref[0],
                  preferred_element_type=jnp.float32)
    for kh in (1, 2):
        acc += jnp.dot(xp1_ref[kh:kh + M1, :], w1_ref[kh],
                       preferred_element_type=jnp.float32)
    y1_ref[...] = jnp.maximum(acc + b1_ref[...], 0.0).astype(y1_ref.dtype)

    # ---- stage conv2 LHS (conv1 activations, zero depth padding) ------------
    for md in range(TDm):                           # conv1 output depth d0+md-1
        d_mid = d0 + md - 1
        in_range = jnp.logical_and(d_mid >= 0, d_mid < D)

        @pl.when(in_range)
        def _(md=md):
            slab = y1_ref[md * RP:md * RP + H, :]             # (H, W*Cmid)
            for kd in range(3):
                ld = md - kd
                if 0 <= ld < TD:
                    r0 = ld * RP + 1
                    xp2_ref[r0:r0 + H, kd * CB2:kd * CB2 + WCmid] = slab

    # ---- conv2: 3 MXU dots, folded BN bias + ReLU, writeback ----------------
    acc = jnp.dot(xp2_ref[0:M2, :], w2_ref[0],
                  preferred_element_type=jnp.float32)
    for kh in (1, 2):
        acc += jnp.dot(xp2_ref[kh:kh + M2, :], w2_ref[kh],
                       preferred_element_type=jnp.float32)
    y2 = jnp.maximum(acc + b2_ref[...], 0.0)
    for ld in range(TD):                            # drop inter-depth junk rows
        o_ref[ld] = y2[ld * RP:ld * RP + H, :].astype(o_ref.dtype)


# ----------------------------------------------------------------------------
# Host-side weight restructuring: BN scale, kw, the W axis (with its padding)
# and kd are all folded into a (3, 3*CB, W*Cout) matmul weight.
# ----------------------------------------------------------------------------
def _structured_weights(w_dhwio, scale, W, CB):
    """wm[kh, kd*CB + wi*Cin + ci, wo*Cout + co]
         = w[kd, kh, wi - wo + 1, ci, co] * scale[co]  if |wi - wo| <= 1
         = 0  otherwise / in the per-kd lane padding rows."""
    Cin, Cout = w_dhwio.shape[3], w_dhwio.shape[4]
    ws = w_dhwio * scale                                   # fold BN scale
    wi = jnp.arange(W)
    wo = jnp.arange(W)
    kw = jnp.arange(3)
    sel = (wi[None, :, None] == wo[None, None, :] + kw[:, None, None] - 1)
    sel = sel.astype(ws.dtype)                             # (3, W, W)
    wm = jnp.einsum("kuv,dekio->deuivo", sel, ws)          # (kd,kh,wi,ci,wo,co)
    wm = wm.reshape(3, 3, W * Cin, W * Cout)
    pad = CB - W * Cin
    if pad:
        wm = jnp.pad(wm, ((0, 0), (0, 0), (0, pad), (0, 0)))
    # fold kd into the contraction axis: row index = kd*CB + (wi*Cin + ci)
    return jnp.transpose(wm, (1, 0, 2, 3)).reshape(3, 3 * CB, W * Cout)


def _pick_depth_tile(D, H, WCin, WCmid, WCout, CB1, CB2,
                     vmem_budget=24 * 1024 * 1024, acc_budget=128 * 1024):
    """Largest divisor of D whose accumulators and VMEM footprint fit."""
    RP = H + 1
    best = 1
    for td in range(1, D + 1):
        if D % td:
            continue
        tdm = td + 2
        m1 = (tdm - 1) * RP + H
        m2 = (td - 1) * RP + H
        if max(m1 * WCmid, m2 * WCout) * 4 > acc_budget:
            continue
        scratch = 2 * ((tdm * RP + 1) * 3 * CB1 + m1 * WCmid
                       + (td * RP + 1) * 3 * CB2)
        blocks = (2 * D * H * WCin * 2 + 2 * td * H * WCout * 4
                  + 2 * 2 * 3 * (3 * CB1 * WCmid + 3 * CB2 * WCout)
                  + 2 * 4 * (WCmid + WCout))
        if scratch + blocks <= vmem_budget:
            best = td
    return best


# ----------------------------------------------------------------------------
# Public forward: (N, C_in, D, H, W) f32 -> (N, C_out, D, H, W) f32
# ----------------------------------------------------------------------------
def double_conv3d_forward(x_ncdhw, p, eps=1e-5):
    N, Cin, D, H, W = x_ncdhw.shape
    Cmid = p["w1"].shape[-1]
    Cout = p["w2"].shape[-1]
    WCin, WCmid, WCout = W * Cin, W * Cmid, W * Cout
    CB1 = _round_up(WCin, 128)
    CB2 = _round_up(WCmid, 128)

    # NCDHW -> lane-dense (N, D, H, W*Cin), bf16 activations.
    x = jnp.transpose(x_ncdhw, (0, 2, 3, 4, 1)).reshape(N, D, H, WCin)
    x = x.astype(jnp.bfloat16)

    s1 = p["g1"] * lax.rsqrt(p["v1"] + eps)
    s2 = p["g2"] * lax.rsqrt(p["v2"] + eps)
    w1m = _structured_weights(p["w1"], s1, W, CB1).astype(jnp.bfloat16)
    w2m = _structured_weights(p["w2"], s2, W, CB2).astype(jnp.bfloat16)
    b1v = jnp.tile((p["b1"] - p["m1"]) * s1 + p["beta1"], (W,))
    b1v = b1v.reshape(1, WCmid).astype(jnp.float32)
    b2v = jnp.tile((p["b2"] - p["m2"]) * s2 + p["beta2"], (W,))
    b2v = b2v.reshape(1, WCout).astype(jnp.float32)

    RP = H + 1
    TD = _pick_depth_tile(D, H, WCin, WCmid, WCout, CB1, CB2)
    TDm = TD + 2
    M1 = (TDm - 1) * RP + H

    out = pl.pallas_call(
        _double_conv3d_kernel,
        out_shape=jax.ShapeDtypeStruct((N, D, H, WCout), jnp.float32),
        grid=(N, D // TD),
        in_specs=[
            # Full-depth sample; block index constant across dt so it is not
            # re-fetched between depth tiles of a sample.
            # TODO(synk): pl.ANY + manual halo DMA for production D*H*W (v7x).
            pl.BlockSpec((None, D, H, WCin), lambda n, dt: (n, 0, 0, 0)),
            pl.BlockSpec((3, 3 * CB1, WCmid), lambda n, dt: (0, 0, 0)),
            pl.BlockSpec((1, WCmid), lambda n, dt: (0, 0)),
            pl.BlockSpec((3, 3 * CB2, WCout), lambda n, dt: (0, 0, 0)),
            pl.BlockSpec((1, WCout), lambda n, dt: (0, 0)),
        ],
        out_specs=pl.BlockSpec((None, TD, H, WCout),
                               lambda n, dt: (n, dt, 0, 0)),
        scratch_shapes=[
            pltpu.VMEM((TDm * RP + 1, 3 * CB1), jnp.bfloat16),
            pltpu.VMEM((M1, WCmid), jnp.bfloat16),
            pltpu.VMEM((TD * RP + 1, 3 * CB2), jnp.bfloat16),
        ],
        compiler_params=pltpu.CompilerParams(
            dimension_semantics=("parallel", "parallel"),
            vmem_limit_bytes=48 * 1024 * 1024),
    )(x, w1m, b1v, w2m, b2v)

    return jnp.transpose(out.reshape(N, D, H, W, Cout), (0, 4, 1, 2, 3))


# ----------------------------------------------------------------------------
# Pure-JAX references (correctness check only)
# ----------------------------------------------------------------------------
def _ref_layer(x_ndhwc, w, conv_b, gamma, beta, mean, var, eps=1e-5,
               match_bf16=True):
    s = gamma * lax.rsqrt(var + eps)
    wf = w * s
    xf = x_ndhwc
    if match_bf16:  # emulate bf16 operands with f32 accumulation
        wf = wf.astype(jnp.bfloat16).astype(jnp.float32)
        xf = xf.astype(jnp.bfloat16).astype(jnp.float32)
    y = lax.conv_general_dilated(
        xf, wf, window_strides=(1, 1, 1),
        padding=((1, 1), (1, 1), (1, 1)),
        dimension_numbers=("NDHWC", "DHWIO", "NDHWC"),
        precision=lax.Precision.HIGHEST,
        preferred_element_type=jnp.float32)
    return jnp.maximum(y + ((conv_b - mean) * s + beta), 0.0)


def _ref_forward(x_ncdhw, p, match_bf16=True):
    x = jnp.transpose(x_ncdhw, (0, 2, 3, 4, 1))
    x = _ref_layer(x, p["w1"], p["b1"], p["g1"], p["beta1"], p["m1"], p["v1"],
                   match_bf16=match_bf16)
    x = _ref_layer(x, p["w2"], p["b2"], p["g2"], p["beta2"], p["m2"], p["v2"],
                   match_bf16=match_bf16)
    return jnp.transpose(x, (0, 4, 1, 2, 3))


# ----------------------------------------------------------------------------
if __name__ == "__main__":
    in_ch, out_ch = 4, 8
    N, D, H, W = 2, 8, 16, 16

    key = jax.random.PRNGKey(0)
    ks = jax.random.split(key, 13)
    x = jax.random.normal(ks[0], (N, in_ch, D, H, W), jnp.float32)

    params = dict(
        w1=0.1 * jax.random.normal(ks[1], (3, 3, 3, in_ch, out_ch), jnp.float32),
        b1=0.1 * jax.random.normal(ks[2], (out_ch,), jnp.float32),
        g1=1.0 + 0.1 * jax.random.normal(ks[3], (out_ch,), jnp.float32),
        beta1=0.1 * jax.random.normal(ks[4], (out_ch,), jnp.float32),
        m1=0.1 * jax.random.normal(ks[5], (out_ch,), jnp.float32),
        v1=0.5 + jax.random.uniform(ks[6], (out_ch,), jnp.float32),
        w2=0.1 * jax.random.normal(ks[7], (3, 3, 3, out_ch, out_ch), jnp.float32),
        b2=0.1 * jax.random.normal(ks[8], (out_ch,), jnp.float32),
        g2=1.0 + 0.1 * jax.random.normal(ks[9], (out_ch,), jnp.float32),
        beta2=0.1 * jax.random.normal(ks[10], (out_ch,), jnp.float32),
        m2=0.1 * jax.random.normal(ks[11], (out_ch,), jnp.float32),
        v2=0.5 + jax.random.uniform(ks[12], (out_ch,), jnp.float32),
    )

    fwd = jax.jit(double_conv3d_forward)
    out = jax.block_until_ready(fwd(x, params))
    assert out.shape == (N, out_ch, D, H, W), out.shape

    # bf16-matched reference: same operand rounding, so differences come only
    # from f32 accumulation order.
    ref_bf = jax.block_until_ready(_ref_forward(x, params, match_bf16=True))
    err_bf = float(jnp.max(jnp.abs(out - ref_bf)))
    assert jnp.allclose(out, ref_bf, atol=2e-2, rtol=2e-2), err_bf

    # pure-f32 reference: tolerance appropriate for bf16 operand precision.
    ref_f32 = jax.block_until_ready(_ref_forward(x, params, match_bf16=False))
    err_f32 = float(jnp.max(jnp.abs(out - ref_f32)))
    assert jnp.allclose(out, ref_f32, atol=6e-2, rtol=6e-2), err_f32

    print("KERNEL_OK")
</pallas_src>

<mosaic_0001>
module attributes {stable_mosaic.version = 11 : i64} {
  func.func @_double_conv3d_kernel(%arg0: i32, %arg1: i32, %arg2: memref<1x8x16x64xbf16, #tpu.memory_space<vmem>>, %arg3: memref<3x384x128xbf16, #tpu.memory_space<vmem>>, %arg4: memref<1x128xf32, #tpu.memory_space<vmem>>, %arg5: memref<3x384x128xbf16, #tpu.memory_space<vmem>>, %arg6: memref<1x128xf32, #tpu.memory_space<vmem>>, %arg7: memref<1x8x16x128xf32, #tpu.memory_space<vmem>>, %arg8: memref<171x384xbf16, #tpu.memory_space<vmem>>, %arg9: memref<169x128xbf16, #tpu.memory_space<vmem>>, %arg10: memref<137x384xbf16, #tpu.memory_space<vmem>>) attributes {dimension_semantics = [#tpu.dimension_semantics<parallel>, #tpu.dimension_semantics<parallel>], iteration_bounds = array<i64: 2, 1>, scalar_prefetch = 0 : i64, scratch_operands = 3 : i64, tpu.core_type = #tpu.core_type<tc>, window_params = [{transform_indices = @transform_0, window_bounds = array<i64: 1, 8, 16, 64>}, {pipeline_mode = #tpu.pipeline_mode<synchronous>, transform_indices = @transform_1, window_bounds = array<i64: 3, 384, 128>}, {pipeline_mode = #tpu.pipeline_mode<synchronous>, transform_indices = @transform_2, window_bounds = array<i64: 1, 128>}, {pipeline_mode = #tpu.pipeline_mode<synchronous>, transform_indices = @transform_3, window_bounds = array<i64: 3, 384, 128>}, {pipeline_mode = #tpu.pipeline_mode<synchronous>, transform_indices = @transform_4, window_bounds = array<i64: 1, 128>}, {transform_indices = @transform_5, window_bounds = array<i64: 1, 8, 16, 128>}]} {
    %c8_i32 = arith.constant 8 : i32
    %0 = arith.muli %arg1, %c8_i32 : i32
    %cst = arith.constant 0.000000e+00 : bf16
    %1 = vector.broadcast %cst : bf16 to vector<171x384xbf16>
    %c0 = arith.constant 0 : index
    %c0_0 = arith.constant 0 : index
    %2 = vector.load %arg8[%c0, %c0_0] : memref<171x384xbf16, #tpu.memory_space<vmem>>, vector<171x384xbf16>
    tpu.vector_store %arg8[%c0, %c0_0], %1 {strides = array<i32>} : memref<171x384xbf16, #tpu.memory_space<vmem>>, vector<171x384xbf16>,
    %cst_1 = arith.constant 0.000000e+00 : bf16
    %3 = vector.broadcast %cst_1 : bf16 to vector<137x384xbf16>
    %c0_2 = arith.constant 0 : index
    %c0_3 = arith.constant 0 : index
    %4 = vector.load %arg10[%c0_2, %c0_3] : memref<137x384xbf16, #tpu.memory_space<vmem>>, vector<137x384xbf16>
    tpu.vector_store %arg10[%c0_2, %c0_3], %3 {strides = array<i32>} : memref<137x384xbf16, #tpu.memory_space<vmem>>, vector<137x384xbf16>,
    %c0_i32 = arith.constant 0 : i32
    %5 = arith.addi %0, %c0_i32 : i32
    %c2_i32 = arith.constant 2 : i32
    %6 = arith.subi %5, %c2_i32 : i32
    %c0_i32_4 = arith.constant 0 : i32
    %7 = arith.cmpi sge, %6, %c0_i32_4 : i32
    %c8_i32_5 = arith.constant 8 : i32
    %8 = arith.cmpi slt, %6, %c8_i32_5 : i32
    %9 = arith.andi %7, %8 : i1
    %10 = arith.extui %9 : i1 to i32
    %c0_i32_6 = arith.constant 0 : i32
    %11 = arith.cmpi ne, %10, %c0_i32_6 : i32
    scf.if %11 {
      %c0_i32_172 = arith.constant 0 : i32
      %c7_i32_173 = arith.constant 7 : i32
      %231 = arith.maxsi %c0_i32_172, %6 : i32
      %232 = arith.minsi %c7_i32_173, %231 : i32
      %c0_174 = arith.constant 0 : index
      %233 = arith.index_cast %232 : i32 to index
      %c0_175 = arith.constant 0 : index
      %c0_176 = arith.constant 0 : index
      %234 = vector.load %arg2[%c0_174, %233, %c0_175, %c0_176] : memref<1x8x16x64xbf16, #tpu.memory_space<vmem>>, vector<1x1x16x64xbf16>
      %235 = vector.shape_cast %234 : vector<1x1x16x64xbf16> to vector<16x64xbf16>
      %c1_177 = arith.constant 1 : index
      %c0_178 = arith.constant 0 : index
      %236 = vector.load %arg8[%c1_177, %c0_178] : memref<171x384xbf16, #tpu.memory_space<vmem>>, vector<16x64xbf16>
      tpu.vector_store %arg8[%c1_177, %c0_178], %235 {strides = array<i32>} : memref<171x384xbf16, #tpu.memory_space<vmem>>, vector<16x64xbf16>,
    } else {
    }
    %c1_i32 = arith.constant 1 : i32
    %12 = arith.addi %0, %c1_i32 : i32
    %c2_i32_7 = arith.constant 2 : i32
    %13 = arith.subi %12, %c2_i32_7 : i32
    %c0_i32_8 = arith.constant 0 : i32
    %14 = arith.cmpi sge, %13, %c0_i32_8 : i32
    %c8_i32_9 = arith.constant 8 : i32
    %15 = arith.cmpi slt, %13, %c8_i32_9 : i32
    %16 = arith.andi %14, %15 : i1
    %17 = arith.extui %16 : i1 to i32
    %c0_i32_10 = arith.constant 0 : i32
    %18 = arith.cmpi ne, %17, %c0_i32_10 : i32
    scf.if %18 {
      %c0_i32_172 = arith.constant 0 : i32
      %c7_i32_173 = arith.constant 7 : i32
      %231 = arith.maxsi %c0_i32_172, %13 : i32
      %232 = arith.minsi %c7_i32_173, %231 : i32
      %c0_174 = arith.constant 0 : index
      %233 = arith.index_cast %232 : i32 to index
      %c0_175 = arith.constant 0 : index
      %c0_176 = arith.constant 0 : index
      %234 = vector.load %arg2[%c0_174, %233, %c0_175, %c0_176] : memref<1x8x16x64xbf16, #tpu.memory_space<vmem>>, vector<1x1x16x64xbf16>
      %235 = vector.shape_cast %234 : vector<1x1x16x64xbf16> to vector<16x64xbf16>
      %c18 = arith.constant 18 : index
      %c0_177 = arith.constant 0 : index
      %236 = vector.load %arg8[%c18, %c0_177] : memref<171x384xbf16, #tpu.memory_space<vmem>>, vector<16x64xbf16>
      tpu.vector_store %arg8[%c18, %c0_177], %235 {strides = array<i32>} : memref<171x384xbf16, #tpu.memory_space<vmem>>, vector<16x64xbf16>,
      %c1_178 = arith.constant 1 : index
      %c128 = arith.constant 128 : index
      %237 = vector.load %arg8[%c1_178, %c128] : memref<171x384xbf16, #tpu.memory_space<vmem>>, vector<16x64xbf16>
      tpu.vector_store %arg8[%c1_178, %c128], %235 {strides = array<i32>} : memref<171x384xbf16, #tpu.memory_space<vmem>>, vector<16x64xbf16>,
    } else {
    }
    %c2_i32_11 = arith.constant 2 : i32
    %19 = arith.addi %0, %c2_i32_11 : i32
    %c2_i32_12 = arith.constant 2 : i32
    %20 = arith.subi %19, %c2_i32_12 : i32
    %c0_i32_13 = arith.constant 0 : i32
    %21 = arith.cmpi sge, %20, %c0_i32_13 : i32
    %c8_i32_14 = arith.constant 8 : i32
    %22 = arith.cmpi slt, %20, %c8_i32_14 : i32
    %23 = arith.andi %21, %22 : i1
    %24 = arith.extui %23 : i1 to i32
    %c0_i32_15 = arith.constant 0 : i32
    %25 = arith.cmpi ne, %24, %c0_i32_15 : i32
    scf.if %25 {
      %c0_i32_172 = arith.constant 0 : i32
      %c7_i32_173 = arith.constant 7 : i32
      %231 = arith.maxsi %c0_i32_172, %20 : i32
      %232 = arith.minsi %c7_i32_173, %231 : i32
      %c0_174 = arith.constant 0 : index
      %233 = arith.index_cast %232 : i32 to index
      %c0_175 = arith.constant 0 : index
      %c0_176 = arith.constant 0 : index
      %234 = vector.load %arg2[%c0_174, %233, %c0_175, %c0_176] : memref<1x8x16x64xbf16, #tpu.memory_space<vmem>>, vector<1x1x16x64xbf16>
      %235 = vector.shape_cast %234 : vector<1x1x16x64xbf16> to vector<16x64xbf16>
      %c35 = arith.constant 35 : index
      %c0_177 = arith.constant 0 : index
      %236 = vector.load %arg8[%c35, %c0_177] : memref<171x384xbf16, #tpu.memory_space<vmem>>, vector<16x64xbf16>
      tpu.vector_store %arg8[%c35, %c0_177], %235 {strides = array<i32>} : memref<171x384xbf16, #tpu.memory_space<vmem>>, vector<16x64xbf16>,
      %c18 = arith.constant 18 : index
      %c128 = arith.constant 128 : index
      %237 = vector.load %arg8[%c18, %c128] : memref<171x384xbf16, #tpu.memory_space<vmem>>, vector<16x64xbf16>
      tpu.vector_store %arg8[%c18, %c128], %235 {strides = array<i32>} : memref<171x384xbf16, #tpu.memory_space<vmem>>, vector<16x64xbf16>,
      %c1_178 = arith.constant 1 : index
      %c256 = arith.constant 256 : index
      %238 = vector.load %arg8[%c1_178, %c256] : memref<171x384xbf16, #tpu.memory_space<vmem>>, vector<16x64xbf16>
      tpu.vector_store %arg8[%c1_178, %c256], %235 {strides = array<i32>} : memref<171x384xbf16, #tpu.memory_space<vmem>>, vector<16x64xbf16>,
    } else {
    }
    %c3_i32 = arith.constant 3 : i32
    %26 = arith.addi %0, %c3_i32 : i32
    %c2_i32_16 = arith.constant 2 : i32
    %27 = arith.subi %26, %c2_i32_16 : i32
    %c0_i32_17 = arith.constant 0 : i32
    %28 = arith.cmpi sge, %27, %c0_i32_17 : i32
    %c8_i32_18 = arith.constant 8 : i32
    %29 = arith.cmpi slt, %27, %c8_i32_18 : i32
    %30 = arith.andi %28, %29 : i1
    %31 = arith.extui %30 : i1 to i32
    %c0_i32_19 = arith.constant 0 : i32
    %32 = arith.cmpi ne, %31, %c0_i32_19 : i32
    scf.if %32 {
      %c0_i32_172 = arith.constant 0 : i32
      %c7_i32_173 = arith.constant 7 : i32
      %231 = arith.maxsi %c0_i32_172, %27 : i32
      %232 = arith.minsi %c7_i32_173, %231 : i32
      %c0_174 = arith.constant 0 : index
      %233 = arith.index_cast %232 : i32 to index
      %c0_175 = arith.constant 0 : index
      %c0_176 = arith.constant 0 : index
      %234 = vector.load %arg2[%c0_174, %233, %c0_175, %c0_176] : memref<1x8x16x64xbf16, #tpu.memory_space<vmem>>, vector<1x1x16x64xbf16>
      %235 = vector.shape_cast %234 : vector<1x1x16x64xbf16> to vector<16x64xbf16>
      %c52 = arith.constant 52 : index
      %c0_177 = arith.constant 0 : index
      %236 = vector.load %arg8[%c52, %c0_177] : memref<171x384xbf16, #tpu.memory_space<vmem>>, vector<16x64xbf16>
      tpu.vector_store %arg8[%c52, %c0_177], %235 {strides = array<i32>} : memref<171x384xbf16, #tpu.memory_space<vmem>>, vector<16x64xbf16>,
      %c35 = arith.constant 35 : index
      %c128 = arith.constant 128 : index
      %237 = vector.load %arg8[%c35, %c128] : memref<171x384xbf16, #tpu.memory_space<vmem>>, vector<16x64xbf16>
      tpu.vector_store %arg8[%c35, %c128], %235 {strides = array<i32>} : memref<171x384xbf16, #tpu.memory_space<vmem>>, vector<16x64xbf16>,
      %c18 = arith.constant 18 : index
      %c256 = arith.constant 256 : index
      %238 = vector.load %arg8[%c18, %c256] : memref<171x384xbf16, #tpu.memory_space<vmem>>, vector<16x64xbf16>
      tpu.vector_store %arg8[%c18, %c256], %235 {strides = array<i32>} : memref<171x384xbf16, #tpu.memory_space<vmem>>, vector<16x64xbf16>,
    } else {
    }
    %c4_i32 = arith.constant 4 : i32
    %33 = arith.addi %0, %c4_i32 : i32
    %c2_i32_20 = arith.constant 2 : i32
    %34 = arith.subi %33, %c2_i32_20 : i32
    %c0_i32_21 = arith.constant 0 : i32
    %35 = arith.cmpi sge, %34, %c0_i32_21 : i32
    %c8_i32_22 = arith.constant 8 : i32
    %36 = arith.cmpi slt, %34, %c8_i32_22 : i32
    %37 = arith.andi %35, %36 : i1
    %38 = arith.extui %37 : i1 to i32
    %c0_i32_23 = arith.constant 0 : i32
    %39 = arith.cmpi ne, %38, %c0_i32_23 : i32
    scf.if %39 {
      %c0_i32_172 = arith.constant 0 : i32
      %c7_i32_173 = arith.constant 7 : i32
      %231 = arith.maxsi %c0_i32_172, %34 : i32
      %232 = arith.minsi %c7_i32_173, %231 : i32
      %c0_174 = arith.constant 0 : index
      %233 = arith.index_cast %232 : i32 to index
      %c0_175 = arith.constant 0 : index
      %c0_176 = arith.constant 0 : index
      %234 = vector.load %arg2[%c0_174, %233, %c0_175, %c0_176] : memref<1x8x16x64xbf16, #tpu.memory_space<vmem>>, vector<1x1x16x64xbf16>
      %235 = vector.shape_cast %234 : vector<1x1x16x64xbf16> to vector<16x64xbf16>
      %c69 = arith.constant 69 : index
      %c0_177 = arith.constant 0 : index
      %236 = vector.load %arg8[%c69, %c0_177] : memref<171x384xbf16, #tpu.memory_space<vmem>>, vector<16x64xbf16>
      tpu.vector_store %arg8[%c69, %c0_177], %235 {strides = array<i32>} : memref<171x384xbf16, #tpu.memory_space<vmem>>, vector<16x64xbf16>,
      %c52 = arith.constant 52 : index
      %c128 = arith.constant 128 : index
      %237 = vector.load %arg8[%c52, %c128] : memref<171x384xbf16, #tpu.memory_space<vmem>>, vector<16x64xbf16>
      tpu.vector_store %arg8[%c52, %c128], %235 {strides = array<i32>} : memref<171x384xbf16, #tpu.memory_space<vmem>>, vector<16x64xbf16>,
      %c35 = arith.constant 35 : index
      %c256 = arith.constant 256 : index
      %238 = vector.load %arg8[%c35, %c256] : memref<171x384xbf16, #tpu.memory_space<vmem>>, vector<16x64xbf16>
      tpu.vector_store %arg8[%c35, %c256], %235 {strides = array<i32>} : memref<171x384xbf16, #tpu.memory_space<vmem>>, vector<16x64xbf16>,
    } else {
    }
    %c5_i32 = arith.constant 5 : i32
    %40 = arith.addi %0, %c5_i32 : i32
    %c2_i32_24 = arith.constant 2 : i32
    %41 = arith.subi %40, %c2_i32_24 : i32
    %c0_i32_25 = arith.constant 0 : i32
    %42 = arith.cmpi sge, %41, %c0_i32_25 : i32
    %c8_i32_26 = arith.constant 8 : i32
    %43 = arith.cmpi slt, %41, %c8_i32_26 : i32
    %44 = arith.andi %42, %43 : i1
    %45 = arith.extui %44 : i1 to i32
    %c0_i32_27 = arith.constant 0 : i32
    %46 = arith.cmpi ne, %45, %c0_i32_27 : i32
    scf.if %46 {
      %c0_i32_172 = arith.constant 0 : i32
      %c7_i32_173 = arith.constant 7 : i32
      %231 = arith.maxsi %c0_i32_172, %41 : i32
      %232 = arith.minsi %c7_i32_173, %231 : i32
      %c0_174 = arith.constant 0 : index
      %233 = arith.index_cast %232 : i32 to index
      %c0_175 = arith.constant 0 : index
      %c0_176 = arith.constant 0 : index
      %234 = vector.load %arg2[%c0_174, %233, %c0_175, %c0_176] : memref<1x8x16x64xbf16, #tpu.memory_space<vmem>>, vector<1x1x16x64xbf16>
      %235 = vector.shape_cast %234 : vector<1x1x16x64xbf16> to vector<16x64xbf16>
      %c86 = arith.constant 86 : index
      %c0_177 = arith.constant 0 : index
      %236 = vector.load %arg8[%c86, %c0_177] : memref<171x384xbf16, #tpu.memory_space<vmem>>, vector<16x64xbf16>
      tpu.vector_store %arg8[%c86, %c0_177], %235 {strides = array<i32>} : memref<171x384xbf16, #tpu.memory_space<vmem>>, vector<16x64xbf16>,
      %c69 = arith.constant 69 : index
      %c128 = arith.constant 128 : index
      %237 = vector.load %arg8[%c69, %c128] : memref<171x384xbf16, #tpu.memory_space<vmem>>, vector<16x64xbf16>
      tpu.vector_store %arg8[%c69, %c128], %235 {strides = array<i32>} : memref<171x384xbf16, #tpu.memory_space<vmem>>, vector<16x64xbf16>,
      %c52 = arith.constant 52 : index
      %c256 = arith.constant 256 : index
      %238 = vector.load %arg8[%c52, %c256] : memref<171x384xbf16, #tpu.memory_space<vmem>>, vector<16x64xbf16>
      tpu.vector_store %arg8[%c52, %c256], %235 {strides = array<i32>} : memref<171x384xbf16, #tpu.memory_space<vmem>>, vector<16x64xbf16>,
    } else {
    }
    %c6_i32 = arith.constant 6 : i32
    %47 = arith.addi %0, %c6_i32 : i32
    %c2_i32_28 = arith.constant 2 : i32
    %48 = arith.subi %47, %c2_i32_28 : i32
    %c0_i32_29 = arith.constant 0 : i32
    %49 = arith.cmpi sge, %48, %c0_i32_29 : i32
    %c8_i32_30 = arith.constant 8 : i32
    %50 = arith.cmpi slt, %48, %c8_i32_30 : i32
    %51 = arith.andi %49, %50 : i1
    %52 = arith.extui %51 : i1 to i32
    %c0_i32_31 = arith.constant 0 : i32
    %53 = arith.cmpi ne, %52, %c0_i32_31 : i32
    scf.if %53 {
      %c0_i32_172 = arith.constant 0 : i32
      %c7_i32_173 = arith.constant 7 : i32
      %231 = arith.maxsi %c0_i32_172, %48 : i32
      %232 = arith.minsi %c7_i32_173, %231 : i32
      %c0_174 = arith.constant 0 : index
      %233 = arith.index_cast %232 : i32 to index
      %c0_175 = arith.constant 0 : index
      %c0_176 = arith.constant 0 : index
      %234 = vector.load %arg2[%c0_174, %233, %c0_175, %c0_176] : memref<1x8x16x64xbf16, #tpu.memory_space<vmem>>, vector<1x1x16x64xbf16>
      %235 = vector.shape_cast %234 : vector<1x1x16x64xbf16> to vector<16x64xbf16>
      %c103 = arith.constant 103 : index
      %c0_177 = arith.constant 0 : index
      %236 = vector.load %arg8[%c103, %c0_177] : memref<171x384xbf16, #tpu.memory_space<vmem>>, vector<16x64xbf16>
      tpu.vector_store %arg8[%c103, %c0_177], %235 {strides = array<i32>} : memref<171x384xbf16, #tpu.memory_space<vmem>>, vector<16x64xbf16>,
      %c86 = arith.constant 86 : index
      %c128 = arith.constant 128 : index
      %237 = vector.load %arg8[%c86, %c128] : memref<171x384xbf16, #tpu.memory_space<vmem>>, vector<16x64xbf16>
      tpu.vector_store %arg8[%c86, %c128], %235 {strides = array<i32>} : memref<171x384xbf16, #tpu.memory_space<vmem>>, vector<16x64xbf16>,
      %c69 = arith.constant 69 : index
      %c256 = arith.constant 256 : index
      %238 = vector.load %arg8[%c69, %c256] : memref<171x384xbf16, #tpu.memory_space<vmem>>, vector<16x64xbf16>
      tpu.vector_store %arg8[%c69, %c256], %235 {strides = array<i32>} : memref<171x384xbf16, #tpu.memory_space<vmem>>, vector<16x64xbf16>,
    } else {
    }
    %c7_i32 = arith.constant 7 : i32
    %54 = arith.addi %0, %c7_i32 : i32
    %c2_i32_32 = arith.constant 2 : i32
    %55 = arith.subi %54, %c2_i32_32 : i32
    %c0_i32_33 = arith.constant 0 : i32
    %56 = arith.cmpi sge, %55, %c0_i32_33 : i32
    %c8_i32_34 = arith.constant 8 : i32
    %57 = arith.cmpi slt, %55, %c8_i32_34 : i32
    %58 = arith.andi %56, %57 : i1
    %59 = arith.extui %58 : i1 to i32
    %c0_i32_35 = arith.constant 0 : i32
    %60 = arith.cmpi ne, %59, %c0_i32_35 : i32
    scf.if %60 {
      %c0_i32_172 = arith.constant 0 : i32
      %c7_i32_173 = arith.constant 7 : i32
      %231 = arith.maxsi %c0_i32_172, %55 : i32
      %232 = arith.minsi %c7_i32_173, %231 : i32
      %c0_174 = arith.constant 0 : index
      %233 = arith.index_cast %232 : i32 to index
      %c0_175 = arith.constant 0 : index
      %c0_176 = arith.constant 0 : index
      %234 = vector.load %arg2[%c0_174, %233, %c0_175, %c0_176] : memref<1x8x16x64xbf16, #tpu.memory_space<vmem>>, vector<1x1x16x64xbf16>
      %235 = vector.shape_cast %234 : vector<1x1x16x64xbf16> to vector<16x64xbf16>
      %c120 = arith.constant 120 : index
      %c0_177 = arith.constant 0 : index
      %236 = vector.load %arg8[%c120, %c0_177] : memref<171x384xbf16, #tpu.memory_space<vmem>>, vector<16x64xbf16>
      tpu.vector_store %arg8[%c120, %c0_177], %235 {strides = array<i32>} : memref<171x384xbf16, #tpu.memory_space<vmem>>, vector<16x64xbf16>,
      %c103 = arith.constant 103 : index
      %c128 = arith.constant 128 : index
      %237 = vector.load %arg8[%c103, %c128] : memref<171x384xbf16, #tpu.memory_space<vmem>>, vector<16x64xbf16>
      tpu.vector_store %arg8[%c103, %c128], %235 {strides = array<i32>} : memref<171x384xbf16, #tpu.memory_space<vmem>>, vector<16x64xbf16>,
      %c86 = arith.constant 86 : index
      %c256 = arith.constant 256 : index
      %238 = vector.load %arg8[%c86, %c256] : memref<171x384xbf16, #tpu.memory_space<vmem>>, vector<16x64xbf16>
      tpu.vector_store %arg8[%c86, %c256], %235 {strides = array<i32>} : memref<171x384xbf16, #tpu.memory_space<vmem>>, vector<16x64xbf16>,
    } else {
    }
    %c8_i32_36 = arith.constant 8 : i32
    %61 = arith.addi %0, %c8_i32_36 : i32
    %c2_i32_37 = arith.constant 2 : i32
    %62 = arith.subi %61, %c2_i32_37 : i32
    %c0_i32_38 = arith.constant 0 : i32
    %63 = arith.cmpi sge, %62, %c0_i32_38 : i32
    %c8_i32_39 = arith.constant 8 : i32
    %64 = arith.cmpi slt, %62, %c8_i32_39 : i32
    %65 = arith.andi %63, %64 : i1
    %66 = arith.extui %65 : i1 to i32
    %c0_i32_40 = arith.constant 0 : i32
    %67 = arith.cmpi ne, %66, %c0_i32_40 : i32
    scf.if %67 {
      %c0_i32_172 = arith.constant 0 : i32
      %c7_i32_173 = arith.constant 7 : i32
      %231 = arith.maxsi %c0_i32_172, %62 : i32
      %232 = arith.minsi %c7_i32_173, %231 : i32
      %c0_174 = arith.constant 0 : index
      %233 = arith.index_cast %232 : i32 to index
      %c0_175 = arith.constant 0 : index
      %c0_176 = arith.constant 0 : index
      %234 = vector.load %arg2[%c0_174, %233, %c0_175, %c0_176] : memref<1x8x16x64xbf16, #tpu.memory_space<vmem>>, vector<1x1x16x64xbf16>
      %235 = vector.shape_cast %234 : vector<1x1x16x64xbf16> to vector<16x64xbf16>
      %c137 = arith.constant 137 : index
      %c0_177 = arith.constant 0 : index
      %236 = vector.load %arg8[%c137, %c0_177] : memref<171x384xbf16, #tpu.memory_space<vmem>>, vector<16x64xbf16>
      tpu.vector_store %arg8[%c137, %c0_177], %235 {strides = array<i32>} : memref<171x384xbf16, #tpu.memory_space<vmem>>, vector<16x64xbf16>,
      %c120 = arith.constant 120 : index
      %c128 = arith.constant 128 : index
      %237 = vector.load %arg8[%c120, %c128] : memref<171x384xbf16, #tpu.memory_space<vmem>>, vector<16x64xbf16>
      tpu.vector_store %arg8[%c120, %c128], %235 {strides = array<i32>} : memref<171x384xbf16, #tpu.memory_space<vmem>>, vector<16x64xbf16>,
      %c103 = arith.constant 103 : index
      %c256 = arith.constant 256 : index
      %238 = vector.load %arg8[%c103, %c256] : memref<171x384xbf16, #tpu.memory_space<vmem>>, vector<16x64xbf16>
      tpu.vector_store %arg8[%c103, %c256], %235 {strides = array<i32>} : memref<171x384xbf16, #tpu.memory_space<vmem>>, vector<16x64xbf16>,
    } else {
    }
    %c9_i32 = arith.constant 9 : i32
    %68 = arith.addi %0, %c9_i32 : i32
    %c2_i32_41 = arith.constant 2 : i32
    %69 = arith.subi %68, %c2_i32_41 : i32
    %c0_i32_42 = arith.constant 0 : i32
    %70 = arith.cmpi sge, %69, %c0_i32_42 : i32
    %c8_i32_43 = arith.constant 8 : i32
    %71 = arith.cmpi slt, %69, %c8_i32_43 : i32
    %72 = arith.andi %70, %71 : i1
    %73 = arith.extui %72 : i1 to i32
    %c0_i32_44 = arith.constant 0 : i32
    %74 = arith.cmpi ne, %73, %c0_i32_44 : i32
    scf.if %74 {
      %c0_i32_172 = arith.constant 0 : i32
      %c7_i32_173 = arith.constant 7 : i32
      %231 = arith.maxsi %c0_i32_172, %69 : i32
      %232 = arith.minsi %c7_i32_173, %231 : i32
      %c0_174 = arith.constant 0 : index
      %233 = arith.index_cast %232 : i32 to index
      %c0_175 = arith.constant 0 : index
      %c0_176 = arith.constant 0 : index
      %234 = vector.load %arg2[%c0_174, %233, %c0_175, %c0_176] : memref<1x8x16x64xbf16, #tpu.memory_space<vmem>>, vector<1x1x16x64xbf16>
      %235 = vector.shape_cast %234 : vector<1x1x16x64xbf16> to vector<16x64xbf16>
      %c154 = arith.constant 154 : index
      %c0_177 = arith.constant 0 : index
      %236 = vector.load %arg8[%c154, %c0_177] : memref<171x384xbf16, #tpu.memory_space<vmem>>, vector<16x64xbf16>
      tpu.vector_store %arg8[%c154, %c0_177], %235 {strides = array<i32>} : memref<171x384xbf16, #tpu.memory_space<vmem>>, vector<16x64xbf16>,
      %c137 = arith.constant 137 : index
      %c128 = arith.constant 128 : index
      %237 = vector.load %arg8[%c137, %c128] : memref<171x384xbf16, #tpu.memory_space<vmem>>, vector<16x64xbf16>
      tpu.vector_store %arg8[%c137, %c128], %235 {strides = array<i32>} : memref<171x384xbf16, #tpu.memory_space<vmem>>, vector<16x64xbf16>,
      %c120 = arith.constant 120 : index
      %c256 = arith.constant 256 : index
      %238 = vector.load %arg8[%c120, %c256] : memref<171x384xbf16, #tpu.memory_space<vmem>>, vector<16x64xbf16>
      tpu.vector_store %arg8[%c120, %c256], %235 {strides = array<i32>} : memref<171x384xbf16, #tpu.memory_space<vmem>>, vector<16x64xbf16>,
    } else {
    }
    %c10_i32 = arith.constant 10 : i32
    %75 = arith.addi %0, %c10_i32 : i32
    %c2_i32_45 = arith.constant 2 : i32
    %76 = arith.subi %75, %c2_i32_45 : i32
    %c0_i32_46 = arith.constant 0 : i32
    %77 = arith.cmpi sge, %76, %c0_i32_46 : i32
    %c8_i32_47 = arith.constant 8 : i32
    %78 = arith.cmpi slt, %76, %c8_i32_47 : i32
    %79 = arith.andi %77, %78 : i1
    %80 = arith.extui %79 : i1 to i32
    %c0_i32_48 = arith.constant 0 : i32
    %81 = arith.cmpi ne, %80, %c0_i32_48 : i32
    scf.if %81 {
      %c0_i32_172 = arith.constant 0 : i32
      %c7_i32_173 = arith.constant 7 : i32
      %231 = arith.maxsi %c0_i32_172, %76 : i32
      %232 = arith.minsi %c7_i32_173, %231 : i32
      %c0_174 = arith.constant 0 : index
      %233 = arith.index_cast %232 : i32 to index
      %c0_175 = arith.constant 0 : index
      %c0_176 = arith.constant 0 : index
      %234 = vector.load %arg2[%c0_174, %233, %c0_175, %c0_176] : memref<1x8x16x64xbf16, #tpu.memory_space<vmem>>, vector<1x1x16x64xbf16>
      %235 = vector.shape_cast %234 : vector<1x1x16x64xbf16> to vector<16x64xbf16>
      %c154 = arith.constant 154 : index
      %c128 = arith.constant 128 : index
      %236 = vector.load %arg8[%c154, %c128] : memref<171x384xbf16, #tpu.memory_space<vmem>>, vector<16x64xbf16>
      tpu.vector_store %arg8[%c154, %c128], %235 {strides = array<i32>} : memref<171x384xbf16, #tpu.memory_space<vmem>>, vector<16x64xbf16>,
      %c137 = arith.constant 137 : index
      %c256 = arith.constant 256 : index
      %237 = vector.load %arg8[%c137, %c256] : memref<171x384xbf16, #tpu.memory_space<vmem>>, vector<16x64xbf16>
      tpu.vector_store %arg8[%c137, %c256], %235 {strides = array<i32>} : memref<171x384xbf16, #tpu.memory_space<vmem>>, vector<16x64xbf16>,
    } else {
    }
    %c11_i32 = arith.constant 11 : i32
    %82 = arith.addi %0, %c11_i32 : i32
    %c2_i32_49 = arith.constant 2 : i32
    %83 = arith.subi %82, %c2_i32_49 : i32
    %c0_i32_50 = arith.constant 0 : i32
    %84 = arith.cmpi sge, %83, %c0_i32_50 : i32
    %c8_i32_51 = arith.constant 8 : i32
    %85 = arith.cmpi slt, %83, %c8_i32_51 : i32
    %86 = arith.andi %84, %85 : i1
    %87 = arith.extui %86 : i1 to i32
    %c0_i32_52 = arith.constant 0 : i32
    %88 = arith.cmpi ne, %87, %c0_i32_52 : i32
    scf.if %88 {
      %c0_i32_172 = arith.constant 0 : i32
      %c7_i32_173 = arith.constant 7 : i32
      %231 = arith.maxsi %c0_i32_172, %83 : i32
      %232 = arith.minsi %c7_i32_173, %231 : i32
      %c0_174 = arith.constant 0 : index
      %233 = arith.index_cast %232 : i32 to index
      %c0_175 = arith.constant 0 : index
      %c0_176 = arith.constant 0 : index
      %234 = vector.load %arg2[%c0_174, %233, %c0_175, %c0_176] : memref<1x8x16x64xbf16, #tpu.memory_space<vmem>>, vector<1x1x16x64xbf16>
      %235 = vector.shape_cast %234 : vector<1x1x16x64xbf16> to vector<16x64xbf16>
      %c154 = arith.constant 154 : index
      %c256 = arith.constant 256 : index
      %236 = vector.load %arg8[%c154, %c256] : memref<171x384xbf16, #tpu.memory_space<vmem>>, vector<16x64xbf16>
      tpu.vector_store %arg8[%c154, %c256], %235 {strides = array<i32>} : memref<171x384xbf16, #tpu.memory_space<vmem>>, vector<16x64xbf16>,
    } else {
    }
    %c0_53 = arith.constant 0 : index
    %c0_54 = arith.constant 0 : index
    %89 = vector.load %arg8[%c0_53, %c0_54] : memref<171x384xbf16, #tpu.memory_space<vmem>>, vector<169x384xbf16>
    %c0_55 = arith.constant 0 : index
    %c0_56 = arith.constant 0 : index
    %c0_57 = arith.constant 0 : index
    %90 = vector.load %arg3[%c0_55, %c0_56, %c0_57] : memref<3x384x128xbf16, #tpu.memory_space<vmem>>, vector<1x384x128xbf16>
    %91 = vector.shape_cast %90 : vector<1x384x128xbf16> to vector<384x128xbf16>
    %cst_58 = arith.constant dense<0.000000e+00> : vector<169x128xf32>
    %92 = tpu.matmul %89, %91, %cst_58 {dimension_numbers = #tpu.dot_dimension_numbers<[1], [0], [0], [1], [0, 0, 1, 1], [], []>} : vector<169x384xbf16>, vector<384x128xbf16>, vector<169x128xf32> -> vector<169x128xf32>
    %c1 = arith.constant 1 : index
    %c0_59 = arith.constant 0 : index
    %93 = vector.load %arg8[%c1, %c0_59] : memref<171x384xbf16, #tpu.memory_space<vmem>>, vector<169x384xbf16>
    %c1_60 = arith.constant 1 : index
    %c0_61 = arith.constant 0 : index
    %c0_62 = arith.constant 0 : index
    %94 = vector.load %arg3[%c1_60, %c0_61, %c0_62] : memref<3x384x128xbf16, #tpu.memory_space<vmem>>, vector<1x384x128xbf16>
    %95 = vector.shape_cast %94 : vector<1x384x128xbf16> to vector<384x128xbf16>
    %cst_63 = arith.constant dense<0.000000e+00> : vector<169x128xf32>
    %96 = tpu.matmul %93, %95, %cst_63 {dimension_numbers = #tpu.dot_dimension_numbers<[1], [0], [0], [1], [0, 0, 1, 1], [], []>} : vector<169x384xbf16>, vector<384x128xbf16>, vector<169x128xf32> -> vector<169x128xf32>
    %97 = arith.addf %92, %96 : vector<169x128xf32>
    %c2 = arith.constant 2 : index
    %c0_64 = arith.constant 0 : index
    %98 = vector.load %arg8[%c2, %c0_64] : memref<171x384xbf16, #tpu.memory_space<vmem>>, vector<169x384xbf16>
    %c2_65 = arith.constant 2 : index
    %c0_66 = arith.constant 0 : index
    %c0_67 = arith.constant 0 : index
    %99 = vector.load %arg3[%c2_65, %c0_66, %c0_67] : memref<3x384x128xbf16, #tpu.memory_space<vmem>>, vector<1x384x128xbf16>
    %100 = vector.shape_cast %99 : vector<1x384x128xbf16> to vector<384x128xbf16>
    %cst_68 = arith.constant dense<0.000000e+00> : vector<169x128xf32>
    %101 = tpu.matmul %98, %100, %cst_68 {dimension_numbers = #tpu.dot_dimension_numbers<[1], [0], [0], [1], [0, 0, 1, 1], [], []>} : vector<169x384xbf16>, vector<384x128xbf16>, vector<169x128xf32> -> vector<169x128xf32>
    %102 = arith.addf %97, %101 : vector<169x128xf32>
    %c0_69 = arith.constant 0 : index
    %c0_70 = arith.constant 0 : index
    %103 = vector.load %arg4[%c0_69, %c0_70] : memref<1x128xf32, #tpu.memory_space<vmem>>, vector<1x128xf32>
    %104 = vector.broadcast %103 : vector<1x128xf32> to vector<169x128xf32>
    %105 = arith.addf %102, %104 : vector<169x128xf32>
    %cst_71 = arith.constant 0.000000e+00 : f32
    %106 = vector.broadcast %cst_71 : f32 to vector<169x128xf32>
    %107 = arith.maximumf %105, %106 : vector<169x128xf32>
    %108 = arith.truncf %107 : vector<169x128xf32> to vector<169x128xbf16>
    %c0_72 = arith.constant 0 : index
    %c0_73 = arith.constant 0 : index
    %109 = vector.load %arg9[%c0_72, %c0_73] : memref<169x128xbf16, #tpu.memory_space<vmem>>, vector<169x128xbf16>
    tpu.vector_store %arg9[%c0_72, %c0_73], %108 {strides = array<i32>} : memref<169x128xbf16, #tpu.memory_space<vmem>>, vector<169x128xbf16>,
    %c0_i32_74 = arith.constant 0 : i32
    %110 = arith.addi %0, %c0_i32_74 : i32
    %c1_i32_75 = arith.constant 1 : i32
    %111 = arith.subi %110, %c1_i32_75 : i32
    %c0_i32_76 = arith.constant 0 : i32
    %112 = arith.cmpi sge, %111, %c0_i32_76 : i32
    %c8_i32_77 = arith.constant 8 : i32
    %113 = arith.cmpi slt, %111, %c8_i32_77 : i32
    %114 = arith.andi %112, %113 : i1
    %115 = arith.extui %114 : i1 to i32
    %c0_i32_78 = arith.constant 0 : i32
    %116 = arith.cmpi ne, %115, %c0_i32_78 : i32
    scf.if %116 {
      %c0_172 = arith.constant 0 : index
      %c0_173 = arith.constant 0 : index
      %231 = vector.load %arg9[%c0_172, %c0_173] : memref<169x128xbf16, #tpu.memory_space<vmem>>, vector<16x128xbf16>
      %c1_174 = arith.constant 1 : index
      %c0_175 = arith.constant 0 : index
      %232 = vector.load %arg10[%c1_174, %c0_175] : memref<137x384xbf16, #tpu.memory_space<vmem>>, vector<16x128xbf16>
      tpu.vector_store %arg10[%c1_174, %c0_175], %231 {strides = array<i32>} : memref<137x384xbf16, #tpu.memory_space<vmem>>, vector<16x128xbf16>,
    } else {
    }
    %c1_i32_79 = arith.constant 1 : i32
    %117 = arith.addi %0, %c1_i32_79 : i32
    %c1_i32_80 = arith.constant 1 : i32
    %118 = arith.subi %117, %c1_i32_80 : i32
    %c0_i32_81 = arith.constant 0 : i32
    %119 = arith.cmpi sge, %118, %c0_i32_81 : i32
    %c8_i32_82 = arith.constant 8 : i32
    %120 = arith.cmpi slt, %118, %c8_i32_82 : i32
    %121 = arith.andi %119, %120 : i1
    %122 = arith.extui %121 : i1 to i32
    %c0_i32_83 = arith.constant 0 : i32
    %123 = arith.cmpi ne, %122, %c0_i32_83 : i32
    scf.if %123 {
      %c17 = arith.constant 17 : index
      %c0_172 = arith.constant 0 : index
      %231 = vector.load %arg9[%c17, %c0_172] : memref<169x128xbf16, #tpu.memory_space<vmem>>, vector<16x128xbf16>
      %c18 = arith.constant 18 : index
      %c0_173 = arith.constant 0 : index
      %232 = vector.load %arg10[%c18, %c0_173] : memref<137x384xbf16, #tpu.memory_space<vmem>>, vector<16x128xbf16>
      tpu.vector_store %arg10[%c18, %c0_173], %231 {strides = array<i32>} : memref<137x384xbf16, #tpu.memory_space<vmem>>, vector<16x128xbf16>,
      %c1_174 = arith.constant 1 : index
      %c128 = arith.constant 128 : index
      %233 = vector.load %arg10[%c1_174, %c128] : memref<137x384xbf16, #tpu.memory_space<vmem>>, vector<16x128xbf16>
      tpu.vector_store %arg10[%c1_174, %c128], %231 {strides = array<i32>} : memref<137x384xbf16, #tpu.memory_space<vmem>>, vector<16x128xbf16>,
    } else {
    }
    %c2_i32_84 = arith.constant 2 : i32
    %124 = arith.addi %0, %c2_i32_84 : i32
    %c1_i32_85 = arith.constant 1 : i32
    %125 = arith.subi %124, %c1_i32_85 : i32
    %c0_i32_86 = arith.constant 0 : i32
    %126 = arith.cmpi sge, %125, %c0_i32_86 : i32
    %c8_i32_87 = arith.constant 8 : i32
    %127 = arith.cmpi slt, %125, %c8_i32_87 : i32
    %128 = arith.andi %126, %127 : i1
    %129 = arith.extui %128 : i1 to i32
    %c0_i32_88 = arith.constant 0 : i32
    %130 = arith.cmpi ne, %129, %c0_i32_88 : i32
    scf.if %130 {
      %c34 = arith.constant 34 : index
      %c0_172 = arith.constant 0 : index
      %231 = vector.load %arg9[%c34, %c0_172] : memref<169x128xbf16, #tpu.memory_space<vmem>>, vector<16x128xbf16>
      %c35 = arith.constant 35 : index
      %c0_173 = arith.constant 0 : index
      %232 = vector.load %arg10[%c35, %c0_173] : memref<137x384xbf16, #tpu.memory_space<vmem>>, vector<16x128xbf16>
      tpu.vector_store %arg10[%c35, %c0_173], %231 {strides = array<i32>} : memref<137x384xbf16, #tpu.memory_space<vmem>>, vector<16x128xbf16>,
      %c18 = arith.constant 18 : index
      %c128 = arith.constant 128 : index
      %233 = vector.load %arg10[%c18, %c128] : memref<137x384xbf16, #tpu.memory_space<vmem>>, vector<16x128xbf16>
      tpu.vector_store %arg10[%c18, %c128], %231 {strides = array<i32>} : memref<137x384xbf16, #tpu.memory_space<vmem>>, vector<16x128xbf16>,
      %c1_174 = arith.constant 1 : index
      %c256 = arith.constant 256 : index
      %234 = vector.load %arg10[%c1_174, %c256] : memref<137x384xbf16, #tpu.memory_space<vmem>>, vector<16x128xbf16>
      tpu.vector_store %arg10[%c1_174, %c256], %231 {strides = array<i32>} : memref<137x384xbf16, #tpu.memory_space<vmem>>, vector<16x128xbf16>,
    } else {
    }
    %c3_i32_89 = arith.constant 3 : i32
    %131 = arith.addi %0, %c3_i32_89 : i32
    %c1_i32_90 = arith.constant 1 : i32
    %132 = arith.subi %131, %c1_i32_90 : i32
    %c0_i32_91 = arith.constant 0 : i32
    %133 = arith.cmpi sge, %132, %c0_i32_91 : i32
    %c8_i32_92 = arith.constant 8 : i32
    %134 = arith.cmpi slt, %132, %c8_i32_92 : i32
    %135 = arith.andi %133, %134 : i1
    %136 = arith.extui %135 : i1 to i32
    %c0_i32_93 = arith.constant 0 : i32
    %137 = arith.cmpi ne, %136, %c0_i32_93 : i32
    scf.if %137 {
      %c51 = arith.constant 51 : index
      %c0_172 = arith.constant 0 : index
      %231 = vector.load %arg9[%c51, %c0_172] : memref<169x128xbf16, #tpu.memory_space<vmem>>, vector<16x128xbf16>
      %c52 = arith.constant 52 : index
      %c0_173 = arith.constant 0 : index
      %232 = vector.load %arg10[%c52, %c0_173] : memref<137x384xbf16, #tpu.memory_space<vmem>>, vector<16x128xbf16>
      tpu.vector_store %arg10[%c52, %c0_173], %231 {strides = array<i32>} : memref<137x384xbf16, #tpu.memory_space<vmem>>, vector<16x128xbf16>,
      %c35 = arith.constant 35 : index
      %c128 = arith.constant 128 : index
      %233 = vector.load %arg10[%c35, %c128] : memref<137x384xbf16, #tpu.memory_space<vmem>>, vector<16x128xbf16>
      tpu.vector_store %arg10[%c35, %c128], %231 {strides = array<i32>} : memref<137x384xbf16, #tpu.memory_space<vmem>>, vector<16x128xbf16>,
      %c18 = arith.constant 18 : index
      %c256 = arith.constant 256 : index
      %234 = vector.load %arg10[%c18, %c256] : memref<137x384xbf16, #tpu.memory_space<vmem>>, vector<16x128xbf16>
      tpu.vector_store %arg10[%c18, %c256], %231 {strides = array<i32>} : memref<137x384xbf16, #tpu.memory_space<vmem>>, vector<16x128xbf16>,
    } else {
    }
    %c4_i32_94 = arith.constant 4 : i32
    %138 = arith.addi %0, %c4_i32_94 : i32
    %c1_i32_95 = arith.constant 1 : i32
    %139 = arith.subi %138, %c1_i32_95 : i32
    %c0_i32_96 = arith.constant 0 : i32
    %140 = arith.cmpi sge, %139, %c0_i32_96 : i32
    %c8_i32_97 = arith.constant 8 : i32
    %141 = arith.cmpi slt, %139, %c8_i32_97 : i32
    %142 = arith.andi %140, %141 : i1
    %143 = arith.extui %142 : i1 to i32
    %c0_i32_98 = arith.constant 0 : i32
    %144 = arith.cmpi ne, %143, %c0_i32_98 : i32
    scf.if %144 {
      %c68 = arith.constant 68 : index
      %c0_172 = arith.constant 0 : index
      %231 = vector.load %arg9[%c68, %c0_172] : memref<169x128xbf16, #tpu.memory_space<vmem>>, vector<16x128xbf16>
      %c69 = arith.constant 69 : index
      %c0_173 = arith.constant 0 : index
      %232 = vector.load %arg10[%c69, %c0_173] : memref<137x384xbf16, #tpu.memory_space<vmem>>, vector<16x128xbf16>
      tpu.vector_store %arg10[%c69, %c0_173], %231 {strides = array<i32>} : memref<137x384xbf16, #tpu.memory_space<vmem>>, vector<16x128xbf16>,
      %c52 = arith.constant 52 : index
      %c128 = arith.constant 128 : index
      %233 = vector.load %arg10[%c52, %c128] : memref<137x384xbf16, #tpu.memory_space<vmem>>, vector<16x128xbf16>
      tpu.vector_store %arg10[%c52, %c128], %231 {strides = array<i32>} : memref<137x384xbf16, #tpu.memory_space<vmem>>, vector<16x128xbf16>,
      %c35 = arith.constant 35 : index
      %c256 = arith.constant 256 : index
      %234 = vector.load %arg10[%c35, %c256] : memref<137x384xbf16, #tpu.memory_space<vmem>>, vector<16x128xbf16>
      tpu.vector_store %arg10[%c35, %c256], %231 {strides = array<i32>} : memref<137x384xbf16, #tpu.memory_space<vmem>>, vector<16x128xbf16>,
    } else {
    }
    %c5_i32_99 = arith.constant 5 : i32
    %145 = arith.addi %0, %c5_i32_99 : i32
    %c1_i32_100 = arith.constant 1 : i32
    %146 = arith.subi %145, %c1_i32_100 : i32
    %c0_i32_101 = arith.constant 0 : i32
    %147 = arith.cmpi sge, %146, %c0_i32_101 : i32
    %c8_i32_102 = arith.constant 8 : i32
    %148 = arith.cmpi slt, %146, %c8_i32_102 : i32
    %149 = arith.andi %147, %148 : i1
    %150 = arith.extui %149 : i1 to i32
    %c0_i32_103 = arith.constant 0 : i32
    %151 = arith.cmpi ne, %150, %c0_i32_103 : i32
    scf.if %151 {
      %c85 = arith.constant 85 : index
      %c0_172 = arith.constant 0 : index
      %231 = vector.load %arg9[%c85, %c0_172] : memref<169x128xbf16, #tpu.memory_space<vmem>>, vector<16x128xbf16>
      %c86 = arith.constant 86 : index
      %c0_173 = arith.constant 0 : index
      %232 = vector.load %arg10[%c86, %c0_173] : memref<137x384xbf16, #tpu.memory_space<vmem>>, vector<16x128xbf16>
      tpu.vector_store %arg10[%c86, %c0_173], %231 {strides = array<i32>} : memref<137x384xbf16, #tpu.memory_space<vmem>>, vector<16x128xbf16>,
      %c69 = arith.constant 69 : index
      %c128 = arith.constant 128 : index
      %233 = vector.load %arg10[%c69, %c128] : memref<137x384xbf16, #tpu.memory_space<vmem>>, vector<16x128xbf16>
      tpu.vector_store %arg10[%c69, %c128], %231 {strides = array<i32>} : memref<137x384xbf16, #tpu.memory_space<vmem>>, vector<16x128xbf16>,
      %c52 = arith.constant 52 : index
      %c256 = arith.constant 256 : index
      %234 = vector.load %arg10[%c52, %c256] : memref<137x384xbf16, #tpu.memory_space<vmem>>, vector<16x128xbf16>
      tpu.vector_store %arg10[%c52, %c256], %231 {strides = array<i32>} : memref<137x384xbf16, #tpu.memory_space<vmem>>, vector<16x128xbf16>,
    } else {
    }
    %c6_i32_104 = arith.constant 6 : i32
    %152 = arith.addi %0, %c6_i32_104 : i32
    %c1_i32_105 = arith.constant 1 : i32
    %153 = arith.subi %152, %c1_i32_105 : i32
    %c0_i32_106 = arith.constant 0 : i32
    %154 = arith.cmpi sge, %153, %c0_i32_106 : i32
    %c8_i32_107 = arith.constant 8 : i32
    %155 = arith.cmpi slt, %153, %c8_i32_107 : i32
    %156 = arith.andi %154, %155 : i1
    %157 = arith.extui %156 : i1 to i32
    %c0_i32_108 = arith.constant 0 : i32
    %158 = arith.cmpi ne, %157, %c0_i32_108 : i32
    scf.if %158 {
      %c102 = arith.constant 102 : index
      %c0_172 = arith.constant 0 : index
      %231 = vector.load %arg9[%c102, %c0_172] : memref<169x128xbf16, #tpu.memory_space<vmem>>, vector<16x128xbf16>
      %c103 = arith.constant 103 : index
      %c0_173 = arith.constant 0 : index
      %232 = vector.load %arg10[%c103, %c0_173] : memref<137x384xbf16, #tpu.memory_space<vmem>>, vector<16x128xbf16>
      tpu.vector_store %arg10[%c103, %c0_173], %231 {strides = array<i32>} : memref<137x384xbf16, #tpu.memory_space<vmem>>, vector<16x128xbf16>,
      %c86 = arith.constant 86 : index
      %c128 = arith.constant 128 : index
      %233 = vector.load %arg10[%c86, %c128] : memref<137x384xbf16, #tpu.memory_space<vmem>>, vector<16x128xbf16>
      tpu.vector_store %arg10[%c86, %c128], %231 {strides = array<i32>} : memref<137x384xbf16, #tpu.memory_space<vmem>>, vector<16x128xbf16>,
      %c69 = arith.constant 69 : index
      %c256 = arith.constant 256 : index
      %234 = vector.load %arg10[%c69, %c256] : memref<137x384xbf16, #tpu.memory_space<vmem>>, vector<16x128xbf16>
      tpu.vector_store %arg10[%c69, %c256], %231 {strides = array<i32>} : memref<137x384xbf16, #tpu.memory_space<vmem>>, vector<16x128xbf16>,
    } else {
    }
    %c7_i32_109 = arith.constant 7 : i32
    %159 = arith.addi %0, %c7_i32_109 : i32
    %c1_i32_110 = arith.constant 1 : i32
    %160 = arith.subi %159, %c1_i32_110 : i32
    %c0_i32_111 = arith.constant 0 : i32
    %161 = arith.cmpi sge, %160, %c0_i32_111 : i32
    %c8_i32_112 = arith.constant 8 : i32
    %162 = arith.cmpi slt, %160, %c8_i32_112 : i32
    %163 = arith.andi %161, %162 : i1
    %164 = arith.extui %163 : i1 to i32
    %c0_i32_113 = arith.constant 0 : i32
    %165 = arith.cmpi ne, %164, %c0_i32_113 : i32
    scf.if %165 {
      %c119 = arith.constant 119 : index
      %c0_172 = arith.constant 0 : index
      %231 = vector.load %arg9[%c119, %c0_172] : memref<169x128xbf16, #tpu.memory_space<vmem>>, vector<16x128xbf16>
      %c120 = arith.constant 120 : index
      %c0_173 = arith.constant 0 : index
      %232 = vector.load %arg10[%c120, %c0_173] : memref<137x384xbf16, #tpu.memory_space<vmem>>, vector<16x128xbf16>
      tpu.vector_store %arg10[%c120, %c0_173], %231 {strides = array<i32>} : memref<137x384xbf16, #tpu.memory_space<vmem>>, vector<16x128xbf16>,
      %c103 = arith.constant 103 : index
      %c128 = arith.constant 128 : index
      %233 = vector.load %arg10[%c103, %c128] : memref<137x384xbf16, #tpu.memory_space<vmem>>, vector<16x128xbf16>
      tpu.vector_store %arg10[%c103, %c128], %231 {strides = array<i32>} : memref<137x384xbf16, #tpu.memory_space<vmem>>, vector<16x128xbf16>,
      %c86 = arith.constant 86 : index
      %c256 = arith.constant 256 : index
      %234 = vector.load %arg10[%c86, %c256] : memref<137x384xbf16, #tpu.memory_space<vmem>>, vector<16x128xbf16>
      tpu.vector_store %arg10[%c86, %c256], %231 {strides = array<i32>} : memref<137x384xbf16, #tpu.memory_space<vmem>>, vector<16x128xbf16>,
    } else {
    }
    %c8_i32_114 = arith.constant 8 : i32
    %166 = arith.addi %0, %c8_i32_114 : i32
    %c1_i32_115 = arith.constant 1 : i32
    %167 = arith.subi %166, %c1_i32_115 : i32
    %c0_i32_116 = arith.constant 0 : i32
    %168 = arith.cmpi sge, %167, %c0_i32_116 : i32
    %c8_i32_117 = arith.constant 8 : i32
    %169 = arith.cmpi slt, %167, %c8_i32_117 : i32
    %170 = arith.andi %168, %169 : i1
    %171 = arith.extui %170 : i1 to i32
    %c0_i32_118 = arith.constant 0 : i32
    %172 = arith.cmpi ne, %171, %c0_i32_118 : i32
    scf.if %172 {
      %c136 = arith.constant 136 : index
      %c0_172 = arith.constant 0 : index
      %231 = vector.load %arg9[%c136, %c0_172] : memref<169x128xbf16, #tpu.memory_space<vmem>>, vector<16x128xbf16>
      %c120 = arith.constant 120 : index
      %c128 = arith.constant 128 : index
      %232 = vector.load %arg10[%c120, %c128] : memref<137x384xbf16, #tpu.memory_space<vmem>>, vector<16x128xbf16>
      tpu.vector_store %arg10[%c120, %c128], %231 {strides = array<i32>} : memref<137x384xbf16, #tpu.memory_space<vmem>>, vector<16x128xbf16>,
      %c103 = arith.constant 103 : index
      %c256 = arith.constant 256 : index
      %233 = vector.load %arg10[%c103, %c256] : memref<137x384xbf16, #tpu.memory_space<vmem>>, vector<16x128xbf16>
      tpu.vector_store %arg10[%c103, %c256], %231 {strides = array<i32>} : memref<137x384xbf16, #tpu.memory_space<vmem>>, vector<16x128xbf16>,
    } else {
    }
    %c9_i32_119 = arith.constant 9 : i32
    %173 = arith.addi %0, %c9_i32_119 : i32
    %c1_i32_120 = arith.constant 1 : i32
    %174 = arith.subi %173, %c1_i32_120 : i32
    %c0_i32_121 = arith.constant 0 : i32
    %175 = arith.cmpi sge, %174, %c0_i32_121 : i32
    %c8_i32_122 = arith.constant 8 : i32
    %176 = arith.cmpi slt, %174, %c8_i32_122 : i32
    %177 = arith.andi %175, %176 : i1
    %178 = arith.extui %177 : i1 to i32
    %c0_i32_123 = arith.constant 0 : i32
    %179 = arith.cmpi ne, %178, %c0_i32_123 : i32
    scf.if %179 {
      %c153 = arith.constant 153 : index
      %c0_172 = arith.constant 0 : index
      %231 = vector.load %arg9[%c153, %c0_172] : memref<169x128xbf16, #tpu.memory_space<vmem>>, vector<16x128xbf16>
      %c120 = arith.constant 120 : index
      %c256 = arith.constant 256 : index
      %232 = vector.load %arg10[%c120, %c256] : memref<137x384xbf16, #tpu.memory_space<vmem>>, vector<16x128xbf16>
      tpu.vector_store %arg10[%c120, %c256], %231 {strides = array<i32>} : memref<137x384xbf16, #tpu.memory_space<vmem>>, vector<16x128xbf16>,
    } else {
    }
    %c0_124 = arith.constant 0 : index
    %c0_125 = arith.constant 0 : index
    %180 = vector.load %arg10[%c0_124, %c0_125] : memref<137x384xbf16, #tpu.memory_space<vmem>>, vector<135x384xbf16>
    %c0_126 = arith.constant 0 : index
    %c0_127 = arith.constant 0 : index
    %c0_128 = arith.constant 0 : index
    %181 = vector.load %arg5[%c0_126, %c0_127, %c0_128] : memref<3x384x128xbf16, #tpu.memory_space<vmem>>, vector<1x384x128xbf16>
    %182 = vector.shape_cast %181 : vector<1x384x128xbf16> to vector<384x128xbf16>
    %cst_129 = arith.constant dense<0.000000e+00> : vector<135x128xf32>
    %183 = tpu.matmul %180, %182, %cst_129 {dimension_numbers = #tpu.dot_dimension_numbers<[1], [0], [0], [1], [0, 0, 1, 1], [], []>} : vector<135x384xbf16>, vector<384x128xbf16>, vector<135x128xf32> -> vector<135x128xf32>
    %c1_130 = arith.constant 1 : index
    %c0_131 = arith.constant 0 : index
    %184 = vector.load %arg10[%c1_130, %c0_131] : memref<137x384xbf16, #tpu.memory_space<vmem>>, vector<135x384xbf16>
    %c1_132 = arith.constant 1 : index
    %c0_133 = arith.constant 0 : index
    %c0_134 = arith.constant 0 : index
    %185 = vector.load %arg5[%c1_132, %c0_133, %c0_134] : memref<3x384x128xbf16, #tpu.memory_space<vmem>>, vector<1x384x128xbf16>
    %186 = vector.shape_cast %185 : vector<1x384x128xbf16> to vector<384x128xbf16>
    %cst_135 = arith.constant dense<0.000000e+00> : vector<135x128xf32>
    %187 = tpu.matmul %184, %186, %cst_135 {dimension_numbers = #tpu.dot_dimension_numbers<[1], [0], [0], [1], [0, 0, 1, 1], [], []>} : vector<135x384xbf16>, vector<384x128xbf16>, vector<135x128xf32> -> vector<135x128xf32>
    %188 = arith.addf %183, %187 : vector<135x128xf32>
    %c2_136 = arith.constant 2 : index
    %c0_137 = arith.constant 0 : index
    %189 = vector.load %arg10[%c2_136, %c0_137] : memref<137x384xbf16, #tpu.memory_space<vmem>>, vector<135x384xbf16>
    %c2_138 = arith.constant 2 : index
    %c0_139 = arith.constant 0 : index
    %c0_140 = arith.constant 0 : index
    %190 = vector.load %arg5[%c2_138, %c0_139, %c0_140] : memref<3x384x128xbf16, #tpu.memory_space<vmem>>, vector<1x384x128xbf16>
    %191 = vector.shape_cast %190 : vector<1x384x128xbf16> to vector<384x128xbf16>
    %cst_141 = arith.constant dense<0.000000e+00> : vector<135x128xf32>
    %192 = tpu.matmul %189, %191, %cst_141 {dimension_numbers = #tpu.dot_dimension_numbers<[1], [0], [0], [1], [0, 0, 1, 1], [], []>} : vector<135x384xbf16>, vector<384x128xbf16>, vector<135x128xf32> -> vector<135x128xf32>
    %193 = arith.addf %188, %192 : vector<135x128xf32>
    %c0_142 = arith.constant 0 : index
    %c0_143 = arith.constant 0 : index
    %194 = vector.load %arg6[%c0_142, %c0_143] : memref<1x128xf32, #tpu.memory_space<vmem>>, vector<1x128xf32>
    %195 = vector.broadcast %194 : vector<1x128xf32> to vector<135x128xf32>
    %196 = arith.addf %193, %195 : vector<135x128xf32>
    %cst_144 = arith.constant 0.000000e+00 : f32
    %197 = vector.broadcast %cst_144 : f32 to vector<135x128xf32>
    %198 = arith.maximumf %196, %197 : vector<135x128xf32>
    %199 = vector.extract_strided_slice %198 {offsets = [0, 0], sizes = [16, 128], strides = [1, 1]} : vector<135x128xf32> to vector<16x128xf32>
    %c0_145 = arith.constant 0 : index
    %c0_146 = arith.constant 0 : index
    %c0_147 = arith.constant 0 : index
    %c0_148 = arith.constant 0 : index
    %200 = vector.load %arg7[%c0_145, %c0_146, %c0_147, %c0_148] : memref<1x8x16x128xf32, #tpu.memory_space<vmem>>, vector<1x1x16x128xf32>
    %201 = vector.shape_cast %200 : vector<1x1x16x128xf32> to vector<16x128xf32>
    %202 = vector.shape_cast %199 : vector<16x128xf32> to vector<1x1x16x128xf32>
    tpu.vector_store %arg7[%c0_145, %c0_146, %c0_147, %c0_148], %202 {strides = array<i32>} : memref<1x8x16x128xf32, #tpu.memory_space<vmem>>, vector<1x1x16x128xf32>,
    %203 = vector.extract_strided_slice %198 {offsets = [17, 0], sizes = [16, 128], strides = [1, 1]} : vector<135x128xf32> to vector<16x128xf32>
    %c0_149 = arith.constant 0 : index
    %c1_150 = arith.constant 1 : index
    %c0_151 = arith.constant 0 : index
    %c0_152 = arith.constant 0 : index
    %204 = vector.load %arg7[%c0_149, %c1_150, %c0_151, %c0_152] : memref<1x8x16x128xf32, #tpu.memory_space<vmem>>, vector<1x1x16x128xf32>
    %205 = vector.shape_cast %204 : vector<1x1x16x128xf32> to vector<16x128xf32>
    %206 = vector.shape_cast %203 : vector<16x128xf32> to vector<1x1x16x128xf32>
    tpu.vector_store %arg7[%c0_149, %c1_150, %c0_151, %c0_152], %206 {strides = array<i32>} : memref<1x8x16x128xf32, #tpu.memory_space<vmem>>, vector<1x1x16x128xf32>,
    %207 = vector.extract_strided_slice %198 {offsets = [34, 0], sizes = [16, 128], strides = [1, 1]} : vector<135x128xf32> to vector<16x128xf32>
    %c0_153 = arith.constant 0 : index
    %c2_154 = arith.constant 2 : index
    %c0_155 = arith.constant 0 : index
    %c0_156 = arith.constant 0 : index
    %208 = vector.load %arg7[%c0_153, %c2_154, %c0_155, %c0_156] : memref<1x8x16x128xf32, #tpu.memory_space<vmem>>, vector<1x1x16x128xf32>
    %209 = vector.shape_cast %208 : vector<1x1x16x128xf32> to vector<16x128xf32>
    %210 = vector.shape_cast %207 : vector<16x128xf32> to vector<1x1x16x128xf32>
    tpu.vector_store %arg7[%c0_153, %c2_154, %c0_155, %c0_156], %210 {strides = array<i32>} : memref<1x8x16x128xf32, #tpu.memory_space<vmem>>, vector<1x1x16x128xf32>,
    %211 = vector.extract_strided_slice %198 {offsets = [51, 0], sizes = [16, 128], strides = [1, 1]} : vector<135x128xf32> to vector<16x128xf32>
    %c0_157 = arith.constant 0 : index
    %c3 = arith.constant 3 : index
    %c0_158 = arith.constant 0 : index
    %c0_159 = arith.constant 0 : index
    %212 = vector.load %arg7[%c0_157, %c3, %c0_158, %c0_159] : memref<1x8x16x128xf32, #tpu.memory_space<vmem>>, vector<1x1x16x128xf32>
    %213 = vector.shape_cast %212 : vector<1x1x16x128xf32> to vector<16x128xf32>
    %214 = vector.shape_cast %211 : vector<16x128xf32> to vector<1x1x16x128xf32>
    tpu.vector_store %arg7[%c0_157, %c3, %c0_158, %c0_159], %214 {strides = array<i32>} : memref<1x8x16x128xf32, #tpu.memory_space<vmem>>, vector<1x1x16x128xf32>,
    %215 = vector.extract_strided_slice %198 {offsets = [68, 0], sizes = [16, 128], strides = [1, 1]} : vector<135x128xf32> to vector<16x128xf32>
    %c0_160 = arith.constant 0 : index
    %c4 = arith.constant 4 : index
    %c0_161 = arith.constant 0 : index
    %c0_162 = arith.constant 0 : index
    %216 = vector.load %arg7[%c0_160, %c4, %c0_161, %c0_162] : memref<1x8x16x128xf32, #tpu.memory_space<vmem>>, vector<1x1x16x128xf32>
    %217 = vector.shape_cast %216 : vector<1x1x16x128xf32> to vector<16x128xf32>
    %218 = vector.shape_cast %215 : vector<16x128xf32> to vector<1x1x16x128xf32>
    tpu.vector_store %arg7[%c0_160, %c4, %c0_161, %c0_162], %218 {strides = array<i32>} : memref<1x8x16x128xf32, #tpu.memory_space<vmem>>, vector<1x1x16x128xf32>,
    %219 = vector.extract_strided_slice %198 {offsets = [85, 0], sizes = [16, 128], strides = [1, 1]} : vector<135x128xf32> to vector<16x128xf32>
    %c0_163 = arith.constant 0 : index
    %c5 = arith.constant 5 : index
    %c0_164 = arith.constant 0 : index
    %c0_165 = arith.constant 0 : index
    %220 = vector.load %arg7[%c0_163, %c5, %c0_164, %c0_165] : memref<1x8x16x128xf32, #tpu.memory_space<vmem>>, vector<1x1x16x128xf32>
    %221 = vector.shape_cast %220 : vector<1x1x16x128xf32> to vector<16x128xf32>
    %222 = vector.shape_cast %219 : vector<16x128xf32> to vector<1x1x16x128xf32>
    tpu.vector_store %arg7[%c0_163, %c5, %c0_164, %c0_165], %222 {strides = array<i32>} : memref<1x8x16x128xf32, #tpu.memory_space<vmem>>, vector<1x1x16x128xf32>,
    %223 = vector.extract_strided_slice %198 {offsets = [102, 0], sizes = [16, 128], strides = [1, 1]} : vector<135x128xf32> to vector<16x128xf32>
    %c0_166 = arith.constant 0 : index
    %c6 = arith.constant 6 : index
    %c0_167 = arith.constant 0 : index
    %c0_168 = arith.constant 0 : index
    %224 = vector.load %arg7[%c0_166, %c6, %c0_167, %c0_168] : memref<1x8x16x128xf32, #tpu.memory_space<vmem>>, vector<1x1x16x128xf32>
    %225 = vector.shape_cast %224 : vector<1x1x16x128xf32> to vector<16x128xf32>
    %226 = vector.shape_cast %223 : vector<16x128xf32> to vector<1x1x16x128xf32>
    tpu.vector_store %arg7[%c0_166, %c6, %c0_167, %c0_168], %226 {strides = array<i32>} : memref<1x8x16x128xf32, #tpu.memory_space<vmem>>, vector<1x1x16x128xf32>,
    %227 = vector.extract_strided_slice %198 {offsets = [119, 0], sizes = [16, 128], strides = [1, 1]} : vector<135x128xf32> to vector<16x128xf32>
    %c0_169 = arith.constant 0 : index
    %c7 = arith.constant 7 : index
    %c0_170 = arith.constant 0 : index
    %c0_171 = arith.constant 0 : index
    %228 = vector.load %arg7[%c0_169, %c7, %c0_170, %c0_171] : memref<1x8x16x128xf32, #tpu.memory_space<vmem>>, vector<1x1x16x128xf32>
    %229 = vector.shape_cast %228 : vector<1x1x16x128xf32> to vector<16x128xf32>
    %230 = vector.shape_cast %227 : vector<16x128xf32> to vector<1x1x16x128xf32>
    tpu.vector_store %arg7[%c0_169, %c7, %c0_170, %c0_171], %230 {strides = array<i32>} : memref<1x8x16x128xf32, #tpu.memory_space<vmem>>, vector<1x1x16x128xf32>,
    return
  }
  func.func @transform_0(%arg0: i32, %arg1: i32) -> (i32, i32, i32, i32) {
    %c0_i32 = arith.constant 0 : i32
    %c0_i32_0 = arith.constant 0 : i32
    %c0_i32_1 = arith.constant 0 : i32
    %c0_i32_2 = arith.constant 0 : i32
    return %arg0, %c0_i32, %c0_i32_0, %c0_i32_1 : i32, i32, i32, i32
  }
  func.func @transform_1(%arg0: i32, %arg1: i32) -> (i32, i32, i32) {
    %c0_i32 = arith.constant 0 : i32
    %c0_i32_0 = arith.constant 0 : i32
    %c0_i32_1 = arith.constant 0 : i32
    %c0_i32_2 = arith.constant 0 : i32
    return %c0_i32, %c0_i32_0, %c0_i32_1 : i32, i32, i32
  }
  func.func @transform_2(%arg0: i32, %arg1: i32) -> (i32, i32) {
    %c0_i32 = arith.constant 0 : i32
    %c0_i32_0 = arith.constant 0 : i32
    %c0_i32_1 = arith.constant 0 : i32
    return %c0_i32, %c0_i32_0 : i32, i32
  }
  func.func @transform_3(%arg0: i32, %arg1: i32) -> (i32, i32, i32) {
    %c0_i32 = arith.constant 0 : i32
    %c0_i32_0 = arith.constant 0 : i32
    %c0_i32_1 = arith.constant 0 : i32
    %c0_i32_2 = arith.constant 0 : i32
    return %c0_i32, %c0_i32_0, %c0_i32_1 : i32, i32, i32
  }
  func.func @transform_4(%arg0: i32, %arg1: i32) -> (i32, i32) {
    %c0_i32 = arith.constant 0 : i32
    %c0_i32_0 = arith.constant 0 : i32
    %c0_i32_1 = arith.constant 0 : i32
    return %c0_i32, %c0_i32_0 : i32, i32
  }
  func.func @transform_5(%arg0: i32, %arg1: i32) -> (i32, i32, i32, i32) {
    %c0_i32 = arith.constant 0 : i32
    %c0_i32_0 = arith.constant 0 : i32
    %c0_i32_1 = arith.constant 0 : i32
    return %arg0, %arg1, %c0_i32, %c0_i32_0 : i32, i32, i32, i32
  }
}

</mosaic_0001>

<llo_original>
// kernel: tile.13
$region0: #{tile.13}
  #allocation0 [shape = 's32[1]{0}', space=sflag, size = 0x4, scoped, tag = 'scoped memory for tile.13']
  %s0 = inlined_call_operand.vmem [shape: f32[8], index: 0, kind: input, shape index: {}]
  %s1 = inlined_call_operand.vmem [shape: f32[16,8], index: 1, kind: output, shape index: {}]
  // Predicated region
  $region2: #{tile.13} parent=0 // pred_check
    _
  $region3: #{tile.13} parent=0 // pred_check_branch
    %3 = sbr.rel (0) target = $region5
  $region4: #{tile.13} parent=0 // pred_region
    _
  $region5: #{tile.13} parent=0 // pred_fallthru
    _
  %v4 = vld [vmem:[%s0] ss:$0 sm:$0xff]
  %5 = vst [vmem:[%s1] sm:$0xff] %v4
  %s6 = scalar_lea.vmem %s1, 8
  %7 = vst [vmem:[%s6] sm:$0xff] %v4

// kernel: tile.14
$region0: #{tile.14}
  %s0 = inlined_call_operand.vmem [shape: f32[16,8], index: 0, kind: input, shape index: {}]
  %s1 = inlined_call_operand.vmem [shape: f32[1,128], index: 1, kind: output, shape index: {}]
  $region1: #{tile.14} parent=0
    #allocation0 [shape = 'u8[4096]{0}', space=vmem, size = 0x1000, scoped, tag = 'scoped mem for output reshape']
    %v2 = vld [vmem:[%s0] sm:$0x1]
    %vm3 = vcmask 64512
    %4 = vst.msk [vmem:[#allocation0] sm:$0x1] %vm3, %v2
    %s5 = scalar_lea.vmem %s0, 15
    %v6 = vld [vmem:[%s5] sm:$0x1]
    %7 = vrot.lane.b32.xlu0 %v6, 120
    %v8 = vpop.permute.xlu0 %7
    %vm9 = vcmask 1048512
    %10 = vst.msk [vmem:[#allocation0] sm:$0x1] %vm9, %v8
    %s11 = scalar_lea.vmem %s0, 14
    %v12 = vld [vmem:[%s11] sm:$0x1]
    %13 = vrot.lane.b32.xlu0 %v12, 112
    %v14 = vpop.permute.xlu0 %13
    %vm15 = vcmask 982912
    %16 = vst.msk [vmem:[#allocation0] sm:$0x1] %vm15, %v14
    %s17 = scalar_lea.vmem %s0, 13
    %v18 = vld [vmem:[%s17] sm:$0x1]
    %19 = vrot.lane.b32.xlu0 %v18, 104
    %v20 = vpop.permute.xlu0 %19
    %vm21 = vcmask 917312
    %22 = vst.msk [vmem:[#allocation0] sm:$0x1] %vm21, %v20
    %s23 = scalar_lea.vmem %s0, 12
    %v24 = vld [vmem:[%s23] sm:$0x1]
    %25 = vrot.lane.b32.xlu0 %v24, 96
    %v26 = vpop.permute.xlu0 %25
    %vm27 = vcmask 851712
    %28 = vst.msk [vmem:[#allocation0] sm:$0x1] %vm27, %v26
    %s29 = scalar_lea.vmem %s0, 11
    %v30 = vld [vmem:[%s29] sm:$0x1]
    %31 = vrot.lane.b32.xlu0 %v30, 88
    %v32 = vpop.permute.xlu0 %31
    %vm33 = vcmask 786112
    %34 = vst.msk [vmem:[#allocation0] sm:$0x1] %vm33, %v32
    %s35 = scalar_lea.vmem %s0, 10
    %v36 = vld [vmem:[%s35] sm:$0x1]
    %37 = vrot.lane.b32.xlu0 %v36, 80
    %v38 = vpop.permute.xlu0 %37
    %vm39 = vcmask 720512
    %40 = vst.msk [vmem:[#allocation0] sm:$0x1] %vm39, %v38
    %s41 = scalar_lea.vmem %s0, 9
    %v42 = vld [vmem:[%s41] sm:$0x1]
    %43 = vrot.lane.b32.xlu0 %v42, 72
    %v44 = vpop.permute.xlu0 %43
    %vm45 = vcmask 654912
    %46 = vst.msk [vmem:[#allocation0] sm:$0x1] %vm45, %v44
    %s47 = scalar_lea.vmem %s0, 8
    %v48 = vld [vmem:[%s47] sm:$0x1]
    %49 = vrot.lane.b32.xlu0 %v48, 64
    %v50 = vpop.permute.xlu0 %49
    %vm51 = vcmask 589312
    %52 = vst.msk [vmem:[#allocation0] sm:$0x1] %vm51, %v50
    %s53 = scalar_lea.vmem %s0, 7
    %v54 = vld [vmem:[%s53] sm:$0x1]
    %55 = vrot.lane.b32.xlu0 %v54, 56
    %v56 = vpop.permute.xlu0 %55
    %vm57 = vcmask 523712
    %58 = vst.msk [vmem:[#allocation0] sm:$0x1] %vm57, %v56
    %s59 = scalar_lea.vmem %s0, 6
    %v60 = vld [vmem:[%s59] sm:$0x1]
    %61 = vrot.lane.b32.xlu0 %v60, 48
    %v62 = vpop.permute.xlu0 %61
    %vm63 = vcmask 458112
    %64 = vst.msk [vmem:[#allocation0] sm:$0x1] %vm63, %v62
    %s65 = scalar_lea.vmem %s0, 5
    %v66 = vld [vmem:[%s65] sm:$0x1]
    %67 = vrot.lane.b32.xlu0 %v66, 40
    %v68 = vpop.permute.xlu0 %67
    %vm69 = vcmask 392512
    %70 = vst.msk [vmem:[#allocation0] sm:$0x1] %vm69, %v68
    %s71 = scalar_lea.vmem %s0, 4
    %v72 = vld [vmem:[%s71] sm:$0x1]
    %73 = vrot.lane.b32.xlu0 %v72, 32
    %v74 = vpop.permute.xlu0 %73
    %vm75 = vcmask 326912
    %76 = vst.msk [vmem:[#allocation0] sm:$0x1] %vm75, %v74
    %s77 = scalar_lea.vmem %s0, 3
    %v78 = vld [vmem:[%s77] sm:$0x1]
    %79 = vrot.lane.b32.xlu0 %v78, 24
    %v80 = vpop.permute.xlu0 %79
    %vm81 = vcmask 261312
    %82 = vst.msk [vmem:[#allocation0] sm:$0x1] %vm81, %v80
    %s83 = scalar_lea.vmem %s0, 2
    %v84 = vld [vmem:[%s83] sm:$0x1]
    %85 = vrot.lane.b32.xlu0 %v84, 16
    %v86 = vpop.permute.xlu0 %85
    %vm87 = vcmask 195712
    %88 = vst.msk [vmem:[#allocation0] sm:$0x1] %vm87, %v86
    %s89 = scalar_lea.vmem %s0, 1
    %v90 = vld [vmem:[%s89] sm:$0x1]
    %91 = vrot.lane.b32.xlu0 %v90, 8
    %v92 = vpop.permute.xlu0 %91
    %vm93 = vcmask 130112
    %94 = vst.msk [vmem:[#allocation0] sm:$0x1] %vm93, %v92
    %s96 = sshllo.u32 0, 1
    %v98 = vld [vmem:[#allocation0] sm:%s96]
    %s99 = sshllo.u32 0, 1
    %100 = vst [vmem:[%s1] sm:%s99] %v98

// kernel: double_conv3d_forward.1
$region0: #{double_conv3d_forward.1}
  #allocation0 [shape = 'u32[]', space=smem, size = 0x4, offset = 0x4, fixed_abs, tag = 'smem constant byte address 0x4 - core index']
  #allocation1 [shape = 'u32[144,128]{1,0:T(1,128)}', space=vmem, size = 0x12000, scoped, tag = 'internal scratch']
  #allocation2 [shape = 'bf16[171,384]{1,0:T(8,128)(2,1)}', space=vmem, size = 0x21000, scoped, tag = 'scratch operand']
  #allocation3 [shape = 'bf16[169,128]{1,0:T(8,128)(2,1)}', space=vmem, size = 0xb000, scoped, tag = 'scratch operand']
  #allocation4 [shape = 'bf16[137,384]{1,0:T(8,128)(2,1)}', space=vmem, size = 0x1b000, scoped, tag = 'scratch operand']
  %s0 = inlined_call_operand.vmem [shape: bf16[2,8,16,64], index: 0, kind: input, shape index: {}]
  %s1 = inlined_call_operand.vmem [shape: bf16[3,384,128], index: 1, kind: input, shape index: {}]
  %s2 = inlined_call_operand.vmem [shape: f32[1,128], index: 2, kind: input, shape index: {}]
  %s3 = inlined_call_operand.vmem [shape: bf16[3,384,128], index: 3, kind: input, shape index: {}]
  %s4 = inlined_call_operand.vmem [shape: f32[1,128], index: 4, kind: input, shape index: {}]
  %s5 = inlined_call_operand.vmem [shape: f32[2,8,16,128], index: 5, kind: output, shape index: {}]
  %s6 = sld [smem:[#allocation0]]
  $region141: #{double_conv3d_forward.1} parent=0
    _
  %s8 = ssub.s32 1, %s6
  %s9 = scalar_select 0, %s8, %s6
  loop: start=0, step=1, limit=4
  $region2: #{double_conv3d_forward.1} parent=0 // loop_pre_header
    _
  $region3: #{double_conv3d_forward.1} parent=0 // loop_header
    %s11 = sphi 0, %s15
    %p12 = scmp.ge.s32.totalorder %s11, 4
    %s18 = sphi 0, %s30
    %s19 = sphi 0, %s26
    %s20 = sphi 0, %s18
    %s21 = sphi 0, %s19
    %s22 = sphi 0, %s20
    %s23 = sphi 0, %s21
    %s33 = sphi 0, %s35
    %s36 = sphi 0, %s33
    %s37 = sphi 0, %s36
    %s53 = sphi 0, %s37
    %s57 = sphi 0, %s57
    %s59 = sphi 0, %s57
    %s60 = sphi 0, %s59
    %s74 = sphi 0, %s60
    %s78 = sphi 0, %s78
    %s80 = sphi 0, %s78
    %s81 = sphi 0, %s80
    %s95 = sphi 0, %s81
    %s99 = sphi 0, %s99
    %s101 = sphi 0, %s99
    %s102 = sphi 0, %s101
    %s116 = sphi 0, %s102
    %s120 = sphi 0, %s120
    %s122 = sphi 0, %s120
    %s123 = sphi 0, %s122
    %s137 = sphi 0, %s123
    %s145 = sphi 0, %s147
    %s148 = sphi 0, %s145
    %s149 = sphi 0, %s148
    %s165 = sphi 0, %s149
  $region4: #{double_conv3d_forward.1} parent=0 // loop_header_branch
    %14 = sbr.rel (%p12) target = $region8
  $region5: #{double_conv3d_forward.1} parent=0 // loop_body
    %s16 = ssub.s32 %s11, 1
    %s17 = ssub.s32 %s11, 2
    %s24 = sadd.s32 1, %s19
    %p25 = scmp.ge.s32.totalorder %s24, 1
    %s26 = scalar_select %p25, 0, %s24
    %s27 = sadd.s32 1, %s18
    %s28 = scalar_select %p25, %s27, %s18
    %p29 = scmp.ge.s32.totalorder %s28, 2
    %s30 = scalar_select %p29, 0, %s28
    %s31 = ssub.s32 %s18, %s30
    %p32 = scmp.eq.s32.totalorder %s31, 0
    %s34 = sadd.s32 %s33, 1
    %s35 = scalar_select %p32, %s33, %s34
    %p38 = pneg %p32
    %p39 = scmp.eq.s32.totalorder %s11, 1
    %p40 = por %p38, %p39
    %p41 = scmp.ne.s32.totalorder %s33, %s36
    %p42 = scmp.eq.s32.totalorder %s11, 0
    %p43 = por %p41, %p42
    %p44 = scmp.ne.s32.totalorder %s33, %s36
    %p45 = scmp.eq.s32.totalorder %s16, 1
    %p46 = por %p44, %p45
    %p47 = scmp.ne.s32.totalorder %s36, %s37
    %p48 = scmp.eq.s32.totalorder %s16, 0
    %p49 = por %p47, %p48
    %p50 = scmp.ne.s32.totalorder %s36, %s37
    %p51 = scmp.eq.s32.totalorder %s17, 1
    %p52 = por %p50, %p51
    %p54 = scmp.ne.s32.totalorder %s37, %s53
    %p55 = scmp.eq.s32.totalorder %s17, 0
    %p56 = por %p54, %p55
    %s58 = sadd.s32 %s57, 1
    %p61 = scmp.eq.s32.totalorder %s11, 1
    %p62 = scmp.ne.s32.totalorder %s57, %s59
    %p63 = scmp.eq.s32.totalorder %s11, 0
    %p64 = por %p62, %p63
    %p65 = scmp.ne.s32.totalorder %s57, %s59
    %p66 = scmp.eq.s32.totalorder %s16, 1
    %p67 = por %p65, %p66
    %p68 = scmp.ne.s32.totalorder %s59, %s60
    %p69 = scmp.eq.s32.totalorder %s16, 0
    %p70 = por %p68, %p69
    %p71 = scmp.ne.s32.totalorder %s59, %s60
    %p72 = scmp.eq.s32.totalorder %s17, 1
    %p73 = por %p71, %p72
    %p75 = scmp.ne.s32.totalorder %s60, %s74
    %p76 = scmp.eq.s32.totalorder %s17, 0
    %p77 = por %p75, %p76
    %s79 = sadd.s32 %s78, 1
    %p82 = scmp.eq.s32.totalorder %s11, 1
    %p83 = scmp.ne.s32.totalorder %s78, %s80
    %p84 = scmp.eq.s32.totalorder %s11, 0
    %p85 = por %p83, %p84
    %p86 = scmp.ne.s32.totalorder %s78, %s80
    %p87 = scmp.eq.s32.totalorder %s16, 1
    %p88 = por %p86, %p87
    %p89 = scmp.ne.s32.totalorder %s80, %s81
    %p90 = scmp.eq.s32.totalorder %s16, 0
    %p91 = por %p89, %p90
    %p92 = scmp.ne.s32.totalorder %s80, %s81
    %p93 = scmp.eq.s32.totalorder %s17, 1
    %p94 = por %p92, %p93
    %p96 = scmp.ne.s32.totalorder %s81, %s95
    %p97 = scmp.eq.s32.totalorder %s17, 0
    %p98 = por %p96, %p97
    %s100 = sadd.s32 %s99, 1
    %p103 = scmp.eq.s32.totalorder %s11, 1
    %p104 = scmp.ne.s32.totalorder %s99, %s101
    %p105 = scmp.eq.s32.totalorder %s11, 0
    %p106 = por %p104, %p105
    %p107 = scmp.ne.s32.totalorder %s99, %s101
    %p108 = scmp.eq.s32.totalorder %s16, 1
    %p109 = por %p107, %p108
    %p110 = scmp.ne.s32.totalorder %s101, %s102
    %p111 = scmp.eq.s32.totalorder %s16, 0
    %p112 = por %p110, %p111
    %p113 = scmp.ne.s32.totalorder %s101, %s102
    %p114 = scmp.eq.s32.totalorder %s17, 1
    %p115 = por %p113, %p114
    %p117 = scmp.ne.s32.totalorder %s102, %s116
    %p118 = scmp.eq.s32.totalorder %s17, 0
    %p119 = por %p117, %p118
    %s121 = sadd.s32 %s120, 1
    %p124 = scmp.eq.s32.totalorder %s11, 1
    %p125 = scmp.ne.s32.totalorder %s120, %s122
    %p126 = scmp.eq.s32.totalorder %s11, 0
    %p127 = por %p125, %p126
    %p128 = scmp.ne.s32.totalorder %s120, %s122
    %p129 = scmp.eq.s32.totalorder %s16, 1
    %p130 = por %p128, %p129
    %p131 = scmp.ne.s32.totalorder %s122, %s123
    %p132 = scmp.eq.s32.totalorder %s16, 0
    %p133 = por %p131, %p132
    %p134 = scmp.ne.s32.totalorder %s122, %s123
    %p135 = scmp.eq.s32.totalorder %s17, 1
    %p136 = por %p134, %p135
    %p138 = scmp.ne.s32.totalorder %s123, %s137
    %p139 = scmp.eq.s32.totalorder %s17, 0
    %p140 = por %p138, %p139
    %s141 = ssub.s32 %s18, %s30
    %s142 = ssub.s32 %s19, %s26
    %s143 = sor.u32 %s141, %s142
    %p144 = scmp.eq.s32.totalorder %s143, 0
    %s146 = sadd.s32 %s145, 1
    %s147 = scalar_select %p144, %s145, %s146
    %p150 = pneg %p144
    %p151 = scmp.eq.s32.totalorder %s11, 1
    %p152 = por %p150, %p151
    %p153 = scmp.ne.s32.totalorder %s145, %s148
    %p154 = scmp.eq.s32.totalorder %s11, 0
    %p155 = por %p153, %p154
    %p156 = scmp.ne.s32.totalorder %s145, %s148
    %p157 = scmp.eq.s32.totalorder %s16, 1
    %p158 = por %p156, %p157
    %p159 = scmp.ne.s32.totalorder %s148, %s149
    %p160 = scmp.eq.s32.totalorder %s16, 0
    %p161 = por %p159, %p160
    %p162 = scmp.ne.s32.totalorder %s148, %s149
    %p163 = scmp.eq.s32.totalorder %s17, 1
    %p164 = por %p162, %p163
    %p166 = scmp.ne.s32.totalorder %s149, %s165
    %p167 = scmp.eq.s32.totalorder %s17, 0
    %p168 = por %p166, %p167
    %p169 = scmp.le.s32.totalorder 1, %s11
    %p170 = scmp.lt.s32.totalorder %s11, 3
    %p171 = pnand %p169, %p170
    %p172 = pneg %p171
    // Predicated region
    $region9: #{double_conv3d_forward.1} parent=5 // pred_check
      _
    $region10: #{double_conv3d_forward.1} parent=5 // pred_check_branch
      %174 = sbr.rel (%p171) target = $region12
    $region11: #{double_conv3d_forward.1} parent=5 // pred_region
      %s175 = ssub.s32 %s11, 1
      // Predicated region
      $region13: #{double_conv3d_forward.1} parent=11 // pred_check
        %p176 = pneg %p70
      $region14: #{double_conv3d_forward.1} parent=11 // pred_check_branch
        %178 = sbr.rel (%p176) target = $region16
      $region15: #{double_conv3d_forward.1} parent=11 // pred_region
        _
      $region16: #{double_conv3d_forward.1} parent=11 // pred_fallthru
        _
      // Predicated region
      $region17: #{double_conv3d_forward.1} parent=11 // pred_check
        %p179 = pneg %p91
      $region18: #{double_conv3d_forward.1} parent=11 // pred_check_branch
        %181 = sbr.rel (%p179) target = $region20
      $region19: #{double_conv3d_forward.1} parent=11 // pred_region
        _
      $region20: #{double_conv3d_forward.1} parent=11 // pred_fallthru
        _
      // Predicated region
      $region21: #{double_conv3d_forward.1} parent=11 // pred_check
        %p182 = pneg %p112
      $region22: #{double_conv3d_forward.1} parent=11 // pred_check_branch
        %184 = sbr.rel (%p182) target = $region24
      $region23: #{double_conv3d_forward.1} parent=11 // pred_region
        _
      $region24: #{double_conv3d_forward.1} parent=11 // pred_fallthru
        _
      // Predicated region
      $region25: #{double_conv3d_forward.1} parent=11 // pred_check
        %p185 = pneg %p133
      $region26: #{double_conv3d_forward.1} parent=11 // pred_check_branch
        %187 = sbr.rel (%p185) target = $region28
      $region27: #{double_conv3d_forward.1} parent=11 // pred_region
        _
      $region28: #{double_conv3d_forward.1} parent=11 // pred_fallthru
        _
    $region12: #{double_conv3d_forward.1} parent=5 // pred_fallthru
      _
    %p188 = scmp.lt.s32.totalorder %s11, 2
    // Predicated region
    $region29: #{double_conv3d_forward.1} parent=5 // pred_check
      %p189 = pneg %p188
    $region30: #{double_conv3d_forward.1} parent=5 // pred_check_branch
      %191 = sbr.rel (%p189) target = $region32
    $region31: #{double_conv3d_forward.1} parent=5 // pred_region
      // Predicated region
      $region33: #{double_conv3d_forward.1} parent=31 // pred_check
        %p192 = pneg %p43
      $region34: #{double_conv3d_forward.1} parent=31 // pred_check_branch
        %194 = sbr.rel (%p192) target = $region36
      $region35: #{double_conv3d_forward.1} parent=31 // pred_region
        %p195 = scmp.lt.s32.totalorder %s18, 1
        %s196 = scalar_select %p195, %s18, 1
        %s197 = smul.addr %s196, 16
        %s198 = smul.addr %s197, 4
        %s199 = scalar_lea.vmem %s0, %s198
      $region36: #{double_conv3d_forward.1} parent=31 // pred_fallthru
        _
    $region32: #{double_conv3d_forward.1} parent=5 // pred_fallthru
      _
    %p200 = scmp.le.s32.totalorder 1, %s11
    %p201 = scmp.lt.s32.totalorder %s11, 3
    %p202 = pnand %p200, %p201
    %p203 = pneg %p202
    // Predicated region
    $region37: #{double_conv3d_forward.1} parent=5 // pred_check
      _
    $region38: #{double_conv3d_forward.1} parent=5 // pred_check_branch
      %205 = sbr.rel (%p202) target = $region40
    $region39: #{double_conv3d_forward.1} parent=5 // pred_region
      %s206 = ssub.s32 %s11, 1
      %p207 = scmp.lt.s32.totalorder %s20, 1
      %s208 = scalar_select %p207, %s20, 1
      %s209 = smul.addr %s208, 16
      %s210 = smul.addr %s209, 4
      %s211 = scalar_lea.vmem %s0, %s210
      %p212 = pneg %p49
      %p213 = pneg %p46
      %p214 = pneg %p70
      %p215 = pneg %p67
      %p216 = pneg %p91
      %p217 = pneg %p88
      %p218 = pneg %p112
      %p219 = pneg %p109
      %p220 = pneg %p133
      %p221 = pneg %p130
      %p222 = pneg %p161
      %p223 = pneg %p158
      %s224 = smul.u32 8, %s21
      %p225 = scmp.lt.s32.totalorder %s20, 1
      %s226 = scalar_select %p225, %s20, 1
      %p227 = scmp.lt.s32.totalorder %s224, 7
      %s228 = scalar_select %p227, %s224, 7
      %s229 = smul.addr %s228, 2
      %s230 = smul.addr %s226, 16
      %s231 = sadd.s32 %s229, %s230
      %s232 = smul.addr %s231, 8
      %s233 = scalar_lea.vmem %s5, %s232
      %p234 = scmp.lt.s32.totalorder %s20, 1
      %s235 = scalar_select %p234, %s20, 1
      %s236 = smul.addr %s235, 16
      %s237 = smul.addr %s236, 4
      %s238 = scalar_lea.vmem %s0, %s237
      %s239 = smul.u32 8, %s21
      %p240 = scmp.lt.s32.totalorder %s20, 1
      %s241 = scalar_select %p240, %s20, 1
      %p242 = scmp.lt.s32.totalorder %s239, 7
      %s243 = scalar_select %p242, %s239, 7
      %s244 = smul.addr %s243, 2
      %s245 = smul.addr %s241, 16
      %s246 = sadd.s32 %s244, %s245
      %s247 = smul.addr %s246, 8
      %s248 = scalar_lea.vmem %s5, %s247
      %s249 = smul.u32 8, %s21
      %s251 = smul.u32 %s21, 8
      %252 = vst [vmem:[#allocation2] sm:$0xff] 0
      %253 = vst [vmem:[#allocation2 + $0x8] sm:$0xf] 0
      %254 = vst [vmem:[#allocation2 + $0xc] sm:$0xff] 0
      %255 = vst [vmem:[#allocation2 + $0x14] sm:$0xf] 0
      %256 = vst [vmem:[#allocation2 + $0x18] sm:$0xff] 0
      %257 = vst [vmem:[#allocation2 + $0x20] sm:$0xf] 0
      %258 = vst [vmem:[#allocation2 + $0x24] sm:$0xff] 0
      %259 = vst [vmem:[#allocation2 + $0x2c] sm:$0xf] 0
      %260 = vst [vmem:[#allocation2 + $0x30] sm:$0xff] 0
      %261 = vst [vmem:[#allocation2 + $0x38] sm:$0xf] 0
      %262 = vst [vmem:[#allocation2 + $0x3c] sm:$0xff] 0
      %263 = vst [vmem:[#allocation2 + $0x44] sm:$0xf] 0
      %264 = vst [vmem:[#allocation2 + $0x48] sm:$0xff] 0
      %265 = vst [vmem:[#allocation2 + $0x50] sm:$0xf] 0
      %266 = vst [vmem:[#allocation2 + $0x54] sm:$0xff] 0
      %267 = vst [vmem:[#allocation2 + $0x5c] sm:$0xf] 0
      %268 = vst [vmem:[#allocation2 + $0x60] sm:$0xff] 0
      %269 = vst [vmem:[#allocation2 + $0x68] sm:$0xf] 0
      %270 = vst [vmem:[#allocation2 + $0x6c] sm:$0xff] 0
      %271 = vst [vmem:[#allocation2 + $0x74] sm:$0xf] 0
      %272 = vst [vmem:[#allocation2 + $0x78] sm:$0xff] 0
      %273 = vst [vmem:[#allocation2 + $0x80] sm:$0xf] 0
      %274 = vst [vmem:[#allocation2 + $0x84] sm:$0xff] 0
      %275 = vst [vmem:[#allocation2 + $0x8c] sm:$0xf] 0
      %276 = vst [vmem:[#allocation2 + $0x90] sm:$0xff] 0
      %277 = vst [vmem:[#allocation2 + $0x98] sm:$0xf] 0
      %278 = vst [vmem:[#allocation2 + $0x9c] sm:$0xff] 0
      %279 = vst [vmem:[#allocation2 + $0xa4] sm:$0xf] 0
      %280 = vst [vmem:[#allocation2 + $0xa8] sm:$0xff] 0
      %281 = vst [vmem:[#allocation2 + $0xb0] sm:$0xf] 0
      %282 = vst [vmem:[#allocation2 + $0xb4] sm:$0xff] 0
      %283 = vst [vmem:[#allocation2 + $0xbc] sm:$0xf] 0
      %284 = vst [vmem:[#allocation2 + $0xc0] sm:$0xff] 0
      %285 = vst [vmem:[#allocation2 + $0xc8] sm:$0xf] 0
      %286 = vst [vmem:[#allocation2 + $0xcc] sm:$0xff] 0
      %287 = vst [vmem:[#allocation2 + $0xd4] sm:$0xf] 0
      %288 = vst [vmem:[#allocation2 + $0xd8] sm:$0xff] 0
      %289 = vst [vmem:[#allocation2 + $0xe0] sm:$0xf] 0
      %290 = vst [vmem:[#allocation2 + $0xe4] sm:$0xff] 0
      %291 = vst [vmem:[#allocation2 + $0xec] sm:$0xf] 0
      %292 = vst [vmem:[#allocation2 + $0xf0] sm:$0xff] 0
      %293 = vst [vmem:[#allocation2 + $0xf8] sm:$0xf] 0
      %vm294 = vcmask 1041408
      %vm295 = vsmask.f32 1280
      %vm296 = vmand %vm294, %vm295
      %vm297 = vcmask 1045508
      %vm298 = vsmask.f32 5376
      %vm299 = vmand %vm297, %vm298
      %vm300 = vmor %vm299, %vm296
      %v301 = vld [vmem:[#allocation2 + $0xfc] sm:$0x33]
      %v302 = vsel %vm300, 0, %v301
      %303 = vst [vmem:[#allocation2 + $0xfc] sm:$0x33] %v302
      %v304 = vld [vmem:[#allocation2 + $0x104] sm:$0x3]
      %v305 = vsel %vm296, 0, %v304
      %306 = vst [vmem:[#allocation2 + $0x104] sm:$0x3] %v305
      %307 = vst [vmem:[#allocation4] sm:$0xff] 0
      %308 = vst [vmem:[#allocation4 + $0x8] sm:$0xf] 0
      %309 = vst [vmem:[#allocation4 + $0xc] sm:$0xff] 0
      %310 = vst [vmem:[#allocation4 + $0x14] sm:$0xf] 0
      %311 = vst [vmem:[#allocation4 + $0x18] sm:$0xff] 0
      %312 = vst [vmem:[#allocation4 + $0x20] sm:$0xf] 0
      %313 = vst [vmem:[#allocation4 + $0x24] sm:$0xff] 0
      %314 = vst [vmem:[#allocation4 + $0x2c] sm:$0xf] 0
      %315 = vst [vmem:[#allocation4 + $0x30] sm:$0xff] 0
      %316 = vst [vmem:[#allocation4 + $0x38] sm:$0xf] 0
      %317 = vst [vmem:[#allocation4 + $0x3c] sm:$0xff] 0
      %318 = vst [vmem:[#allocation4 + $0x44] sm:$0xf] 0
      %319 = vst [vmem:[#allocation4 + $0x48] sm:$0xff] 0
      %320 = vst [vmem:[#allocation4 + $0x50] sm:$0xf] 0
      %321 = vst [vmem:[#allocation4 + $0x54] sm:$0xff] 0
      %322 = vst [vmem:[#allocation4 + $0x5c] sm:$0xf] 0
      %323 = vst [vmem:[#allocation4 + $0x60] sm:$0xff] 0
      %324 = vst [vmem:[#allocation4 + $0x68] sm:$0xf] 0
      %325 = vst [vmem:[#allocation4 + $0x6c] sm:$0xff] 0
      %326 = vst [vmem:[#allocation4 + $0x74] sm:$0xf] 0
      %327 = vst [vmem:[#allocation4 + $0x78] sm:$0xff] 0
      %328 = vst [vmem:[#allocation4 + $0x80] sm:$0xf] 0
      %329 = vst [vmem:[#allocation4 + $0x84] sm:$0xff] 0
      %330 = vst [vmem:[#allocation4 + $0x8c] sm:$0xf] 0
      %331 = vst [vmem:[#allocation4 + $0x90] sm:$0xff] 0
      %332 = vst [vmem:[#allocation4 + $0x98] sm:$0xf] 0
      %333 = vst [vmem:[#allocation4 + $0x9c] sm:$0xff] 0
      %334 = vst [vmem:[#allocation4 + $0xa4] sm:$0xf] 0
      %335 = vst [vmem:[#allocation4 + $0xa8] sm:$0xff] 0
      %336 = vst [vmem:[#allocation4 + $0xb0] sm:$0xf] 0
      %337 = vst [vmem:[#allocation4 + $0xb4] sm:$0xff] 0
      %338 = vst [vmem:[#allocation4 + $0xbc] sm:$0xf] 0
      %339 = vst [vmem:[#allocation4 + $0xc0] sm:$0xff] 0
      %340 = vst [vmem:[#allocation4 + $0xc8] sm:$0xf] 0
      %vm341 = vcmask 1040384
      %vm342 = vsmask.f32 256
      %vm343 = vmand %vm341, %vm342
      %vm344 = vcmask 1044484
      %vm345 = vsmask.f32 4352
      %vm346 = vmand %vm344, %vm345
      %vm347 = vmor %vm346, %vm343
      %v348 = vld [vmem:[#allocation4 + $0xcc] sm:$0x11]
      %v349 = vsel %vm347, 0, %v348
      %350 = vst [vmem:[#allocation4 + $0xcc] sm:$0x11] %v349
      %v351 = vld [vmem:[#allocation4 + $0xd4] sm:$0x1]
      %v352 = vsel %vm343, 0, %v351
      %353 = vst [vmem:[#allocation4 + $0xd4] sm:$0x1] %v352
      %s354 = sadd.s32 %s251, 4294967294
      %p355 = scmp.ge.s32.totalorder %s354, 0
      %p356 = scmp.lt.s32.totalorder %s354, 8
      %p357 = pnand %p355, %p356
      %p358 = pneg %p357
      // Predicated region
      $region41: #{double_conv3d_forward.1} parent=39 // pred_check
        _
      $region42: #{double_conv3d_forward.1} parent=39 // pred_check_branch
        %360 = sbr.rel (%p357) target = $region44
      $region43: #{double_conv3d_forward.1} parent=39 // pred_region
        %p361 = scmp.gt.s32.totalorder %s354, 0
        %s362 = scalar_select %p361, %s354, 0
        %p363 = scmp.lt.s32.totalorder %s362, 7
        %s364 = scalar_select %p363, %s362, 7
        %s365 = smul.u32 %s364, 2
        %s366 = smul.addr %s365, 4
        %s367 = scalar_lea.vmem %s238, %s366
        %v368 = vld [vmem:[%s367] sm:$0xf]
        %v369 = vld [vmem:[%s367 + $0x4] sm:$0xf]
        %vm370 = vsmask.f32 4368
        %vm371 = vmor %vm342, %vm370
        %v373 = vshrl.u32 %v368, 16
        %v375 = vrot.slane %v373, 7
        %v376 = vshll.u32 %v368, 16
        %v378 = vor.u32 %v375, %v376
        %v379 = vrot.slane %v375, 4
        %v381 = vshrl.u32 %v369, 16
        %v383 = vrot.slane %v381, 7
        %v384 = vshll.u32 %v369, 16
        %v386 = vor.u32 %v383, %v384
        %v387 = vsel %vm371, %v379, %v386
        %v388 = vrot.slane %v383, 4
        %vm392 = vcmask 519168
        %vm393 = vsmask.f32 7938
        %vm394 = vmand %vm392, %vm393
        %v395 = vld [vmem:[#allocation2] sm:$0xf]
        %v396 = vsel %vm394, %v378, %v395
        %397 = vst [vmem:[#allocation2] sm:$0xf] %v396
        %vm398 = vcmask 519168
        %399 = vst.msk [vmem:[#allocation2 + $0xc] sm:$0xf] %vm398, %v387
        %vm400 = vcmask 516096
        %vm401 = vmand %vm400, %vm342
        %v402 = vld [vmem:[#allocation2 + $0x18] sm:$0x1]
        %v403 = vsel %vm401, %v388, %v402
        %404 = vst [vmem:[#allocation2 + $0x18] sm:$0x1] %v403
      $region44: #{double_conv3d_forward.1} parent=39 // pred_fallthru
        _
      %s405 = sadd.s32 %s251, 4294967295
      %p406 = scmp.ge.s32.totalorder %s405, 0
      %p407 = scmp.lt.s32.totalorder %s405, 8
      %p408 = pnand %p406, %p407
      %p409 = pneg %p408
      // Predicated region
      $region45: #{double_conv3d_forward.1} parent=39 // pred_check
        _
      $region46: #{double_conv3d_forward.1} parent=39 // pred_check_branch
        %411 = sbr.rel (%p408) target = $region48
      $region47: #{double_conv3d_forward.1} parent=39 // pred_region
        %p412 = scmp.gt.s32.totalorder %s405, 0
        %s413 = scalar_select %p412, %s405, 0
        %p414 = scmp.lt.s32.totalorder %s413, 7
        %s415 = scalar_select %p414, %s413, 7
        %s416 = smul.u32 %s415, 2
        %s417 = smul.addr %s416, 4
        %s418 = scalar_lea.vmem %s238, %s417
        %v419 = vld [vmem:[%s418] sm:$0xf]
        %v420 = vld [vmem:[%s418 + $0x4] sm:$0xf]
        %vm423 = vmor %vm341, %vm344
        %v424 = vrot.slane %v419, 7
        %v425 = vrot.slane %v424, 4
        %v426 = vrot.slane %v420, 7
        %v427 = vsel %vm423, %v425, %v426
        %v428 = vrot.slane %v426, 4
        %vm432 = vcmask 519169
        %433 = vst.msk [vmem:[#allocation2 + $0x18] sm:$0xe] %vm432, %v424
        %vm434 = vcmask 519168
        %435 = vst.msk [vmem:[#allocation2 + $0x24] sm:$0xf] %vm434, %v427
        %vm436 = vcmask 516096
        %437 = vst.msk [vmem:[#allocation2 + $0x30] sm:$0x1] %vm436, %v428
        %vm438 = vsmask.f32 4368
        %vm439 = vmor %vm342, %vm438
        %v441 = vshrl.u32 %v419, 16
        %v443 = vrot.slane %v441, 7
        %v444 = vshll.u32 %v419, 16
        %v446 = vor.u32 %v443, %v444
        %v447 = vrot.slane %v443, 4
        %v449 = vshrl.u32 %v420, 16
        %v451 = vrot.slane %v449, 7
        %v452 = vshll.u32 %v420, 16
        %v454 = vor.u32 %v451, %v452
        %v455 = vsel %vm439, %v447, %v454
        %v456 = vrot.slane %v451, 4
        %vm460 = vcmask 519168
        %vm461 = vsmask.f32 7938
        %vm462 = vmand %vm460, %vm461
        %v463 = vld [vmem:[#allocation2 + $0x4] sm:$0xf]
        %v464 = vsel %vm462, %v446, %v463
        %465 = vst [vmem:[#allocation2 + $0x4] sm:$0xf] %v464
        %466 = vst.msk [vmem:[#allocation2 + $0x10] sm:$0xf] %vm434, %v455
        %vm467 = vcmask 516096
        %vm468 = vmand %vm467, %vm342
        %v469 = vld [vmem:[#allocation2 + $0x1c] sm:$0x1]
        %v470 = vsel %vm468, %v456, %v469
        %471 = vst [vmem:[#allocation2 + $0x1c] sm:$0x1] %v470
      $region48: #{double_conv3d_forward.1} parent=39 // pred_fallthru
        _
      %p472 = scmp.ge.s32.totalorder %s251, 0
      %p473 = scmp.lt.s32.totalorder %s251, 8
      %p474 = pnand %p472, %p473
      %p475 = pneg %p474
      // Predicated region
      $region49: #{double_conv3d_forward.1} parent=39 // pred_check
        _
      $region50: #{double_conv3d_forward.1} parent=39 // pred_check_branch
        %477 = sbr.rel (%p474) target = $region52
      $region51: #{double_conv3d_forward.1} parent=39 // pred_region
        %p478 = scmp.gt.s32.totalorder %s251, 0
        %s479 = scalar_select %p478, %s251, 0
        %p480 = scmp.lt.s32.totalorder %s479, 7
        %s481 = scalar_select %p480, %s479, 7
        %s482 = smul.u32 %s481, 2
        %s483 = smul.addr %s482, 4
        %s484 = scalar_lea.vmem %s238, %s483
        %v485 = vld [vmem:[%s484] sm:$0xf]
        %v486 = vld [vmem:[%s484 + $0x4] sm:$0xf]
        %vm487 = vsmask.f32 5392
        %vm488 = vmor %vm295, %vm487
        %v490 = vshrl.u32 %v485, 16
        %v492 = vrot.slane %v490, 6
        %v493 = vshll.u32 %v485, 16
        %v495 = vrot.slane %v493, 7
        %v496 = vor.u32 %v492, %v495
        %v497 = vrot.slane %v496, 4
        %v499 = vshrl.u32 %v486, 16
        %v501 = vrot.slane %v499, 6
        %v502 = vshll.u32 %v486, 16
        %v504 = vrot.slane %v502, 7
        %v505 = vor.u32 %v501, %v504
        %v506 = vsel %vm488, %v497, %v505
        %v507 = vrot.slane %v505, 4
        %vm511 = vcmask 519169
        %vm512 = vsmask.f32 7942
        %vm513 = vmand %vm511, %vm512
        %v514 = vld [vmem:[#allocation2 + $0x30] sm:$0xe]
        %v515 = vsel %vm513, %v496, %v514
        %516 = vst [vmem:[#allocation2 + $0x30] sm:$0xe] %v515
        %vm517 = vcmask 519168
        %518 = vst.msk [vmem:[#allocation2 + $0x3c] sm:$0xf] %vm517, %v506
        %vm519 = vcmask 517120
        %vm520 = vmand %vm519, %vm295
        %v521 = vld [vmem:[#allocation2 + $0x48] sm:$0x3]
        %v522 = vsel %vm520, %v507, %v521
        %523 = vst [vmem:[#allocation2 + $0x48] sm:$0x3] %v522
        %vm526 = vmor %vm341, %vm344
        %v527 = vrot.slane %v485, 7
        %v528 = vrot.slane %v527, 4
        %v529 = vrot.slane %v486, 7
        %v530 = vsel %vm526, %v528, %v529
        %v531 = vrot.slane %v529, 4
        %vm535 = vcmask 519169
        %536 = vst.msk [vmem:[#allocation2 + $0x1c] sm:$0xe] %vm535, %v527
        %537 = vst.msk [vmem:[#allocation2 + $0x28] sm:$0xf] %vm517, %v530
        %vm538 = vcmask 516096
        %539 = vst.msk [vmem:[#allocation2 + $0x34] sm:$0x1] %vm538, %v531
        %vm540 = vsmask.f32 4368
        %vm541 = vmor %vm342, %vm540
        %v542 = vrot.slane %v490, 7
        %v543 = vor.u32 %v542, %v493
        %v544 = vrot.slane %v542, 4
        %v545 = vrot.slane %v499, 7
        %v546 = vor.u32 %v545, %v502
        %v547 = vsel %vm541, %v544, %v546
        %v548 = vrot.slane %v545, 4
        %vm552 = vcmask 519168
        %vm553 = vsmask.f32 7938
        %vm554 = vmand %vm552, %vm553
        %v555 = vld [vmem:[#allocation2 + $0x8] sm:$0xf]
        %v556 = vsel %vm554, %v543, %v555
        %557 = vst [vmem:[#allocation2 + $0x8] sm:$0xf] %v556
        %558 = vst.msk [vmem:[#allocation2 + $0x14] sm:$0xf] %vm517, %v547
        %vm559 = vcmask 516096
        %vm560 = vmand %vm559, %vm342
        %v561 = vld [vmem:[#allocation2 + $0x20] sm:$0x1]
        %v562 = vsel %vm560, %v548, %v561
        %563 = vst [vmem:[#allocation2 + $0x20] sm:$0x1] %v562
      $region52: #{double_conv3d_forward.1} parent=39 // pred_fallthru
        _
      %s564 = sadd.s32 %s251, 1
      %p565 = scmp.ge.s32.totalorder %s564, 0
      %p566 = scmp.lt.s32.totalorder %s564, 8
      %p567 = pnand %p565, %p566
      %p568 = pneg %p567
      // Predicated region
      $region53: #{double_conv3d_forward.1} parent=39 // pred_check
        _
      $region54: #{double_conv3d_forward.1} parent=39 // pred_check_branch
        %570 = sbr.rel (%p567) target = $region56
      $region55: #{double_conv3d_forward.1} parent=39 // pred_region
        %p571 = scmp.gt.s32.totalorder %s564, 0
        %s572 = scalar_select %p571, %s564, 0
        %p573 = scmp.lt.s32.totalorder %s572, 7
        %s574 = scalar_select %p573, %s572, 7
        %s575 = smul.u32 %s574, 2
        %s576 = smul.addr %s575, 4
        %s577 = scalar_lea.vmem %s238, %s576
        %v578 = vld [vmem:[%s577] sm:$0xf]
        %v579 = vld [vmem:[%s577 + $0x4] sm:$0xf]
        %vm582 = vmor %vm294, %vm297
        %v583 = vrot.slane %v578, 6
        %v584 = vrot.slane %v583, 4
        %v585 = vrot.slane %v579, 6
        %v586 = vsel %vm582, %v584, %v585
        %v587 = vrot.slane %v585, 4
        %vm591 = vcmask 519170
        %592 = vst.msk [vmem:[#allocation2 + $0x48] sm:$0xc] %vm591, %v583
        %vm593 = vcmask 519168
        %594 = vst.msk [vmem:[#allocation2 + $0x54] sm:$0xf] %vm593, %v586
        %vm595 = vcmask 517120
        %596 = vst.msk [vmem:[#allocation2 + $0x60] sm:$0x3] %vm595, %v587
        %vm597 = vsmask.f32 5392
        %vm598 = vmor %vm295, %vm597
        %v600 = vshrl.u32 %v578, 16
        %v602 = vrot.slane %v600, 6
        %v603 = vshll.u32 %v578, 16
        %v605 = vrot.slane %v603, 7
        %v606 = vor.u32 %v602, %v605
        %v607 = vrot.slane %v606, 4
        %v609 = vshrl.u32 %v579, 16
        %v611 = vrot.slane %v609, 6
        %v612 = vshll.u32 %v579, 16
        %v614 = vrot.slane %v612, 7
        %v615 = vor.u32 %v611, %v614
        %v616 = vsel %vm598, %v607, %v615
        %v617 = vrot.slane %v615, 4
        %vm621 = vcmask 519169
        %vm622 = vsmask.f32 7942
        %vm623 = vmand %vm621, %vm622
        %v624 = vld [vmem:[#allocation2 + $0x34] sm:$0xe]
        %v625 = vsel %vm623, %v606, %v624
        %626 = vst [vmem:[#allocation2 + $0x34] sm:$0xe] %v625
        %627 = vst.msk [vmem:[#allocation2 + $0x40] sm:$0xf] %vm593, %v616
        %vm628 = vcmask 517120
        %vm629 = vmand %vm628, %vm295
        %v630 = vld [vmem:[#allocation2 + $0x4c] sm:$0x3]
        %v631 = vsel %vm629, %v617, %v630
        %632 = vst [vmem:[#allocation2 + $0x4c] sm:$0x3] %v631
        %vm633 = vmor %vm341, %vm344
        %v634 = vrot.slane %v578, 7
        %v635 = vrot.slane %v634, 4
        %v636 = vrot.slane %v579, 7
        %v637 = vsel %vm633, %v635, %v636
        %v638 = vrot.slane %v636, 4
        %vm642 = vcmask 519169
        %643 = vst.msk [vmem:[#allocation2 + $0x20] sm:$0xe] %vm642, %v634
        %644 = vst.msk [vmem:[#allocation2 + $0x2c] sm:$0xf] %vm593, %v637
        %vm645 = vcmask 516096
        %646 = vst.msk [vmem:[#allocation2 + $0x38] sm:$0x1] %vm645, %v638
      $region56: #{double_conv3d_forward.1} parent=39 // pred_fallthru
        _
      %s647 = sadd.s32 %s251, 2
      %p648 = scmp.ge.s32.totalorder %s647, 0
      %p649 = scmp.lt.s32.totalorder %s647, 8
      %p650 = pnand %p648, %p649
      %p651 = pneg %p650
      // Predicated region
      $region57: #{double_conv3d_forward.1} parent=39 // pred_check
        _
      $region58: #{double_conv3d_forward.1} parent=39 // pred_check_branch
        %653 = sbr.rel (%p650) target = $region60
      $region59: #{double_conv3d_forward.1} parent=39 // pred_region
        %p654 = scmp.gt.s32.totalorder %s647, 0
        %s655 = scalar_select %p654, %s647, 0
        %p656 = scmp.lt.s32.totalorder %s655, 7
        %s657 = scalar_select %p656, %s655, 7
        %s658 = smul.u32 %s657, 2
        %s659 = smul.addr %s658, 4
        %s660 = scalar_lea.vmem %s238, %s659
        %v661 = vld [vmem:[%s660] sm:$0xf]
        %v662 = vld [vmem:[%s660 + $0x4] sm:$0xf]
        %vm663 = vsmask.f32 2304
        %vm664 = vsmask.f32 6416
        %vm665 = vmor %vm663, %vm664
        %v667 = vshrl.u32 %v661, 16
        %v669 = vrot.slane %v667, 5
        %v670 = vshll.u32 %v661, 16
        %v672 = vrot.slane %v670, 6
        %v673 = vor.u32 %v669, %v672
        %v674 = vrot.slane %v673, 4
        %v676 = vshrl.u32 %v662, 16
        %v678 = vrot.slane %v676, 5
        %v679 = vshll.u32 %v662, 16
        %v681 = vrot.slane %v679, 6
        %v682 = vor.u32 %v678, %v681
        %v683 = vsel %vm665, %v674, %v682
        %v684 = vrot.slane %v682, 4
        %vm688 = vcmask 519170
        %vm689 = vsmask.f32 7946
        %vm690 = vmand %vm688, %vm689
        %v691 = vld [vmem:[#allocation2 + $0x60] sm:$0xc]
        %v692 = vsel %vm690, %v673, %v691
        %693 = vst [vmem:[#allocation2 + $0x60] sm:$0xc] %v692
        %vm694 = vcmask 519168
        %695 = vst.msk [vmem:[#allocation2 + $0x6c] sm:$0xf] %vm694, %v683
        %vm696 = vcmask 518144
        %vm697 = vmand %vm696, %vm663
        %v698 = vld [vmem:[#allocation2 + $0x78] sm:$0x7]
        %v699 = vsel %vm697, %v684, %v698
        %700 = vst [vmem:[#allocation2 + $0x78] sm:$0x7] %v699
        %vm703 = vmor %vm294, %vm297
        %v704 = vrot.slane %v661, 6
        %v705 = vrot.slane %v704, 4
        %v706 = vrot.slane %v662, 6
        %v707 = vsel %vm703, %v705, %v706
        %v708 = vrot.slane %v706, 4
        %vm712 = vcmask 519170
        %713 = vst.msk [vmem:[#allocation2 + $0x4c] sm:$0xc] %vm712, %v704
        %714 = vst.msk [vmem:[#allocation2 + $0x58] sm:$0xf] %vm694, %v707
        %vm715 = vcmask 517120
        %716 = vst.msk [vmem:[#allocation2 + $0x64] sm:$0x3] %vm715, %v708
        %vm717 = vsmask.f32 5392
        %vm718 = vmor %vm295, %vm717
        %v719 = vrot.slane %v667, 6
        %v720 = vrot.slane %v670, 7
        %v721 = vor.u32 %v719, %v720
        %v722 = vrot.slane %v721, 4
        %v723 = vrot.slane %v676, 6
        %v724 = vrot.slane %v679, 7
        %v725 = vor.u32 %v723, %v724
        %v726 = vsel %vm718, %v722, %v725
        %v727 = vrot.slane %v725, 4
        %vm731 = vcmask 519169
        %vm732 = vsmask.f32 7942
        %vm733 = vmand %vm731, %vm732
        %v734 = vld [vmem:[#allocation2 + $0x38] sm:$0xe]
        %v735 = vsel %vm733, %v721, %v734
        %736 = vst [vmem:[#allocation2 + $0x38] sm:$0xe] %v735
        %737 = vst.msk [vmem:[#allocation2 + $0x44] sm:$0xf] %vm694, %v726
        %vm738 = vcmask 517120
        %vm739 = vmand %vm738, %vm295
        %v740 = vld [vmem:[#allocation2 + $0x50] sm:$0x3]
        %v741 = vsel %vm739, %v727, %v740
        %742 = vst [vmem:[#allocation2 + $0x50] sm:$0x3] %v741
      $region60: #{double_conv3d_forward.1} parent=39 // pred_fallthru
        _
      %s743 = sadd.s32 %s251, 3
      %p744 = scmp.ge.s32.totalorder %s743, 0
      %p745 = scmp.lt.s32.totalorder %s743, 8
      %p746 = pnand %p744, %p745
      %p747 = pneg %p746
      // Predicated region
      $region61: #{double_conv3d_forward.1} parent=39 // pred_check
        _
      $region62: #{double_conv3d_forward.1} parent=39 // pred_check_branch
        %749 = sbr.rel (%p746) target = $region64
      $region63: #{double_conv3d_forward.1} parent=39 // pred_region
        %p750 = scmp.gt.s32.totalorder %s743, 0
        %s751 = scalar_select %p750, %s743, 0
        %p752 = scmp.lt.s32.totalorder %s751, 7
        %s753 = scalar_select %p752, %s751, 7
        %s754 = smul.u32 %s753, 2
        %s755 = smul.addr %s754, 4
        %s756 = scalar_lea.vmem %s238, %s755
        %v757 = vld [vmem:[%s756] sm:$0xf]
        %v758 = vld [vmem:[%s756 + $0x4] sm:$0xf]
        %vm761 = vcmask 1042432
        %vm762 = vcmask 1046532
        %vm763 = vmor %vm761, %vm762
        %v764 = vrot.slane %v757, 5
        %v765 = vrot.slane %v764, 4
        %v766 = vrot.slane %v758, 5
        %v767 = vsel %vm763, %v765, %v766
        %v768 = vrot.slane %v766, 4
        %vm772 = vcmask 519171
        %773 = vst.msk [vmem:[#allocation2 + $0x78] sm:$0x8] %vm772, %v764
        %vm774 = vcmask 519168
        %775 = vst.msk [vmem:[#allocation2 + $0x84] sm:$0xf] %vm774, %v767
        %vm776 = vcmask 518144
        %777 = vst.msk [vmem:[#allocation2 + $0x90] sm:$0x7] %vm776, %v768
        %vm778 = vsmask.f32 2304
        %vm779 = vsmask.f32 6416
        %vm780 = vmor %vm778, %vm779
        %v782 = vshrl.u32 %v757, 16
        %v784 = vrot.slane %v782, 5
        %v785 = vshll.u32 %v757, 16
        %v787 = vrot.slane %v785, 6
        %v788 = vor.u32 %v784, %v787
        %v789 = vrot.slane %v788, 4
        %v791 = vshrl.u32 %v758, 16
        %v793 = vrot.slane %v791, 5
        %v794 = vshll.u32 %v758, 16
        %v796 = vrot.slane %v794, 6
        %v797 = vor.u32 %v793, %v796
        %v798 = vsel %vm780, %v789, %v797
        %v799 = vrot.slane %v797, 4
        %vm803 = vcmask 519170
        %vm804 = vsmask.f32 7946
        %vm805 = vmand %vm803, %vm804
        %v806 = vld [vmem:[#allocation2 + $0x64] sm:$0xc]
        %v807 = vsel %vm805, %v788, %v806
        %808 = vst [vmem:[#allocation2 + $0x64] sm:$0xc] %v807
        %809 = vst.msk [vmem:[#allocation2 + $0x70] sm:$0xf] %vm774, %v798
        %vm810 = vcmask 518144
        %vm811 = vmand %vm810, %vm778
        %v812 = vld [vmem:[#allocation2 + $0x7c] sm:$0x7]
        %v813 = vsel %vm811, %v799, %v812
        %814 = vst [vmem:[#allocation2 + $0x7c] sm:$0x7] %v813
        %vm815 = vmor %vm294, %vm297
        %v816 = vrot.slane %v757, 6
        %v817 = vrot.slane %v816, 4
        %v818 = vrot.slane %v758, 6
        %v819 = vsel %vm815, %v817, %v818
        %v820 = vrot.slane %v818, 4
        %vm824 = vcmask 519170
        %825 = vst.msk [vmem:[#allocation2 + $0x50] sm:$0xc] %vm824, %v816
        %826 = vst.msk [vmem:[#allocation2 + $0x5c] sm:$0xf] %vm774, %v819
        %vm827 = vcmask 517120
        %828 = vst.msk [vmem:[#allocation2 + $0x68] sm:$0x3] %vm827, %v820
      $region64: #{double_conv3d_forward.1} parent=39 // pred_fallthru
        _
      %s829 = sadd.s32 %s251, 4
      %p830 = scmp.ge.s32.totalorder %s829, 0
      %p831 = scmp.lt.s32.totalorder %s829, 8
      %p832 = pnand %p830, %p831
      %p833 = pneg %p832
      // Predicated region
      $region65: #{double_conv3d_forward.1} parent=39 // pred_check
        _
      $region66: #{double_conv3d_forward.1} parent=39 // pred_check_branch
        %835 = sbr.rel (%p832) target = $region68
      $region67: #{double_conv3d_forward.1} parent=39 // pred_region
        %p836 = scmp.gt.s32.totalorder %s829, 0
        %s837 = scalar_select %p836, %s829, 0
        %p838 = scmp.lt.s32.totalorder %s837, 7
        %s839 = scalar_select %p838, %s837, 7
        %s840 = smul.u32 %s839, 2
        %s841 = smul.addr %s840, 4
        %s842 = scalar_lea.vmem %s238, %s841
        %v843 = vld [vmem:[%s842] sm:$0xf]
        %v844 = vld [vmem:[%s842 + $0x4] sm:$0xf]
        %vm845 = vsmask.f32 3328
        %vm846 = vsmask.f32 7440
        %vm847 = vmor %vm845, %vm846
        %v849 = vshll.u32 %v843, 16
        %v851 = vrot.slane %v849, 5
        %v852 = vshrl.u32 %v843, 16
        %v854 = vrot.slane %v852, 4
        %v855 = vor.u32 %v854, %v851
        %v856 = vrot.slane %v855, 4
        %v858 = vshll.u32 %v844, 16
        %v860 = vrot.slane %v858, 5
        %v861 = vsel %vm847, %v856, %v860
        %v862 = vshrl.u32 %v844, 16
        %v864 = vrot.slane %v862, 4
        %v865 = vor.u32 %v864, %v860
        %v866 = vrot.slane %v865, 4
        %vm870 = vcmask 519171
        %vm871 = vsmask.f32 7950
        %vm872 = vmand %vm870, %vm871
        %v873 = vld [vmem:[#allocation2 + $0x90] sm:$0x8]
        %v874 = vsel %vm872, %v851, %v873
        %875 = vst [vmem:[#allocation2 + $0x90] sm:$0x8] %v874
        %vm876 = vcmask 519168
        %877 = vst.msk [vmem:[#allocation2 + $0x9c] sm:$0xf] %vm876, %v861
        %vm878 = vcmask 519168
        %vm879 = vmand %vm878, %vm845
        %v880 = vld [vmem:[#allocation2 + $0xa8] sm:$0xf]
        %v881 = vsel %vm879, %v866, %v880
        %882 = vst [vmem:[#allocation2 + $0xa8] sm:$0xf] %v881
        %vm885 = vcmask 1042432
        %vm886 = vcmask 1046532
        %vm887 = vmor %vm885, %vm886
        %v888 = vrot.slane %v843, 5
        %v889 = vrot.slane %v888, 4
        %v890 = vrot.slane %v844, 5
        %v891 = vsel %vm887, %v889, %v890
        %v892 = vrot.slane %v890, 4
        %vm896 = vcmask 519171
        %897 = vst.msk [vmem:[#allocation2 + $0x7c] sm:$0x8] %vm896, %v888
        %898 = vst.msk [vmem:[#allocation2 + $0x88] sm:$0xf] %vm876, %v891
        %vm899 = vcmask 518144
        %900 = vst.msk [vmem:[#allocation2 + $0x94] sm:$0x7] %vm899, %v892
        %vm901 = vsmask.f32 2304
        %vm902 = vsmask.f32 6416
        %vm903 = vmor %vm901, %vm902
        %v904 = vrot.slane %v852, 5
        %v905 = vrot.slane %v849, 6
        %v906 = vor.u32 %v904, %v905
        %v907 = vrot.slane %v906, 4
        %v908 = vrot.slane %v862, 5
        %v909 = vrot.slane %v858, 6
        %v910 = vor.u32 %v908, %v909
        %v911 = vsel %vm903, %v907, %v910
        %v912 = vrot.slane %v910, 4
        %vm916 = vcmask 519170
        %vm917 = vsmask.f32 7946
        %vm918 = vmand %vm916, %vm917
        %v919 = vld [vmem:[#allocation2 + $0x68] sm:$0xc]
        %v920 = vsel %vm918, %v906, %v919
        %921 = vst [vmem:[#allocation2 + $0x68] sm:$0xc] %v920
        %922 = vst.msk [vmem:[#allocation2 + $0x74] sm:$0xf] %vm876, %v911
        %vm923 = vcmask 518144
        %vm924 = vmand %vm923, %vm901
        %v925 = vld [vmem:[#allocation2 + $0x80] sm:$0x7]
        %v926 = vsel %vm924, %v912, %v925
        %927 = vst [vmem:[#allocation2 + $0x80] sm:$0x7] %v926
      $region68: #{double_conv3d_forward.1} parent=39 // pred_fallthru
        _
      %s928 = sadd.s32 %s251, 5
      %p929 = scmp.ge.s32.totalorder %s928, 0
      %p930 = scmp.lt.s32.totalorder %s928, 8
      %p931 = pnand %p929, %p930
      %p932 = pneg %p931
      // Predicated region
      $region69: #{double_conv3d_forward.1} parent=39 // pred_check
        _
      $region70: #{double_conv3d_forward.1} parent=39 // pred_check_branch
        %934 = sbr.rel (%p931) target = $region72
      $region71: #{double_conv3d_forward.1} parent=39 // pred_region
        %p935 = scmp.gt.s32.totalorder %s928, 0
        %s936 = scalar_select %p935, %s928, 0
        %p937 = scmp.lt.s32.totalorder %s936, 7
        %s938 = scalar_select %p937, %s936, 7
        %s939 = smul.u32 %s938, 2
        %s940 = smul.addr %s939, 4
        %s941 = scalar_lea.vmem %s238, %s940
        %v942 = vld [vmem:[%s941] sm:$0xf]
        %v943 = vld [vmem:[%s941 + $0x4] sm:$0xf]
        %vm944 = vcmask 519168
        %945 = vst.msk [vmem:[#allocation2 + $0xb4] sm:$0xf] %vm944, %v942
        %946 = vst.msk [vmem:[#allocation2 + $0xc0] sm:$0xf] %vm944, %v943
        %vm947 = vsmask.f32 3328
        %vm948 = vsmask.f32 7440
        %vm949 = vmor %vm947, %vm948
        %v951 = vshll.u32 %v942, 16
        %v953 = vrot.slane %v951, 5
        %v954 = vshrl.u32 %v942, 16
        %v956 = vrot.slane %v954, 4
        %v957 = vor.u32 %v956, %v953
        %v958 = vrot.slane %v957, 4
        %v960 = vshll.u32 %v943, 16
        %v962 = vrot.slane %v960, 5
        %v963 = vsel %vm949, %v958, %v962
        %v964 = vshrl.u32 %v943, 16
        %v966 = vrot.slane %v964, 4
        %v967 = vor.u32 %v966, %v962
        %v968 = vrot.slane %v967, 4
        %vm972 = vcmask 519171
        %vm973 = vsmask.f32 7950
        %vm974 = vmand %vm972, %vm973
        %v975 = vld [vmem:[#allocation2 + $0x94] sm:$0x8]
        %v976 = vsel %vm974, %v953, %v975
        %977 = vst [vmem:[#allocation2 + $0x94] sm:$0x8] %v976
        %978 = vst.msk [vmem:[#allocation2 + $0xa0] sm:$0xf] %vm944, %v963
        %vm979 = vcmask 519168
        %vm980 = vmand %vm979, %vm947
        %v981 = vld [vmem:[#allocation2 + $0xac] sm:$0xf]
        %v982 = vsel %vm980, %v968, %v981
        %983 = vst [vmem:[#allocation2 + $0xac] sm:$0xf] %v982
        %vm986 = vcmask 1042432
        %vm987 = vcmask 1046532
        %vm988 = vmor %vm986, %vm987
        %v989 = vrot.slane %v942, 5
        %v990 = vrot.slane %v989, 4
        %v991 = vrot.slane %v943, 5
        %v992 = vsel %vm988, %v990, %v991
        %v993 = vrot.slane %v991, 4
        %vm997 = vcmask 519171
        %998 = vst.msk [vmem:[#allocation2 + $0x80] sm:$0x8] %vm997, %v989
        %999 = vst.msk [vmem:[#allocation2 + $0x8c] sm:$0xf] %vm944, %v992
        %vm1000 = vcmask 518144
        %1001 = vst.msk [vmem:[#allocation2 + $0x98] sm:$0x7] %vm1000, %v993
      $region72: #{double_conv3d_forward.1} parent=39 // pred_fallthru
        _
      %s1002 = sadd.s32 %s251, 6
      %p1003 = scmp.ge.s32.totalorder %s1002, 0
      %p1004 = scmp.lt.s32.totalorder %s1002, 8
      %p1005 = pnand %p1003, %p1004
      %p1006 = pneg %p1005
      // Predicated region
      $region73: #{double_conv3d_forward.1} parent=39 // pred_check
        _
      $region74: #{double_conv3d_forward.1} parent=39 // pred_check_branch
        %1008 = sbr.rel (%p1005) target = $region76
      $region75: #{double_conv3d_forward.1} parent=39 // pred_region
        %p1009 = scmp.gt.s32.totalorder %s1002, 0
        %s1010 = scalar_select %p1009, %s1002, 0
        %p1011 = scmp.lt.s32.totalorder %s1010, 7
        %s1012 = scalar_select %p1011, %s1010, 7
        %s1013 = smul.u32 %s1012, 2
        %s1014 = smul.addr %s1013, 4
        %s1015 = scalar_lea.vmem %s238, %s1014
        %v1016 = vld [vmem:[%s1015] sm:$0xf]
        %v1017 = vld [vmem:[%s1015 + $0x4] sm:$0xf]
        %vm1018 = vsmask.f32 4368
        %vm1019 = vmor %vm342, %vm1018
        %v1021 = vshrl.u32 %v1016, 16
        %v1023 = vrot.slane %v1021, 7
        %v1024 = vshll.u32 %v1016, 16
        %v1026 = vor.u32 %v1023, %v1024
        %v1027 = vrot.slane %v1023, 4
        %v1029 = vshrl.u32 %v1017, 16
        %v1031 = vrot.slane %v1029, 7
        %v1032 = vshll.u32 %v1017, 16
        %v1034 = vor.u32 %v1031, %v1032
        %v1035 = vsel %vm1019, %v1027, %v1034
        %v1036 = vrot.slane %v1031, 4
        %vm1040 = vcmask 519168
        %vm1041 = vsmask.f32 7938
        %vm1042 = vmand %vm1040, %vm1041
        %v1043 = vld [vmem:[#allocation2 + $0xcc] sm:$0xf]
        %v1044 = vsel %vm1042, %v1026, %v1043
        %1045 = vst [vmem:[#allocation2 + $0xcc] sm:$0xf] %v1044
        %vm1046 = vcmask 519168
        %1047 = vst.msk [vmem:[#allocation2 + $0xd8] sm:$0xf] %vm1046, %v1035
        %vm1048 = vcmask 516096
        %vm1049 = vmand %vm1048, %vm342
        %v1050 = vld [vmem:[#allocation2 + $0xe4] sm:$0x1]
        %v1051 = vsel %vm1049, %v1036, %v1050
        %1052 = vst [vmem:[#allocation2 + $0xe4] sm:$0x1] %v1051
        %1053 = vst.msk [vmem:[#allocation2 + $0xb8] sm:$0xf] %vm1046, %v1016
        %1054 = vst.msk [vmem:[#allocation2 + $0xc4] sm:$0xf] %vm1046, %v1017
        %vm1055 = vsmask.f32 3328
        %vm1056 = vsmask.f32 7440
        %vm1057 = vmor %vm1055, %vm1056
        %v1058 = vrot.slane %v1024, 5
        %v1059 = vrot.slane %v1021, 4
        %v1060 = vor.u32 %v1059, %v1058
        %v1061 = vrot.slane %v1060, 4
        %v1062 = vrot.slane %v1032, 5
        %v1063 = vsel %vm1057, %v1061, %v1062
        %v1064 = vrot.slane %v1029, 4
        %v1065 = vor.u32 %v1064, %v1062
        %v1066 = vrot.slane %v1065, 4
        %vm1070 = vcmask 519171
        %vm1071 = vsmask.f32 7950
        %vm1072 = vmand %vm1070, %vm1071
        %v1073 = vld [vmem:[#allocation2 + $0x98] sm:$0x8]
        %v1074 = vsel %vm1072, %v1058, %v1073
        %1075 = vst [vmem:[#allocation2 + $0x98] sm:$0x8] %v1074
        %1076 = vst.msk [vmem:[#allocation2 + $0xa4] sm:$0xf] %vm1046, %v1063
        %vm1077 = vmand %vm1040, %vm1055
        %v1078 = vld [vmem:[#allocation2 + $0xb0] sm:$0xf]
        %v1079 = vsel %vm1077, %v1066, %v1078
        %1080 = vst [vmem:[#allocation2 + $0xb0] sm:$0xf] %v1079
      $region76: #{double_conv3d_forward.1} parent=39 // pred_fallthru
        _
      %s1081 = sadd.s32 %s251, 7
      %p1082 = scmp.ge.s32.totalorder %s1081, 0
      %p1083 = scmp.lt.s32.totalorder %s1081, 8
      %p1084 = pnand %p1082, %p1083
      %p1085 = pneg %p1084
      // Predicated region
      $region77: #{double_conv3d_forward.1} parent=39 // pred_check
        _
      $region78: #{double_conv3d_forward.1} parent=39 // pred_check_branch
        %1087 = sbr.rel (%p1084) target = $region80
      $region79: #{double_conv3d_forward.1} parent=39 // pred_region
        %p1088 = scmp.gt.s32.totalorder %s1081, 0
        %s1089 = scalar_select %p1088, %s1081, 0
        %p1090 = scmp.lt.s32.totalorder %s1089, 7
        %s1091 = scalar_select %p1090, %s1089, 7
        %s1092 = smul.u32 %s1091, 2
        %s1093 = smul.addr %s1092, 4
        %s1094 = scalar_lea.vmem %s238, %s1093
        %v1095 = vld [vmem:[%s1094] sm:$0xf]
        %v1096 = vld [vmem:[%s1094 + $0x4] sm:$0xf]
        %vm1099 = vmor %vm341, %vm344
        %v1100 = vrot.slane %v1095, 7
        %v1101 = vrot.slane %v1100, 4
        %v1102 = vrot.slane %v1096, 7
        %v1103 = vsel %vm1099, %v1101, %v1102
        %v1104 = vrot.slane %v1102, 4
        %vm1108 = vcmask 519169
        %1109 = vst.msk [vmem:[#allocation2 + $0xe4] sm:$0xe] %vm1108, %v1100
        %vm1110 = vcmask 519168
        %1111 = vst.msk [vmem:[#allocation2 + $0xf0] sm:$0xf] %vm1110, %v1103
        %vm1112 = vcmask 516096
        %1113 = vst.msk [vmem:[#allocation2 + $0xfc] sm:$0x1] %vm1112, %v1104
        %vm1114 = vsmask.f32 4368
        %vm1115 = vmor %vm342, %vm1114
        %v1117 = vshrl.u32 %v1095, 16
        %v1119 = vrot.slane %v1117, 7
        %v1120 = vshll.u32 %v1095, 16
        %v1122 = vor.u32 %v1119, %v1120
        %v1123 = vrot.slane %v1119, 4
        %v1125 = vshrl.u32 %v1096, 16
        %v1127 = vrot.slane %v1125, 7
        %v1128 = vshll.u32 %v1096, 16
        %v1130 = vor.u32 %v1127, %v1128
        %v1131 = vsel %vm1115, %v1123, %v1130
        %v1132 = vrot.slane %v1127, 4
        %vm1136 = vcmask 519168
        %vm1137 = vsmask.f32 7938
        %vm1138 = vmand %vm1136, %vm1137
        %v1139 = vld [vmem:[#allocation2 + $0xd0] sm:$0xf]
        %v1140 = vsel %vm1138, %v1122, %v1139
        %1141 = vst [vmem:[#allocation2 + $0xd0] sm:$0xf] %v1140
        %1142 = vst.msk [vmem:[#allocation2 + $0xdc] sm:$0xf] %vm1110, %v1131
        %vm1143 = vcmask 516096
        %vm1144 = vmand %vm1143, %vm342
        %v1145 = vld [vmem:[#allocation2 + $0xe8] sm:$0x1]
        %v1146 = vsel %vm1144, %v1132, %v1145
        %1147 = vst [vmem:[#allocation2 + $0xe8] sm:$0x1] %v1146
        %1148 = vst.msk [vmem:[#allocation2 + $0xbc] sm:$0xf] %vm1110, %v1095
        %1149 = vst.msk [vmem:[#allocation2 + $0xc8] sm:$0xf] %vm1110, %v1096
      $region80: #{double_conv3d_forward.1} parent=39 // pred_fallthru
        _
      %s1150 = sadd.s32 %s251, 8
      %p1151 = scmp.ge.s32.totalorder %s1150, 0
      %p1152 = scmp.lt.s32.totalorder %s1150, 8
      %p1153 = pnand %p1151, %p1152
      %p1154 = pneg %p1153
      // Predicated region
      $region81: #{double_conv3d_forward.1} parent=39 // pred_check
        _
      $region82: #{double_conv3d_forward.1} parent=39 // pred_check_branch
        %1156 = sbr.rel (%p1153) target = $region84
      $region83: #{double_conv3d_forward.1} parent=39 // pred_region
        %p1157 = scmp.gt.s32.totalorder %s1150, 0
        %s1158 = scalar_select %p1157, %s1150, 0
        %p1159 = scmp.lt.s32.totalorder %s1158, 7
        %s1160 = scalar_select %p1159, %s1158, 7
        %s1161 = smul.u32 %s1160, 2
        %s1162 = smul.addr %s1161, 4
        %s1163 = scalar_lea.vmem %s238, %s1162
        %v1164 = vld [vmem:[%s1163] sm:$0xf]
        %v1165 = vld [vmem:[%s1163 + $0x4] sm:$0xf]
        %vm1168 = vmor %vm341, %vm344
        %v1169 = vrot.slane %v1164, 7
        %v1170 = vrot.slane %v1169, 4
        %v1171 = vrot.slane %v1165, 7
        %v1172 = vsel %vm1168, %v1170, %v1171
        %v1173 = vrot.slane %v1171, 4
        %vm1177 = vcmask 519169
        %1178 = vst.msk [vmem:[#allocation2 + $0xe8] sm:$0xe] %vm1177, %v1169
        %vm1179 = vcmask 519168
        %1180 = vst.msk [vmem:[#allocation2 + $0xf4] sm:$0xf] %vm1179, %v1172
        %vm1181 = vcmask 516096
        %1182 = vst.msk [vmem:[#allocation2 + $0x100] sm:$0x1] %vm1181, %v1173
        %vm1183 = vsmask.f32 4368
        %vm1184 = vmor %vm342, %vm1183
        %v1186 = vshrl.u32 %v1164, 16
        %v1188 = vrot.slane %v1186, 7
        %v1189 = vshll.u32 %v1164, 16
        %v1191 = vor.u32 %v1188, %v1189
        %v1192 = vrot.slane %v1188, 4
        %v1194 = vshrl.u32 %v1165, 16
        %v1196 = vrot.slane %v1194, 7
        %v1197 = vshll.u32 %v1165, 16
        %v1199 = vor.u32 %v1196, %v1197
        %v1200 = vsel %vm1184, %v1192, %v1199
        %v1201 = vrot.slane %v1196, 4
        %vm1205 = vcmask 519168
        %vm1206 = vsmask.f32 7938
        %vm1207 = vmand %vm1205, %vm1206
        %v1208 = vld [vmem:[#allocation2 + $0xd4] sm:$0xf]
        %v1209 = vsel %vm1207, %v1191, %v1208
        %1210 = vst [vmem:[#allocation2 + $0xd4] sm:$0xf] %v1209
        %1211 = vst.msk [vmem:[#allocation2 + $0xe0] sm:$0xf] %vm1179, %v1200
        %vm1212 = vcmask 516096
        %vm1213 = vmand %vm1212, %vm342
        %v1214 = vld [vmem:[#allocation2 + $0xec] sm:$0x1]
        %v1215 = vsel %vm1213, %v1201, %v1214
        %1216 = vst [vmem:[#allocation2 + $0xec] sm:$0x1] %v1215
      $region84: #{double_conv3d_forward.1} parent=39 // pred_fallthru
        _
      %s1217 = sadd.s32 %s251, 9
      %p1218 = scmp.ge.s32.totalorder %s1217, 0
      %p1219 = scmp.lt.s32.totalorder %s1217, 8
      %p1220 = pnand %p1218, %p1219
      %p1221 = pneg %p1220
      // Predicated region
      $region85: #{double_conv3d_forward.1} parent=39 // pred_check
        _
      $region86: #{double_conv3d_forward.1} parent=39 // pred_check_branch
        %1223 = sbr.rel (%p1220) target = $region88
      $region87: #{double_conv3d_forward.1} parent=39 // pred_region
        %p1224 = scmp.gt.s32.totalorder %s1217, 0
        %s1225 = scalar_select %p1224, %s1217, 0
        %p1226 = scmp.lt.s32.totalorder %s1225, 7
        %s1227 = scalar_select %p1226, %s1225, 7
        %s1228 = smul.u32 %s1227, 2
        %s1229 = smul.addr %s1228, 4
        %s1230 = scalar_lea.vmem %s238, %s1229
        %v1231 = vld [vmem:[%s1230] sm:$0xf]
        %v1232 = vld [vmem:[%s1230 + $0x4] sm:$0xf]
        %vm1235 = vmor %vm341, %vm344
        %v1236 = vrot.slane %v1231, 7
        %v1237 = vrot.slane %v1236, 4
        %v1238 = vrot.slane %v1232, 7
        %v1239 = vsel %vm1235, %v1237, %v1238
        %v1240 = vrot.slane %v1238, 4
        %vm1244 = vcmask 519169
        %1245 = vst.msk [vmem:[#allocation2 + $0xec] sm:$0xe] %vm1244, %v1236
        %vm1246 = vcmask 519168
        %1247 = vst.msk [vmem:[#allocation2 + $0xf8] sm:$0xf] %vm1246, %v1239
        %vm1248 = vcmask 516096
        %1249 = vst.msk [vmem:[#allocation2 + $0x104] sm:$0x1] %vm1248, %v1240
      $region88: #{double_conv3d_forward.1} parent=39 // pred_fallthru
        _
      %v1250 = vld [vmem:[#allocation2] sm:$0xff]
      %v1251 = vld [vmem:[#allocation2 + $0x8] sm:$0xf]
      %v1252 = vld [vmem:[#allocation2 + $0xc] sm:$0xff]
      %v1253 = vld [vmem:[#allocation2 + $0x14] sm:$0xf]
      %v1254 = vld [vmem:[#allocation2 + $0x18] sm:$0xff]
      %v1255 = vld [vmem:[#allocation2 + $0x20] sm:$0xf]
      %v1256 = vld [vmem:[#allocation2 + $0x24] sm:$0xff]
      %v1257 = vld [vmem:[#allocation2 + $0x2c] sm:$0xf]
      %v1258 = vld [vmem:[#allocation2 + $0x30] sm:$0xff]
      %v1259 = vld [vmem:[#allocation2 + $0x38] sm:$0xf]
      %v1260 = vld [vmem:[#allocation2 + $0x3c] sm:$0xff]
      %v1261 = vld [vmem:[#allocation2 + $0x44] sm:$0xf]
      %v1262 = vld [vmem:[#allocation2 + $0x48] sm:$0xff]
      %v1263 = vld [vmem:[#allocation2 + $0x50] sm:$0xf]
      %v1264 = vld [vmem:[#allocation2 + $0x54] sm:$0xff]
      %v1265 = vld [vmem:[#allocation2 + $0x5c] sm:$0xf]
      %v1266 = vld [vmem:[#allocation2 + $0x60] sm:$0xff]
      %v1267 = vld [vmem:[#allocation2 + $0x68] sm:$0xf]
      %v1268 = vld [vmem:[#allocation2 + $0x6c] sm:$0xff]
      %v1269 = vld [vmem:[#allocation2 + $0x74] sm:$0xf]
      %v1270 = vld [vmem:[#allocation2 + $0x78] sm:$0xff]
      %v1271 = vld [vmem:[#allocation2 + $0x80] sm:$0xf]
      %v1272 = vld [vmem:[#allocation2 + $0x84] sm:$0xff]
      %v1273 = vld [vmem:[#allocation2 + $0x8c] sm:$0xf]
      %v1274 = vld [vmem:[#allocation2 + $0x90] sm:$0xff]
      %v1275 = vld [vmem:[#allocation2 + $0x98] sm:$0xf]
      %v1276 = vld [vmem:[#allocation2 + $0x9c] sm:$0xff]
      %v1277 = vld [vmem:[#allocation2 + $0xa4] sm:$0xf]
      %v1278 = vld [vmem:[#allocation2 + $0xa8] sm:$0xff]
      %v1279 = vld [vmem:[#allocation2 + $0xb0] sm:$0xf]
      %v1280 = vld [vmem:[#allocation2 + $0xb4] sm:$0xff]
      %v1281 = vld [vmem:[#allocation2 + $0xbc] sm:$0xf]
      %v1282 = vld [vmem:[#allocation2 + $0xc0] sm:$0xff]
      %v1283 = vld [vmem:[#allocation2 + $0xc8] sm:$0xf]
      %v1284 = vld [vmem:[#allocation2 + $0xcc] sm:$0xff]
      %v1285 = vld [vmem:[#allocation2 + $0xd4] sm:$0xf]
      %v1286 = vld [vmem:[#allocation2 + $0xd8] sm:$0xff]
      %v1287 = vld [vmem:[#allocation2 + $0xe0] sm:$0xf]
      %v1288 = vld [vmem:[#allocation2 + $0xe4] sm:$0xff]
      %v1289 = vld [vmem:[#allocation2 + $0xec] sm:$0xf]
      %v1290 = vld [vmem:[#allocation2 + $0xf0] sm:$0xff]
      %v1291 = vld [vmem:[#allocation2 + $0xf8] sm:$0xf]
      %v1292 = vld [vmem:[#allocation2 + $0xfc] sm:$0x11]
      %v1293 = vld [vmem:[#allocation2 + $0x104] sm:$0x1]
      %v1294 = vld [vmem:[%s1] sm:$0xf]
      %v1295 = vld [vmem:[%s1 + $0x4] sm:$0xf]
      %v1296 = vld [vmem:[%s1 + $0x8] sm:$0xf]
      %v1297 = vld [vmem:[%s1 + $0xc] sm:$0xf]
      %v1298 = vld [vmem:[%s1 + $0x10] sm:$0xf]
      %v1299 = vld [vmem:[%s1 + $0x14] sm:$0xf]
      %v1300 = vld [vmem:[%s1 + $0x18] sm:$0xf]
      %v1301 = vld [vmem:[%s1 + $0x1c] sm:$0xf]
      %v1302 = vld [vmem:[%s1 + $0x20] sm:$0xf]
      %v1303 = vld [vmem:[%s1 + $0x24] sm:$0xf]
      %v1304 = vld [vmem:[%s1 + $0x28] sm:$0xf]
      %v1305 = vld [vmem:[%s1 + $0x2c] sm:$0xf]
      %v1306 = vld [vmem:[%s1 + $0x30] sm:$0xf]
      %v1307 = vld [vmem:[%s1 + $0x34] sm:$0xf]
      %v1308 = vld [vmem:[%s1 + $0x38] sm:$0xf]
      %v1309 = vld [vmem:[%s1 + $0x3c] sm:$0xf]
      %v1310 = vld [vmem:[%s1 + $0x40] sm:$0xf]
      %v1311 = vld [vmem:[%s1 + $0x44] sm:$0xf]
      %v1312 = vld [vmem:[%s1 + $0x48] sm:$0xf]
      %v1313 = vld [vmem:[%s1 + $0x4c] sm:$0xf]
      %v1314 = vld [vmem:[%s1 + $0x50] sm:$0xf]
      %v1315 = vld [vmem:[%s1 + $0x54] sm:$0xf]
      %v1316 = vld [vmem:[%s1 + $0x58] sm:$0xf]
      %v1317 = vld [vmem:[%s1 + $0x5c] sm:$0xf]
      %v1318 = vld [vmem:[%s1 + $0x60] sm:$0xf]
      %v1319 = vld [vmem:[%s1 + $0x64] sm:$0xf]
      %v1320 = vld [vmem:[%s1 + $0x68] sm:$0xf]
      %v1321 = vld [vmem:[%s1 + $0x6c] sm:$0xf]
      %v1322 = vld [vmem:[%s1 + $0x70] sm:$0xf]
      %v1323 = vld [vmem:[%s1 + $0x74] sm:$0xf]
      %v1324 = vld [vmem:[%s1 + $0x78] sm:$0xf]
      %v1325 = vld [vmem:[%s1 + $0x7c] sm:$0xf]
      %v1326 = vld [vmem:[%s1 + $0x80] sm:$0xf]
      %v1327 = vld [vmem:[%s1 + $0x84] sm:$0xf]
      %v1328 = vld [vmem:[%s1 + $0x88] sm:$0xf]
      %v1329 = vld [vmem:[%s1 + $0x8c] sm:$0xf]
      %v1330 = vld [vmem:[%s1 + $0x90] sm:$0xf]
      %v1331 = vld [vmem:[%s1 + $0x94] sm:$0xf]
      %v1332 = vld [vmem:[%s1 + $0x98] sm:$0xf]
      %v1333 = vld [vmem:[%s1 + $0x9c] sm:$0xf]
      %v1334 = vld [vmem:[%s1 + $0xa0] sm:$0xf]
      %v1335 = vld [vmem:[%s1 + $0xa4] sm:$0xf]
      %v1336 = vld [vmem:[%s1 + $0xa8] sm:$0xf]
      %v1337 = vld [vmem:[%s1 + $0xac] sm:$0xf]
      %v1338 = vld [vmem:[%s1 + $0xb0] sm:$0xf]
      %v1339 = vld [vmem:[%s1 + $0xb4] sm:$0xf]
      %v1340 = vld [vmem:[%s1 + $0xb8] sm:$0xf]
      %v1341 = vld [vmem:[%s1 + $0xbc] sm:$0xf]
      %s1342 = scalar_lea.vmem %s1, 192
      %v1343 = vld [vmem:[%s1342] sm:$0xf]
      %v1344 = vld [vmem:[%s1342 + $0x4] sm:$0xf]
      %v1345 = vld [vmem:[%s1342 + $0x8] sm:$0xf]
      %v1346 = vld [vmem:[%s1342 + $0xc] sm:$0xf]
      %v1347 = vld [vmem:[%s1342 + $0x10] sm:$0xf]
      %v1348 = vld [vmem:[%s1342 + $0x14] sm:$0xf]
      %v1349 = vld [vmem:[%s1342 + $0x18] sm:$0xf]
      %v1350 = vld [vmem:[%s1342 + $0x1c] sm:$0xf]
      %v1351 = vld [vmem:[%s1342 + $0x20] sm:$0xf]
      %v1352 = vld [vmem:[%s1342 + $0x24] sm:$0xf]
      %v1353 = vld [vmem:[%s1342 + $0x28] sm:$0xf]
      %v1354 = vld [vmem:[%s1342 + $0x2c] sm:$0xf]
      %v1355 = vld [vmem:[%s1342 + $0x30] sm:$0xf]
      %v1356 = vld [vmem:[%s1342 + $0x34] sm:$0xf]
      %v1357 = vld [vmem:[%s1342 + $0x38] sm:$0xf]
      %v1358 = vld [vmem:[%s1342 + $0x3c] sm:$0xf]
      %v1359 = vld [vmem:[%s1342 + $0x40] sm:$0xf]
      %v1360 = vld [vmem:[%s1342 + $0x44] sm:$0xf]
      %v1361 = vld [vmem:[%s1342 + $0x48] sm:$0xf]
      %v1362 = vld [vmem:[%s1342 + $0x4c] sm:$0xf]
      %v1363 = vld [vmem:[%s1342 + $0x50] sm:$0xf]
      %v1364 = vld [vmem:[%s1342 + $0x54] sm:$0xf]
      %v1365 = vld [vmem:[%s1342 + $0x58] sm:$0xf]
      %v1366 = vld [vmem:[%s1342 + $0x5c] sm:$0xf]
      %v1367 = vld [vmem:[%s1342 + $0x60] sm:$0xf]
      %v1368 = vld [vmem:[%s1342 + $0x64] sm:$0xf]
      %v1369 = vld [vmem:[%s1342 + $0x68] sm:$0xf]
      %v1370 = vld [vmem:[%s1342 + $0x6c] sm:$0xf]
      %v1371 = vld [vmem:[%s1342 + $0x70] sm:$0xf]
      %v1372 = vld [vmem:[%s1342 + $0x74] sm:$0xf]
      %v1373 = vld [vmem:[%s1342 + $0x78] sm:$0xf]
      %v1374 = vld [vmem:[%s1342 + $0x7c] sm:$0xf]
      %v1375 = vld [vmem:[%s1342 + $0x80] sm:$0xf]
      %v1376 = vld [vmem:[%s1342 + $0x84] sm:$0xf]
      %v1377 = vld [vmem:[%s1342 + $0x88] sm:$0xf]
      %v1378 = vld [vmem:[%s1342 + $0x8c] sm:$0xf]
      %v1379 = vld [vmem:[%s1342 + $0x90] sm:$0xf]
      %v1380 = vld [vmem:[%s1342 + $0x94] sm:$0xf]
      %v1381 = vld [vmem:[%s1342 + $0x98] sm:$0xf]
      %v1382 = vld [vmem:[%s1342 + $0x9c] sm:$0xf]
      %v1383 = vld [vmem:[%s1342 + $0xa0] sm:$0xf]
      %v1384 = vld [vmem:[%s1342 + $0xa4] sm:$0xf]
      %v1385 = vld [vmem:[%s1342 + $0xa8] sm:$0xf]
      %v1386 = vld [vmem:[%s1342 + $0xac] sm:$0xf]
      %v1387 = vld [vmem:[%s1342 + $0xb0] sm:$0xf]
      %v1388 = vld [vmem:[%s1342 + $0xb4] sm:$0xf]
      %v1389 = vld [vmem:[%s1342 + $0xb8] sm:$0xf]
      %v1390 = vld [vmem:[%s1342 + $0xbc] sm:$0xf]
      %v1435 = vunpack.c.l.b16 %v1250
      %v1436 = vunpack.c.h.b16 %v1250
      %v1437 = vunpack.c.l.b16 %v1251
      %v1438 = vunpack.c.l.b16 %v1252
      %v1439 = vunpack.c.h.b16 %v1252
      %v1440 = vunpack.c.l.b16 %v1253
      %v1441 = vunpack.c.l.b16 %v1254
      %v1442 = vunpack.c.h.b16 %v1254
      %v1443 = vunpack.c.l.b16 %v1255
      %v1444 = vunpack.c.l.b16 %v1256
      %v1445 = vunpack.c.h.b16 %v1256
      %v1446 = vunpack.c.l.b16 %v1257
      %v1447 = vunpack.c.l.b16 %v1258
      %v1448 = vunpack.c.h.b16 %v1258
      %v1449 = vunpack.c.l.b16 %v1259
      %v1450 = vunpack.c.l.b16 %v1260
      %v1451 = vunpack.c.h.b16 %v1260
      %v1452 = vunpack.c.l.b16 %v1261
      %v1453 = vunpack.c.l.b16 %v1262
      %v1454 = vunpack.c.h.b16 %v1262
      %v1455 = vunpack.c.l.b16 %v1263
      %v1456 = vunpack.c.l.b16 %v1264
      %v1457 = vunpack.c.h.b16 %v1264
      %v1458 = vunpack.c.l.b16 %v1265
      %v1459 = vunpack.c.l.b16 %v1266
      %v1460 = vunpack.c.h.b16 %v1266
      %v1461 = vunpack.c.l.b16 %v1267
      %v1462 = vunpack.c.l.b16 %v1268
      %v1463 = vunpack.c.h.b16 %v1268
      %v1464 = vunpack.c.l.b16 %v1269
      %v1465 = vunpack.c.l.b16 %v1270
      %v1466 = vunpack.c.h.b16 %v1270
      %v1467 = vunpack.c.l.b16 %v1271
      %v1468 = vunpack.c.l.b16 %v1272
      %v1469 = vunpack.c.h.b16 %v1272
      %v1470 = vunpack.c.l.b16 %v1273
      %v1471 = vunpack.c.l.b16 %v1274
      %v1472 = vunpack.c.h.b16 %v1274
      %v1473 = vunpack.c.l.b16 %v1275
      %v1474 = vunpack.c.l.b16 %v1276
      %v1475 = vunpack.c.h.b16 %v1276
      %v1476 = vunpack.c.l.b16 %v1277
      %v1477 = vunpack.c.l.b16 %v1278
      %v1478 = vunpack.c.h.b16 %v1278
      %v1479 = vunpack.c.l.b16 %v1279
      %v1480 = vunpack.c.l.b16 %v1280
      %v1481 = vunpack.c.h.b16 %v1280
      %v1482 = vunpack.c.l.b16 %v1281
      %v1483 = vunpack.c.l.b16 %v1282
      %v1484 = vunpack.c.h.b16 %v1282
      %v1485 = vunpack.c.l.b16 %v1283
      %v1486 = vunpack.c.l.b16 %v1284
      %v1487 = vunpack.c.h.b16 %v1284
      %v1488 = vunpack.c.l.b16 %v1285
      %v1489 = vunpack.c.l.b16 %v1286
      %v1490 = vunpack.c.h.b16 %v1286
      %v1491 = vunpack.c.l.b16 %v1287
      %v1492 = vunpack.c.l.b16 %v1288
      %v1493 = vunpack.c.h.b16 %v1288
      %v1494 = vunpack.c.l.b16 %v1289
      %v1495 = vunpack.c.l.b16 %v1290
      %v1496 = vunpack.c.h.b16 %v1290
      %v1497 = vunpack.c.l.b16 %v1291
      %v1498 = vunpack.c.l.b16 %v1292
      %v1499 = vunpack.c.h.b16 %v1292
      %v1500 = vunpack.c.l.b16 %v1293
      %v1501 = vpack.c.b16 %v1438, %v1435
      %v1502 = vpack.c.b16 %v1439, %v1436
      %v1503 = vpack.c.b16 %v1440, %v1437
      %v1504 = vpack.c.b16 %v1444, %v1441
      %v1505 = vpack.c.b16 %v1445, %v1442
      %v1506 = vpack.c.b16 %v1446, %v1443
      %v1507 = vpack.c.b16 %v1450, %v1447
      %v1508 = vpack.c.b16 %v1451, %v1448
      %v1509 = vpack.c.b16 %v1452, %v1449
      %v1510 = vpack.c.b16 %v1456, %v1453
      %v1511 = vpack.c.b16 %v1457, %v1454
      %v1512 = vpack.c.b16 %v1458, %v1455
      %v1513 = vpack.c.b16 %v1462, %v1459
      %v1514 = vpack.c.b16 %v1463, %v1460
      %v1515 = vpack.c.b16 %v1464, %v1461
      %v1516 = vpack.c.b16 %v1468, %v1465
      %v1517 = vpack.c.b16 %v1469, %v1466
      %v1518 = vpack.c.b16 %v1470, %v1467
      %v1519 = vpack.c.b16 %v1474, %v1471
      %v1520 = vpack.c.b16 %v1475, %v1472
      %v1521 = vpack.c.b16 %v1476, %v1473
      %v1522 = vpack.c.b16 %v1480, %v1477
      %v1523 = vpack.c.b16 %v1481, %v1478
      %v1524 = vpack.c.b16 %v1482, %v1479
      %v1525 = vpack.c.b16 %v1486, %v1483
      %v1526 = vpack.c.b16 %v1487, %v1484
      %v1527 = vpack.c.b16 %v1488, %v1485
      %v1528 = vpack.c.b16 %v1492, %v1489
      %v1529 = vpack.c.b16 %v1493, %v1490
      %v1530 = vpack.c.b16 %v1494, %v1491
      %v1531 = vpack.c.b16 %v1498, %v1495
      %v1532 = vpack.c.b16 %v1499, %v1496
      %v1533 = vpack.c.b16 %v1500, %v1497
      %vm1534 = vsmask.f32 7424
      %v1536 = vshrl.u32 %v1501, 16
      %v1538 = vshll.u32 %v1501, 16
      %v1540 = vrot.slane %v1538, 1
      %v1541 = vor.u32 %v1536, %v1540
      %v1543 = vshll.u32 %v1504, 16
      %v1545 = vrot.slane %v1543, 1
      %v1546 = vsel %vm1534, %v1541, %v1545
      %v1548 = vshrl.u32 %v1502, 16
      %v1550 = vshll.u32 %v1502, 16
      %v1552 = vrot.slane %v1550, 1
      %v1553 = vor.u32 %v1548, %v1552
      %v1555 = vshll.u32 %v1505, 16
      %v1557 = vrot.slane %v1555, 1
      %v1558 = vsel %vm1534, %v1553, %v1557
      %v1560 = vshrl.u32 %v1503, 16
      %v1562 = vshll.u32 %v1503, 16
      %v1564 = vrot.slane %v1562, 1
      %v1565 = vor.u32 %v1560, %v1564
      %v1567 = vshll.u32 %v1506, 16
      %v1569 = vrot.slane %v1567, 1
      %v1570 = vsel %vm1534, %v1565, %v1569
      %v1571 = vshrl.u32 %v1504, 16
      %v1573 = vor.u32 %v1571, %v1545
      %v1575 = vshll.u32 %v1507, 16
      %v1577 = vrot.slane %v1575, 1
      %v1578 = vsel %vm1534, %v1573, %v1577
      %v1579 = vshrl.u32 %v1505, 16
      %v1581 = vor.u32 %v1579, %v1557
      %v1583 = vshll.u32 %v1508, 16
      %v1585 = vrot.slane %v1583, 1
      %v1586 = vsel %vm1534, %v1581, %v1585
      %v1587 = vshrl.u32 %v1506, 16
      %v1589 = vor.u32 %v1587, %v1569
      %v1591 = vshll.u32 %v1509, 16
      %v1593 = vrot.slane %v1591, 1
      %v1594 = vsel %vm1534, %v1589, %v1593
      %v1595 = vshrl.u32 %v1507, 16
      %v1597 = vor.u32 %v1595, %v1577
      %v1599 = vshll.u32 %v1510, 16
      %v1601 = vrot.slane %v1599, 1
      %v1602 = vsel %vm1534, %v1597, %v1601
      %v1603 = vshrl.u32 %v1508, 16
      %v1605 = vor.u32 %v1603, %v1585
      %v1607 = vshll.u32 %v1511, 16
      %v1609 = vrot.slane %v1607, 1
      %v1610 = vsel %vm1534, %v1605, %v1609
      %v1611 = vshrl.u32 %v1509, 16
      %v1613 = vor.u32 %v1611, %v1593
      %v1615 = vshll.u32 %v1512, 16
      %v1617 = vrot.slane %v1615, 1
      %v1618 = vsel %vm1534, %v1613, %v1617
      %v1619 = vshrl.u32 %v1510, 16
      %v1621 = vor.u32 %v1619, %v1601
      %v1623 = vshll.u32 %v1513, 16
      %v1625 = vrot.slane %v1623, 1
      %v1626 = vsel %vm1534, %v1621, %v1625
      %v1627 = vshrl.u32 %v1511, 16
      %v1629 = vor.u32 %v1627, %v1609
      %v1631 = vshll.u32 %v1514, 16
      %v1633 = vrot.slane %v1631, 1
      %v1634 = vsel %vm1534, %v1629, %v1633
      %v1635 = vshrl.u32 %v1512, 16
      %v1637 = vor.u32 %v1635, %v1617
      %v1639 = vshll.u32 %v1515, 16
      %v1641 = vrot.slane %v1639, 1
      %v1642 = vsel %vm1534, %v1637, %v1641
      %v1643 = vshrl.u32 %v1513, 16
      %v1645 = vor.u32 %v1643, %v1625
      %v1647 = vshll.u32 %v1516, 16
      %v1649 = vrot.slane %v1647, 1
      %v1650 = vsel %vm1534, %v1645, %v1649
      %v1651 = vshrl.u32 %v1514, 16
      %v1653 = vor.u32 %v1651, %v1633
      %v1655 = vshll.u32 %v1517, 16
      %v1657 = vrot.slane %v1655, 1
      %v1658 = vsel %vm1534, %v1653, %v1657
      %v1659 = vshrl.u32 %v1515, 16
      %v1661 = vor.u32 %v1659, %v1641
      %v1663 = vshll.u32 %v1518, 16
      %v1665 = vrot.slane %v1663, 1
      %v1666 = vsel %vm1534, %v1661, %v1665
      %v1667 = vshrl.u32 %v1516, 16
      %v1669 = vor.u32 %v1667, %v1649
      %v1671 = vshll.u32 %v1519, 16
      %v1673 = vrot.slane %v1671, 1
      %v1674 = vsel %vm1534, %v1669, %v1673
      %v1675 = vshrl.u32 %v1517, 16
      %v1677 = vor.u32 %v1675, %v1657
      %v1679 = vshll.u32 %v1520, 16
      %v1681 = vrot.slane %v1679, 1
      %v1682 = vsel %vm1534, %v1677, %v1681
      %v1683 = vshrl.u32 %v1518, 16
      %v1685 = vor.u32 %v1683, %v1665
      %v1687 = vshll.u32 %v1521, 16
      %v1689 = vrot.slane %v1687, 1
      %v1690 = vsel %vm1534, %v1685, %v1689
      %v1691 = vshrl.u32 %v1519, 16
      %v1693 = vor.u32 %v1691, %v1673
      %v1695 = vshll.u32 %v1522, 16
      %v1697 = vrot.slane %v1695, 1
      %v1698 = vsel %vm1534, %v1693, %v1697
      %v1699 = vshrl.u32 %v1520, 16
      %v1701 = vor.u32 %v1699, %v1681
      %v1703 = vshll.u32 %v1523, 16
      %v1705 = vrot.slane %v1703, 1
      %v1706 = vsel %vm1534, %v1701, %v1705
      %v1707 = vshrl.u32 %v1521, 16
      %v1709 = vor.u32 %v1707, %v1689
      %v1711 = vshll.u32 %v1524, 16
      %v1713 = vrot.slane %v1711, 1
      %v1714 = vsel %vm1534, %v1709, %v1713
      %v1715 = vshrl.u32 %v1522, 16
      %v1717 = vor.u32 %v1715, %v1697
      %v1719 = vshll.u32 %v1525, 16
      %v1721 = vrot.slane %v1719, 1
      %v1722 = vsel %vm1534, %v1717, %v1721
      %v1723 = vshrl.u32 %v1523, 16
      %v1725 = vor.u32 %v1723, %v1705
      %v1727 = vshll.u32 %v1526, 16
      %v1729 = vrot.slane %v1727, 1
      %v1730 = vsel %vm1534, %v1725, %v1729
      %v1731 = vshrl.u32 %v1524, 16
      %v1733 = vor.u32 %v1731, %v1713
      %v1735 = vshll.u32 %v1527, 16
      %v1737 = vrot.slane %v1735, 1
      %v1738 = vsel %vm1534, %v1733, %v1737
      %v1739 = vshrl.u32 %v1525, 16
      %v1741 = vor.u32 %v1739, %v1721
      %v1743 = vshll.u32 %v1528, 16
      %v1745 = vrot.slane %v1743, 1
      %v1746 = vsel %vm1534, %v1741, %v1745
      %v1747 = vshrl.u32 %v1526, 16
      %v1749 = vor.u32 %v1747, %v1729
      %v1751 = vshll.u32 %v1529, 16
      %v1753 = vrot.slane %v1751, 1
      %v1754 = vsel %vm1534, %v1749, %v1753
      %v1755 = vshrl.u32 %v1527, 16
      %v1757 = vor.u32 %v1755, %v1737
      %v1759 = vshll.u32 %v1530, 16
      %v1761 = vrot.slane %v1759, 1
      %v1762 = vsel %vm1534, %v1757, %v1761
      %v1763 = vshrl.u32 %v1528, 16
      %v1765 = vor.u32 %v1763, %v1745
      %v1767 = vshll.u32 %v1531, 16
      %v1769 = vrot.slane %v1767, 1
      %v1770 = vsel %vm1534, %v1765, %v1769
      %v1771 = vshrl.u32 %v1529, 16
      %v1773 = vor.u32 %v1771, %v1753
      %v1775 = vshll.u32 %v1532, 16
      %v1777 = vrot.slane %v1775, 1
      %v1778 = vsel %vm1534, %v1773, %v1777
      %v1779 = vshrl.u32 %v1530, 16
      %v1781 = vor.u32 %v1779, %v1761
      %v1783 = vshll.u32 %v1533, 16
      %v1785 = vrot.slane %v1783, 1
      %v1786 = vsel %vm1534, %v1781, %v1785
      %v1787 = vshrl.u32 %v1531, 16
      %v1789 = vor.u32 %v1787, %v1769
      %v1790 = vshrl.u32 %v1532, 16
      %v1792 = vor.u32 %v1790, %v1777
      %v1793 = vshrl.u32 %v1533, 16
      %v1795 = vor.u32 %v1793, %v1785
      %v1877 = vunpack.c.l.b16 %v1343
      %v1878 = vunpack.c.l.b16 %v1344
      %v1879 = vunpack.c.l.b16 %v1345
      %v1880 = vunpack.c.l.b16 %v1346
      %v1881 = vunpack.c.l.b16 %v1347
      %v1882 = vunpack.c.l.b16 %v1348
      %v1883 = vunpack.c.l.b16 %v1349
      %v1884 = vunpack.c.l.b16 %v1350
      %v1885 = vunpack.c.l.b16 %v1351
      %v1886 = vunpack.c.l.b16 %v1352
      %v1887 = vunpack.c.l.b16 %v1353
      %v1888 = vunpack.c.l.b16 %v1354
      %v1889 = vunpack.c.l.b16 %v1355
      %v1890 = vunpack.c.l.b16 %v1356
      %v1891 = vunpack.c.l.b16 %v1357
      %v1892 = vunpack.c.l.b16 %v1358
      %v1893 = vunpack.c.l.b16 %v1359
      %v1894 = vunpack.c.l.b16 %v1360
      %v1895 = vunpack.c.l.b16 %v1361
      %v1896 = vunpack.c.l.b16 %v1362
      %v1897 = vunpack.c.l.b16 %v1363
      %v1898 = vunpack.c.l.b16 %v1364
      %v1899 = vunpack.c.l.b16 %v1365
      %v1900 = vunpack.c.l.b16 %v1366
      %v1901 = vunpack.c.l.b16 %v1367
      %v1902 = vunpack.c.l.b16 %v1368
      %v1903 = vunpack.c.l.b16 %v1369
      %v1904 = vunpack.c.l.b16 %v1370
      %v1905 = vunpack.c.l.b16 %v1371
      %v1906 = vunpack.c.l.b16 %v1372
      %v1907 = vunpack.c.l.b16 %v1373
      %v1908 = vunpack.c.l.b16 %v1374
      %v1909 = vunpack.c.l.b16 %v1375
      %v1910 = vunpack.c.l.b16 %v1376
      %v1911 = vunpack.c.l.b16 %v1377
      %v1912 = vunpack.c.l.b16 %v1378
      %v1913 = vunpack.c.l.b16 %v1379
      %v1914 = vunpack.c.l.b16 %v1380
      %v1915 = vunpack.c.l.b16 %v1381
      %v1916 = vunpack.c.l.b16 %v1382
      %v1917 = vunpack.c.l.b16 %v1383
      %v1918 = vunpack.c.l.b16 %v1384
      %v1919 = vunpack.c.l.b16 %v1385
      %v1920 = vunpack.c.l.b16 %v1386
      %v1921 = vunpack.c.l.b16 %v1387
      %v1922 = vunpack.c.l.b16 %v1388
      %v1923 = vunpack.c.l.b16 %v1389
      %v1924 = vunpack.c.l.b16 %v1390
      %v1925 = vpack.c.b16 %v1878, %v1877
      %v1926 = vpack.c.b16 %v1880, %v1879
      %v1927 = vpack.c.b16 %v1882, %v1881
      %v1928 = vpack.c.b16 %v1884, %v1883
      %v1929 = vpack.c.b16 %v1886, %v1885
      %v1930 = vpack.c.b16 %v1888, %v1887
      %v1931 = vpack.c.b16 %v1890, %v1889
      %v1932 = vpack.c.b16 %v1892, %v1891
      %v1933 = vpack.c.b16 %v1894, %v1893
      %v1934 = vpack.c.b16 %v1896, %v1895
      %v1935 = vpack.c.b16 %v1898, %v1897
      %v1936 = vpack.c.b16 %v1900, %v1899
      %v1937 = vpack.c.b16 %v1902, %v1901
      %v1938 = vpack.c.b16 %v1904, %v1903
      %v1939 = vpack.c.b16 %v1906, %v1905
      %v1940 = vpack.c.b16 %v1908, %v1907
      %v1941 = vpack.c.b16 %v1910, %v1909
      %v1942 = vpack.c.b16 %v1912, %v1911
      %v1943 = vpack.c.b16 %v1914, %v1913
      %v1944 = vpack.c.b16 %v1916, %v1915
      %v1945 = vpack.c.b16 %v1918, %v1917
      %v1946 = vpack.c.b16 %v1920, %v1919
      %v1947 = vpack.c.b16 %v1922, %v1921
      %v1948 = vpack.c.b16 %v1924, %v1923
      %1973 = vmatprep.subr.bf16.mxu0 0
      %1974 = vmatpush1.bf16.msra.mxu0 %v1925
      %1975 = vmatprep.subr.bf16.mxu0 0
      %1976 = vmatpush1.bf16.msra.mxu0 %v1926
      %1977 = vmatprep.subr.bf16.mxu0 0
      %1978 = vmatpush1.bf16.msra.mxu0 %v1927
      %1979 = vmatprep.subr.bf16.mxu0 0
      %1980 = vmatpush1.bf16.msra.mxu0 %v1928
      %1981 = vmatprep.subr.bf16.mxu0 0
      %1982 = vmatpush1.bf16.msra.mxu0 %v1929
      %1983 = vmatprep.subr.bf16.mxu0 0
      %1984 = vmatpush1.bf16.msra.mxu0 %v1930
      %1985 = vmatprep.subr.bf16.mxu0 0
      %1986 = vmatpush1.bf16.msra.mxu0 %v1931
      %1987 = vmatprep.subr.bf16.mxu0 0
      %1988 = vmatpush1.bf16.msra.mxu0 %v1932
      %1989 = vmatprep.subr.bf16.mxu0 0
      %1990 = vmatpush1.bf16.msra.mxu0 %v1933
      %1991 = vmatprep.subr.bf16.mxu0 0
      %1992 = vmatpush1.bf16.msra.mxu0 %v1934
      %1993 = vmatprep.subr.bf16.mxu0 0
      %1994 = vmatpush1.bf16.msra.mxu0 %v1935
      %1995 = vmatprep.subr.bf16.mxu0 0
      %1996 = vmatpush1.bf16.msra.mxu0 %v1936
      %1997 = vmatprep.subr.bf16.mxu0 0
      %1998 = vmatpush1.bf16.msra.mxu0 %v1937
      %1999 = vmatprep.subr.bf16.mxu0 0
      %2000 = vmatpush1.bf16.msra.mxu0 %v1938
      %2001 = vmatprep.subr.bf16.mxu0 0
      %2002 = vmatpush1.bf16.msra.mxu0 %v1939
      %2003 = vmatprep.subr.bf16.mxu0 0
      %2004 = vmatpush1.bf16.msra.mxu0 %v1940
      %2005 = vmatprep.mubr.bf16.mxu0 %v1558
      %2006 = vmatmul.mubr.bf16.gmra.mrb[0].mxu0 %v1546
      %v2007 = vpop.f32.mrb[0].mxu0
      %v2008 = vadd.f32 0.0, %v2007
      %v2009 = vpop.f32.mrb[0].mxu0
      %v2010 = vpop.f32.mrb[0].mxu0
      %v2011 = vadd.f32 0.0, %v2010
      %v2012 = vpop.f32.mrb[0].mxu0
      %2013 = vmatprep.mubr.bf16.mxu0 %v1586
      %2014 = vmatmul.mubr.bf16.gmra.mrb[0].mxu0 %v1578
      %v2015 = vpop.f32.mrb[0].mxu0
      %v2016 = vadd.f32 0.0, %v2015
      %v2017 = vpop.f32.mrb[0].mxu0
      %v2018 = vpop.f32.mrb[0].mxu0
      %v2019 = vadd.f32 0.0, %v2018
      %v2020 = vpop.f32.mrb[0].mxu0
      %2021 = vmatprep.mubr.bf16.mxu0 %v1610
      %2022 = vmatmul.mubr.bf16.gmra.mrb[0].mxu0 %v1602
      %v2023 = vpop.f32.mrb[0].mxu0
      %v2024 = vadd.f32 0.0, %v2023
      %v2025 = vpop.f32.mrb[0].mxu0
      %v2026 = vpop.f32.mrb[0].mxu0
      %v2027 = vadd.f32 0.0, %v2026
      %v2028 = vpop.f32.mrb[0].mxu0
      %2029 = vmatprep.mubr.bf16.mxu0 %v1634
      %2030 = vmatmul.mubr.bf16.gmra.mrb[0].mxu0 %v1626
      %v2031 = vpop.f32.mrb[0].mxu0
      %v2032 = vadd.f32 0.0, %v2031
      %v2033 = vpop.f32.mrb[0].mxu0
      %v2034 = vpop.f32.mrb[0].mxu0
      %v2035 = vadd.f32 0.0, %v2034
      %v2036 = vpop.f32.mrb[0].mxu0
      %2037 = vmatprep.mubr.bf16.mxu0 %v1658
      %2038 = vmatmul.mubr.bf16.gmra.mrb[0].mxu0 %v1650
      %v2039 = vpop.f32.mrb[0].mxu0
      %v2040 = vadd.f32 0.0, %v2039
      %v2041 = vpop.f32.mrb[0].mxu0
      %v2042 = vpop.f32.mrb[0].mxu0
      %v2043 = vadd.f32 0.0, %v2042
      %v2044 = vpop.f32.mrb[0].mxu0
      %2045 = vmatprep.mubr.bf16.mxu0 %v1682
      %2046 = vmatmul.mubr.bf16.gmra.mrb[0].mxu0 %v1674
      %v2047 = vpop.f32.mrb[0].mxu0
      %v2048 = vadd.f32 0.0, %v2047
      %v2049 = vpop.f32.mrb[0].mxu0
      %v2050 = vpop.f32.mrb[0].mxu0
      %v2051 = vadd.f32 0.0, %v2050
      %v2052 = vpop.f32.mrb[0].mxu0
      %2053 = vmatprep.mubr.bf16.mxu0 %v1706
      %2054 = vmatmul.mubr.bf16.gmra.mrb[0].mxu0 %v1698
      %v2055 = vpop.f32.mrb[0].mxu0
      %v2056 = vadd.f32 0.0, %v2055
      %v2057 = vpop.f32.mrb[0].mxu0
      %v2058 = vpop.f32.mrb[0].mxu0
      %v2059 = vadd.f32 0.0, %v2058
      %v2060 = vpop.f32.mrb[0].mxu0
      %2061 = vmatprep.mubr.bf16.mxu0 %v1730
      %2062 = vmatmul.mubr.bf16.gmra.mrb[0].mxu0 %v1722
      %v2063 = vpop.f32.mrb[0].mxu0
      %v2064 = vadd.f32 0.0, %v2063
      %v2065 = vpop.f32.mrb[0].mxu0
      %v2066 = vpop.f32.mrb[0].mxu0
      %v2067 = vadd.f32 0.0, %v2066
      %v2068 = vpop.f32.mrb[0].mxu0
      %2069 = vmatprep.mubr.bf16.mxu0 %v1754
      %2070 = vmatmul.mubr.bf16.gmra.mrb[0].mxu0 %v1746
      %v2071 = vpop.f32.mrb[0].mxu0
      %v2072 = vadd.f32 0.0, %v2071
      %v2073 = vpop.f32.mrb[0].mxu0
      %v2074 = vpop.f32.mrb[0].mxu0
      %v2075 = vadd.f32 0.0, %v2074
      %v2076 = vpop.f32.mrb[0].mxu0
      %2077 = vmatprep.mubr.bf16.mxu0 %v1778
      %2078 = vmatmul.mubr.bf16.gmra.mrb[0].mxu0 %v1770
      %v2079 = vpop.f32.mrb[0].mxu0
      %v2080 = vadd.f32 0.0, %v2079
      %v2081 = vpop.f32.mrb[0].mxu0
      %v2082 = vpop.f32.mrb[0].mxu0
      %v2083 = vadd.f32 0.0, %v2082
      %v2084 = vpop.f32.mrb[0].mxu0
      %2085 = vmatprep.mubr.bf16.mxu0 %v1792
      %2086 = vmatmul.mubr.bf16.gmra.mrb[0].mxu0 %v1789
      %v2087 = vpop.f32.mrb[0].mxu0
      %v2088 = vadd.f32 0.0, %v2087
      %v2089 = vpop.f32.mrb[0].mxu0
      %v2090 = vpop.f32.mrb[0].mxu0
      %v2091 = vadd.f32 0.0, %v2090
      %v2092 = vpop.f32.mrb[0].mxu0
      %2093 = vdwg.mxu0
      %2094 = vmatprep.subr.bf16.mxu0 0
      %2095 = vmatpush1.bf16.msra.mxu0 %v1941
      %2096 = vmatprep.subr.bf16.mxu0 0
      %2097 = vmatpush1.bf16.msra.mxu0 %v1942
      %2098 = vmatprep.subr.bf16.mxu0 0
      %2099 = vmatpush1.bf16.msra.mxu0 %v1943
      %2100 = vmatprep.subr.bf16.mxu0 0
      %2101 = vmatpush1.bf16.msra.mxu0 %v1944
      %2102 = vmatprep.subr.bf16.mxu0 0
      %2103 = vmatpush1.bf16.msra.mxu0 %v1945
      %2104 = vmatprep.subr.bf16.mxu0 0
      %2105 = vmatpush1.bf16.msra.mxu0 %v1946
      %2106 = vmatprep.subr.bf16.mxu0 0
      %2107 = vmatpush1.bf16.msra.mxu0 %v1947
      %2108 = vmatprep.subr.bf16.mxu0 0
      %2109 = vmatpush1.bf16.msra.mxu0 %v1948
      %2110 = vmatprep.subr.bf16.mxu0 0
      %2111 = vmatpush1.bf16.msra.mxu0 0
      %2112 = vmatprep.subr.bf16.mxu0 0
      %2113 = vmatpush1.bf16.msra.mxu0 0
      %2114 = vmatprep.subr.bf16.mxu0 0
      %2115 = vmatpush1.bf16.msra.mxu0 0
      %2116 = vmatprep.subr.bf16.mxu0 0
      %2117 = vmatpush1.bf16.msra.mxu0 0
      %2118 = vmatprep.subr.bf16.mxu0 0
      %2119 = vmatpush1.bf16.msra.mxu0 0
      %2120 = vmatprep.subr.bf16.mxu0 0
      %2121 = vmatpush1.bf16.msra.mxu0 0
      %2122 = vmatprep.subr.bf16.mxu0 0
      %2123 = vmatpush1.bf16.msra.mxu0 0
      %2124 = vmatprep.subr.bf16.mxu0 0
      %2125 = vmatpush1.bf16.msra.mxu0 0
      %2126 = vmatprep.mubr.bf16.mxu0 0
      %2127 = vmatmul.mubr.bf16.gmra.mrb[0].mxu0 %v1570
      %v2128 = vpop.f32.mrb[0].mxu0
      %v2129 = vadd.f32 %v2008, %v2128
      %v2130 = vpop.f32.mrb[0].mxu0
      %v2131 = vpop.f32.mrb[0].mxu0
      %v2132 = vadd.f32 %v2011, %v2131
      %v2133 = vpop.f32.mrb[0].mxu0
      %2134 = vmatprep.mubr.bf16.mxu0 0
      %2135 = vmatmul.mubr.bf16.gmra.mrb[0].mxu0 %v1594
      %v2136 = vpop.f32.mrb[0].mxu0
      %v2137 = vadd.f32 %v2016, %v2136
      %v2138 = vpop.f32.mrb[0].mxu0
      %v2139 = vpop.f32.mrb[0].mxu0
      %v2140 = vadd.f32 %v2019, %v2139
      %v2141 = vpop.f32.mrb[0].mxu0
      %2142 = vmatprep.mubr.bf16.mxu0 0
      %2143 = vmatmul.mubr.bf16.gmra.mrb[0].mxu0 %v1618
      %v2144 = vpop.f32.mrb[0].mxu0
      %v2145 = vadd.f32 %v2024, %v2144
      %v2146 = vpop.f32.mrb[0].mxu0
      %v2147 = vpop.f32.mrb[0].mxu0
      %v2148 = vadd.f32 %v2027, %v2147
      %v2149 = vpop.f32.mrb[0].mxu0
      %2150 = vmatprep.mubr.bf16.mxu0 0
      %2151 = vmatmul.mubr.bf16.gmra.mrb[0].mxu0 %v1642
      %v2152 = vpop.f32.mrb[0].mxu0
      %v2153 = vadd.f32 %v2032, %v2152
      %v2154 = vpop.f32.mrb[0].mxu0
      %v2155 = vpop.f32.mrb[0].mxu0
      %v2156 = vadd.f32 %v2035, %v2155
      %v2157 = vpop.f32.mrb[0].mxu0
      %2158 = vmatprep.mubr.bf16.mxu0 0
      %2159 = vmatmul.mubr.bf16.gmra.mrb[0].mxu0 %v1666
      %v2160 = vpop.f32.mrb[0].mxu0
      %v2161 = vadd.f32 %v2040, %v2160
      %v2162 = vpop.f32.mrb[0].mxu0
      %v2163 = vpop.f32.mrb[0].mxu0
      %v2164 = vadd.f32 %v2043, %v2163
      %v2165 = vpop.f32.mrb[0].mxu0
      %2166 = vmatprep.mubr.bf16.mxu0 0
      %2167 = vmatmul.mubr.bf16.gmra.mrb[0].mxu0 %v1690
      %v2168 = vpop.f32.mrb[0].mxu0
      %v2169 = vadd.f32 %v2048, %v2168
      %v2170 = vpop.f32.mrb[0].mxu0
      %v2171 = vpop.f32.mrb[0].mxu0
      %v2172 = vadd.f32 %v2051, %v2171
      %v2173 = vpop.f32.mrb[0].mxu0
      %2174 = vmatprep.mubr.bf16.mxu0 0
      %2175 = vmatmul.mubr.bf16.gmra.mrb[0].mxu0 %v1714
      %v2176 = vpop.f32.mrb[0].mxu0
      %v2177 = vadd.f32 %v2056, %v2176
      %v2178 = vpop.f32.mrb[0].mxu0
      %v2179 = vpop.f32.mrb[0].mxu0
      %v2180 = vadd.f32 %v2059, %v2179
      %v2181 = vpop.f32.mrb[0].mxu0
      %2182 = vmatprep.mubr.bf16.mxu0 0
      %2183 = vmatmul.mubr.bf16.gmra.mrb[0].mxu0 %v1738
      %v2184 = vpop.f32.mrb[0].mxu0
      %v2185 = vadd.f32 %v2064, %v2184
      %v2186 = vpop.f32.mrb[0].mxu0
      %v2187 = vpop.f32.mrb[0].mxu0
      %v2188 = vadd.f32 %v2067, %v2187
      %v2189 = vpop.f32.mrb[0].mxu0
      %2190 = vmatprep.mubr.bf16.mxu0 0
      %2191 = vmatmul.mubr.bf16.gmra.mrb[0].mxu0 %v1762
      %v2192 = vpop.f32.mrb[0].mxu0
      %v2193 = vadd.f32 %v2072, %v2192
      %v2194 = vpop.f32.mrb[0].mxu0
      %v2195 = vpop.f32.mrb[0].mxu0
      %v2196 = vadd.f32 %v2075, %v2195
      %v2197 = vpop.f32.mrb[0].mxu0
      %2198 = vmatprep.mubr.bf16.mxu0 0
      %2199 = vmatmul.mubr.bf16.gmra.mrb[0].mxu0 %v1786
      %v2200 = vpop.f32.mrb[0].mxu0
      %v2201 = vadd.f32 %v2080, %v2200
      %v2202 = vpop.f32.mrb[0].mxu0
      %v2203 = vpop.f32.mrb[0].mxu0
      %v2204 = vadd.f32 %v2083, %v2203
      %v2205 = vpop.f32.mrb[0].mxu0
      %2206 = vmatprep.mubr.bf16.mxu0 0
      %2207 = vmatmul.mubr.bf16.gmra.mrb[0].mxu0 %v1795
      %v2208 = vpop.f32.mrb[0].mxu0
      %v2209 = vadd.f32 %v2088, %v2208
      %v2210 = vpop.f32.mrb[0].mxu0
      %v2211 = vpop.f32.mrb[0].mxu0
      %v2212 = vadd.f32 %v2091, %v2211
      %v2213 = vpop.f32.mrb[0].mxu0
      %2214 = vdwg.mxu0
      %v2296 = vunpack.c.l.b16 %v1294
      %v2297 = vunpack.c.l.b16 %v1295
      %v2298 = vunpack.c.l.b16 %v1296
      %v2299 = vunpack.c.l.b16 %v1297
      %v2300 = vunpack.c.l.b16 %v1298
      %v2301 = vunpack.c.l.b16 %v1299
      %v2302 = vunpack.c.l.b16 %v1300
      %v2303 = vunpack.c.l.b16 %v1301
      %v2304 = vunpack.c.l.b16 %v1302
      %v2305 = vunpack.c.l.b16 %v1303
      %v2306 = vunpack.c.l.b16 %v1304
      %v2307 = vunpack.c.l.b16 %v1305
      %v2308 = vunpack.c.l.b16 %v1306
      %v2309 = vunpack.c.l.b16 %v1307
      %v2310 = vunpack.c.l.b16 %v1308
      %v2311 = vunpack.c.l.b16 %v1309
      %v2312 = vunpack.c.l.b16 %v1310
      %v2313 = vunpack.c.l.b16 %v1311
      %v2314 = vunpack.c.l.b16 %v1312
      %v2315 = vunpack.c.l.b16 %v1313
      %v2316 = vunpack.c.l.b16 %v1314
      %v2317 = vunpack.c.l.b16 %v1315
      %v2318 = vunpack.c.l.b16 %v1316
      %v2319 = vunpack.c.l.b16 %v1317
      %v2320 = vunpack.c.l.b16 %v1318
      %v2321 = vunpack.c.l.b16 %v1319
      %v2322 = vunpack.c.l.b16 %v1320
      %v2323 = vunpack.c.l.b16 %v1321
      %v2324 = vunpack.c.l.b16 %v1322
      %v2325 = vunpack.c.l.b16 %v1323
      %v2326 = vunpack.c.l.b16 %v1324
      %v2327 = vunpack.c.l.b16 %v1325
      %v2328 = vunpack.c.l.b16 %v1326
      %v2329 = vunpack.c.l.b16 %v1327
      %v2330 = vunpack.c.l.b16 %v1328
      %v2331 = vunpack.c.l.b16 %v1329
      %v2332 = vunpack.c.l.b16 %v1330
      %v2333 = vunpack.c.l.b16 %v1331
      %v2334 = vunpack.c.l.b16 %v1332
      %v2335 = vunpack.c.l.b16 %v1333
      %v2336 = vunpack.c.l.b16 %v1334
      %v2337 = vunpack.c.l.b16 %v1335
      %v2338 = vunpack.c.l.b16 %v1336
      %v2339 = vunpack.c.l.b16 %v1337
      %v2340 = vunpack.c.l.b16 %v1338
      %v2341 = vunpack.c.l.b16 %v1339
      %v2342 = vunpack.c.l.b16 %v1340
      %v2343 = vunpack.c.l.b16 %v1341
      %v2344 = vpack.c.b16 %v2297, %v2296
      %v2345 = vpack.c.b16 %v2299, %v2298
      %v2346 = vpack.c.b16 %v2301, %v2300
      %v2347 = vpack.c.b16 %v2303, %v2302
      %v2348 = vpack.c.b16 %v2305, %v2304
      %v2349 = vpack.c.b16 %v2307, %v2306
      %v2350 = vpack.c.b16 %v2309, %v2308
      %v2351 = vpack.c.b16 %v2311, %v2310
      %v2352 = vpack.c.b16 %v2313, %v2312
      %v2353 = vpack.c.b16 %v2315, %v2314
      %v2354 = vpack.c.b16 %v2317, %v2316
      %v2355 = vpack.c.b16 %v2319, %v2318
      %v2356 = vpack.c.b16 %v2321, %v2320
      %v2357 = vpack.c.b16 %v2323, %v2322
      %v2358 = vpack.c.b16 %v2325, %v2324
      %v2359 = vpack.c.b16 %v2327, %v2326
      %v2360 = vpack.c.b16 %v2329, %v2328
      %v2361 = vpack.c.b16 %v2331, %v2330
      %v2362 = vpack.c.b16 %v2333, %v2332
      %v2363 = vpack.c.b16 %v2335, %v2334
      %v2364 = vpack.c.b16 %v2337, %v2336
      %v2365 = vpack.c.b16 %v2339, %v2338
      %v2366 = vpack.c.b16 %v2341, %v2340
      %v2367 = vpack.c.b16 %v2343, %v2342
      %2392 = vmatprep.subr.bf16.mxu0 0
      %2393 = vmatpush1.bf16.msra.mxu0 %v2344
      %2394 = vmatprep.subr.bf16.mxu0 0
      %2395 = vmatpush1.bf16.msra.mxu0 %v2345
      %2396 = vmatprep.subr.bf16.mxu0 0
      %2397 = vmatpush1.bf16.msra.mxu0 %v2346
      %2398 = vmatprep.subr.bf16.mxu0 0
      %2399 = vmatpush1.bf16.msra.mxu0 %v2347
      %2400 = vmatprep.subr.bf16.mxu0 0
      %2401 = vmatpush1.bf16.msra.mxu0 %v2348
      %2402 = vmatprep.subr.bf16.mxu0 0
      %2403 = vmatpush1.bf16.msra.mxu0 %v2349
      %2404 = vmatprep.subr.bf16.mxu0 0
      %2405 = vmatpush1.bf16.msra.mxu0 %v2350
      %2406 = vmatprep.subr.bf16.mxu0 0
      %2407 = vmatpush1.bf16.msra.mxu0 %v2351
      %2408 = vmatprep.subr.bf16.mxu0 0
      %2409 = vmatpush1.bf16.msra.mxu0 %v2352
      %2410 = vmatprep.subr.bf16.mxu0 0
      %2411 = vmatpush1.bf16.msra.mxu0 %v2353
      %2412 = vmatprep.subr.bf16.mxu0 0
      %2413 = vmatpush1.bf16.msra.mxu0 %v2354
      %2414 = vmatprep.subr.bf16.mxu0 0
      %2415 = vmatpush1.bf16.msra.mxu0 %v2355
      %2416 = vmatprep.subr.bf16.mxu0 0
      %2417 = vmatpush1.bf16.msra.mxu0 %v2356
      %2418 = vmatprep.subr.bf16.mxu0 0
      %2419 = vmatpush1.bf16.msra.mxu0 %v2357
      %2420 = vmatprep.subr.bf16.mxu0 0
      %2421 = vmatpush1.bf16.msra.mxu0 %v2358
      %2422 = vmatprep.subr.bf16.mxu0 0
      %2423 = vmatpush1.bf16.msra.mxu0 %v2359
      %2424 = vmatprep.mubr.bf16.mxu0 %v1502
      %2425 = vmatmul.mubr.bf16.gmra.mrb[0].mxu0 %v1501
      %v2426 = vpop.f32.mrb[0].mxu0
      %v2427 = vadd.f32 %v2129, %v2426
      %v2428 = vpop.f32.mrb[0].mxu0
      %v2429 = vpop.f32.mrb[0].mxu0
      %v2430 = vadd.f32 %v2132, %v2429
      %v2431 = vpop.f32.mrb[0].mxu0
      %2432 = vmatprep.mubr.bf16.mxu0 %v1505
      %2433 = vmatmul.mubr.bf16.gmra.mrb[0].mxu0 %v1504
      %v2434 = vpop.f32.mrb[0].mxu0
      %v2435 = vadd.f32 %v2137, %v2434
      %v2436 = vpop.f32.mrb[0].mxu0
      %v2437 = vpop.f32.mrb[0].mxu0
      %v2438 = vadd.f32 %v2140, %v2437
      %v2439 = vpop.f32.mrb[0].mxu0
      %2440 = vmatprep.mubr.bf16.mxu0 %v1508
      %2441 = vmatmul.mubr.bf16.gmra.mrb[0].mxu0 %v1507
      %v2442 = vpop.f32.mrb[0].mxu0
      %v2443 = vadd.f32 %v2145, %v2442
      %v2444 = vpop.f32.mrb[0].mxu0
      %v2445 = vpop.f32.mrb[0].mxu0
      %v2446 = vadd.f32 %v2148, %v2445
      %v2447 = vpop.f32.mrb[0].mxu0
      %2448 = vmatprep.mubr.bf16.mxu0 %v1511
      %2449 = vmatmul.mubr.bf16.gmra.mrb[0].mxu0 %v1510
      %v2450 = vpop.f32.mrb[0].mxu0
      %v2451 = vadd.f32 %v2153, %v2450
      %v2452 = vpop.f32.mrb[0].mxu0
      %v2453 = vpop.f32.mrb[0].mxu0
      %v2454 = vadd.f32 %v2156, %v2453
      %v2455 = vpop.f32.mrb[0].mxu0
      %2456 = vmatprep.mubr.bf16.mxu0 %v1514
      %2457 = vmatmul.mubr.bf16.gmra.mrb[0].mxu0 %v1513
      %v2458 = vpop.f32.mrb[0].mxu0
      %v2459 = vadd.f32 %v2161, %v2458
      %v2460 = vpop.f32.mrb[0].mxu0
      %v2461 = vpop.f32.mrb[0].mxu0
      %v2462 = vadd.f32 %v2164, %v2461
      %v2463 = vpop.f32.mrb[0].mxu0
      %2464 = vmatprep.mubr.bf16.mxu0 %v1517
      %2465 = vmatmul.mubr.bf16.gmra.mrb[0].mxu0 %v1516
      %v2466 = vpop.f32.mrb[0].mxu0
      %v2467 = vadd.f32 %v2169, %v2466
      %v2468 = vpop.f32.mrb[0].mxu0
      %v2469 = vpop.f32.mrb[0].mxu0
      %v2470 = vadd.f32 %v2172, %v2469
      %v2471 = vpop.f32.mrb[0].mxu0
      %2472 = vmatprep.mubr.bf16.mxu0 %v1520
      %2473 = vmatmul.mubr.bf16.gmra.mrb[0].mxu0 %v1519
      %v2474 = vpop.f32.mrb[0].mxu0
      %v2475 = vadd.f32 %v2177, %v2474
      %v2476 = vpop.f32.mrb[0].mxu0
      %v2477 = vpop.f32.mrb[0].mxu0
      %v2478 = vadd.f32 %v2180, %v2477
      %v2479 = vpop.f32.mrb[0].mxu0
      %2480 = vmatprep.mubr.bf16.mxu0 %v1523
      %2481 = vmatmul.mubr.bf16.gmra.mrb[0].mxu0 %v1522
      %v2482 = vpop.f32.mrb[0].mxu0
      %v2483 = vadd.f32 %v2185, %v2482
      %v2484 = vpop.f32.mrb[0].mxu0
      %v2485 = vpop.f32.mrb[0].mxu0
      %v2486 = vadd.f32 %v2188, %v2485
      %v2487 = vpop.f32.mrb[0].mxu0
      %2488 = vmatprep.mubr.bf16.mxu0 %v1526
      %2489 = vmatmul.mubr.bf16.gmra.mrb[0].mxu0 %v1525
      %v2490 = vpop.f32.mrb[0].mxu0
      %v2491 = vadd.f32 %v2193, %v2490
      %v2492 = vpop.f32.mrb[0].mxu0
      %v2493 = vpop.f32.mrb[0].mxu0
      %v2494 = vadd.f32 %v2196, %v2493
      %v2495 = vpop.f32.mrb[0].mxu0
      %2496 = vmatprep.mubr.bf16.mxu0 %v1529
      %2497 = vmatmul.mubr.bf16.gmra.mrb[0].mxu0 %v1528
      %v2498 = vpop.f32.mrb[0].mxu0
      %v2499 = vadd.f32 %v2201, %v2498
      %v2500 = vpop.f32.mrb[0].mxu0
      %v2501 = vpop.f32.mrb[0].mxu0
      %v2502 = vadd.f32 %v2204, %v2501
      %v2503 = vpop.f32.mrb[0].mxu0
      %2504 = vmatprep.mubr.bf16.mxu0 %v1532
      %2505 = vmatmul.mubr.bf16.gmra.mrb[0].mxu0 %v1531
      %v2506 = vpop.f32.mrb[0].mxu0
      %v2507 = vadd.f32 %v2209, %v2506
      %v2508 = vpop.f32.mrb[0].mxu0
      %v2509 = vpop.f32.mrb[0].mxu0
      %v2510 = vadd.f32 %v2212, %v2509
      %v2511 = vpop.f32.mrb[0].mxu0
      %2512 = vdwg.mxu0
      %2513 = vmatprep.subr.bf16.mxu0 0
      %2514 = vmatpush1.bf16.msra.mxu0 %v2360
      %2515 = vmatprep.subr.bf16.mxu0 0
      %2516 = vmatpush1.bf16.msra.mxu0 %v2361
      %2517 = vmatprep.subr.bf16.mxu0 0
      %2518 = vmatpush1.bf16.msra.mxu0 %v2362
      %2519 = vmatprep.subr.bf16.mxu0 0
      %2520 = vmatpush1.bf16.msra.mxu0 %v2363
      %2521 = vmatprep.subr.bf16.mxu0 0
      %2522 = vmatpush1.bf16.msra.mxu0 %v2364
      %2523 = vmatprep.subr.bf16.mxu0 0
      %2524 = vmatpush1.bf16.msra.mxu0 %v2365
      %2525 = vmatprep.subr.bf16.mxu0 0
      %2526 = vmatpush1.bf16.msra.mxu0 %v2366
      %2527 = vmatprep.subr.bf16.mxu0 0
      %2528 = vmatpush1.bf16.msra.mxu0 %v2367
      %2529 = vmatprep.subr.bf16.mxu0 0
      %2530 = vmatpush1.bf16.msra.mxu0 0
      %2531 = vmatprep.subr.bf16.mxu0 0
      %2532 = vmatpush1.bf16.msra.mxu0 0
      %2533 = vmatprep.subr.bf16.mxu0 0
      %2534 = vmatpush1.bf16.msra.mxu0 0
      %2535 = vmatprep.subr.bf16.mxu0 0
      %2536 = vmatpush1.bf16.msra.mxu0 0
      %2537 = vmatprep.subr.bf16.mxu0 0
      %2538 = vmatpush1.bf16.msra.mxu0 0
      %2539 = vmatprep.subr.bf16.mxu0 0
      %2540 = vmatpush1.bf16.msra.mxu0 0
      %2541 = vmatprep.subr.bf16.mxu0 0
      %2542 = vmatpush1.bf16.msra.mxu0 0
      %2543 = vmatprep.subr.bf16.mxu0 0
      %2544 = vmatpush1.bf16.msra.mxu0 0
      %2545 = vmatprep.mubr.bf16.mxu0 0
      %2546 = vmatmul.mubr.bf16.gmra.mrb[0].mxu0 %v1503
      %v2547 = vpop.f32.mrb[0].mxu0
      %v2548 = vadd.f32 %v2427, %v2547
      %v2549 = vpop.f32.mrb[0].mxu0
      %v2550 = vpop.f32.mrb[0].mxu0
      %v2551 = vadd.f32 %v2430, %v2550
      %v2552 = vpop.f32.mrb[0].mxu0
      %2553 = vmatprep.mubr.bf16.mxu0 0
      %2554 = vmatmul.mubr.bf16.gmra.mrb[0].mxu0 %v1506
      %v2555 = vpop.f32.mrb[0].mxu0
      %v2556 = vadd.f32 %v2435, %v2555
      %v2557 = vpop.f32.mrb[0].mxu0
      %v2558 = vpop.f32.mrb[0].mxu0
      %v2559 = vadd.f32 %v2438, %v2558
      %v2560 = vpop.f32.mrb[0].mxu0
      %2561 = vmatprep.mubr.bf16.mxu0 0
      %2562 = vmatmul.mubr.bf16.gmra.mrb[0].mxu0 %v1509
      %v2563 = vpop.f32.mrb[0].mxu0
      %v2564 = vadd.f32 %v2443, %v2563
      %v2565 = vpop.f32.mrb[0].mxu0
      %v2566 = vpop.f32.mrb[0].mxu0
      %v2567 = vadd.f32 %v2446, %v2566
      %v2568 = vpop.f32.mrb[0].mxu0
      %2569 = vmatprep.mubr.bf16.mxu0 0
      %2570 = vmatmul.mubr.bf16.gmra.mrb[0].mxu0 %v1512
      %v2571 = vpop.f32.mrb[0].mxu0
      %v2572 = vadd.f32 %v2451, %v2571
      %v2573 = vpop.f32.mrb[0].mxu0
      %v2574 = vpop.f32.mrb[0].mxu0
      %v2575 = vadd.f32 %v2454, %v2574
      %v2576 = vpop.f32.mrb[0].mxu0
      %2577 = vmatprep.mubr.bf16.mxu0 0
      %2578 = vmatmul.mubr.bf16.gmra.mrb[0].mxu0 %v1515
      %v2579 = vpop.f32.mrb[0].mxu0
      %v2580 = vadd.f32 %v2459, %v2579
      %v2581 = vpop.f32.mrb[0].mxu0
      %v2582 = vpop.f32.mrb[0].mxu0
      %v2583 = vadd.f32 %v2462, %v2582
      %v2584 = vpop.f32.mrb[0].mxu0
      %2585 = vmatprep.mubr.bf16.mxu0 0
      %2586 = vmatmul.mubr.bf16.gmra.mrb[0].mxu0 %v1518
      %v2587 = vpop.f32.mrb[0].mxu0
      %v2588 = vadd.f32 %v2467, %v2587
      %v2589 = vpop.f32.mrb[0].mxu0
      %v2590 = vpop.f32.mrb[0].mxu0
      %v2591 = vadd.f32 %v2470, %v2590
      %v2592 = vpop.f32.mrb[0].mxu0
      %2593 = vmatprep.mubr.bf16.mxu0 0
      %2594 = vmatmul.mubr.bf16.gmra.mrb[0].mxu0 %v1521
      %v2595 = vpop.f32.mrb[0].mxu0
      %v2596 = vadd.f32 %v2475, %v2595
      %v2597 = vpop.f32.mrb[0].mxu0
      %v2598 = vpop.f32.mrb[0].mxu0
      %v2599 = vadd.f32 %v2478, %v2598
      %v2600 = vpop.f32.mrb[0].mxu0
      %2601 = vmatprep.mubr.bf16.mxu0 0
      %2602 = vmatmul.mubr.bf16.gmra.mrb[0].mxu0 %v1524
      %v2603 = vpop.f32.mrb[0].mxu0
      %v2604 = vadd.f32 %v2483, %v2603
      %v2605 = vpop.f32.mrb[0].mxu0
      %v2606 = vpop.f32.mrb[0].mxu0
      %v2607 = vadd.f32 %v2486, %v2606
      %v2608 = vpop.f32.mrb[0].mxu0
      %2609 = vmatprep.mubr.bf16.mxu0 0
      %2610 = vmatmul.mubr.bf16.gmra.mrb[0].mxu0 %v1527
      %v2611 = vpop.f32.mrb[0].mxu0
      %v2612 = vadd.f32 %v2491, %v2611
      %v2613 = vpop.f32.mrb[0].mxu0
      %v2614 = vpop.f32.mrb[0].mxu0
      %v2615 = vadd.f32 %v2494, %v2614
      %v2616 = vpop.f32.mrb[0].mxu0
      %2617 = vmatprep.mubr.bf16.mxu0 0
      %2618 = vmatmul.mubr.bf16.gmra.mrb[0].mxu0 %v1530
      %v2619 = vpop.f32.mrb[0].mxu0
      %v2620 = vadd.f32 %v2499, %v2619
      %v2621 = vpop.f32.mrb[0].mxu0
      %v2622 = vpop.f32.mrb[0].mxu0
      %v2623 = vadd.f32 %v2502, %v2622
      %v2624 = vpop.f32.mrb[0].mxu0
      %2625 = vmatprep.mubr.bf16.mxu0 0
      %2626 = vmatmul.mubr.bf16.gmra.mrb[0].mxu0 %v1533
      %v2627 = vpop.f32.mrb[0].mxu0
      %v2628 = vadd.f32 %v2507, %v2627
      %v2629 = vpop.f32.mrb[0].mxu0
      %v2630 = vpop.f32.mrb[0].mxu0
      %v2631 = vadd.f32 %v2510, %v2630
      %v2632 = vpop.f32.mrb[0].mxu0
      %2633 = vdwg.mxu0
      %v2634 = vld [vmem:[#allocation2] sm:$0xee]
      %v2635 = vld [vmem:[#allocation2 + $0x8] sm:$0xe]
      %v2636 = vld [vmem:[#allocation2 + $0xfc] sm:$0x33]
      %v2637 = vld [vmem:[#allocation2 + $0x104] sm:$0x3]
      %s2638 = scalar_lea.vmem %s1, 384
      %v2639 = vld [vmem:[%s2638] sm:$0xf]
      %v2640 = vld [vmem:[%s2638 + $0x4] sm:$0xf]
      %v2641 = vld [vmem:[%s2638 + $0x8] sm:$0xf]
      %v2642 = vld [vmem:[%s2638 + $0xc] sm:$0xf]
      %v2643 = vld [vmem:[%s2638 + $0x10] sm:$0xf]
      %v2644 = vld [vmem:[%s2638 + $0x14] sm:$0xf]
      %v2645 = vld [vmem:[%s2638 + $0x18] sm:$0xf]
      %v2646 = vld [vmem:[%s2638 + $0x1c] sm:$0xf]
      %v2647 = vld [vmem:[%s2638 + $0x20] sm:$0xf]
      %v2648 = vld [vmem:[%s2638 + $0x24] sm:$0xf]
      %v2649 = vld [vmem:[%s2638 + $0x28] sm:$0xf]
      %v2650 = vld [vmem:[%s2638 + $0x2c] sm:$0xf]
      %v2651 = vld [vmem:[%s2638 + $0x30] sm:$0xf]
      %v2652 = vld [vmem:[%s2638 + $0x34] sm:$0xf]
      %v2653 = vld [vmem:[%s2638 + $0x38] sm:$0xf]
      %v2654 = vld [vmem:[%s2638 + $0x3c] sm:$0xf]
      %v2655 = vld [vmem:[%s2638 + $0x40] sm:$0xf]
      %v2656 = vld [vmem:[%s2638 + $0x44] sm:$0xf]
      %v2657 = vld [vmem:[%s2638 + $0x48] sm:$0xf]
      %v2658 = vld [vmem:[%s2638 + $0x4c] sm:$0xf]
      %v2659 = vld [vmem:[%s2638 + $0x50] sm:$0xf]
      %v2660 = vld [vmem:[%s2638 + $0x54] sm:$0xf]
      %v2661 = vld [vmem:[%s2638 + $0x58] sm:$0xf]
      %v2662 = vld [vmem:[%s2638 + $0x5c] sm:$0xf]
      %v2663 = vld [vmem:[%s2638 + $0x60] sm:$0xf]
      %v2664 = vld [vmem:[%s2638 + $0x64] sm:$0xf]
      %v2665 = vld [vmem:[%s2638 + $0x68] sm:$0xf]
      %v2666 = vld [vmem:[%s2638 + $0x6c] sm:$0xf]
      %v2667 = vld [vmem:[%s2638 + $0x70] sm:$0xf]
      %v2668 = vld [vmem:[%s2638 + $0x74] sm:$0xf]
      %v2669 = vld [vmem:[%s2638 + $0x78] sm:$0xf]
      %v2670 = vld [vmem:[%s2638 + $0x7c] sm:$0xf]
      %v2671 = vld [vmem:[%s2638 + $0x80] sm:$0xf]
      %v2672 = vld [vmem:[%s2638 + $0x84] sm:$0xf]
      %v2673 = vld [vmem:[%s2638 + $0x88] sm:$0xf]
      %v2674 = vld [vmem:[%s2638 + $0x8c] sm:$0xf]
      %v2675 = vld [vmem:[%s2638 + $0x90] sm:$0xf]
      %v2676 = vld [vmem:[%s2638 + $0x94] sm:$0xf]
      %v2677 = vld [vmem:[%s2638 + $0x98] sm:$0xf]
      %v2678 = vld [vmem:[%s2638 + $0x9c] sm:$0xf]
      %v2679 = vld [vmem:[%s2638 + $0xa0] sm:$0xf]
      %v2680 = vld [vmem:[%s2638 + $0xa4] sm:$0xf]
      %v2681 = vld [vmem:[%s2638 + $0xa8] sm:$0xf]
      %v2682 = vld [vmem:[%s2638 + $0xac] sm:$0xf]
      %v2683 = vld [vmem:[%s2638 + $0xb0] sm:$0xf]
      %v2684 = vld [vmem:[%s2638 + $0xb4] sm:$0xf]
      %v2685 = vld [vmem:[%s2638 + $0xb8] sm:$0xf]
      %v2686 = vld [vmem:[%s2638 + $0xbc] sm:$0xf]
      %v2691 = vunpack.c.l.b16 %v2634
      %v2692 = vunpack.c.h.b16 %v2634
      %v2693 = vunpack.c.l.b16 %v2635
      %v2694 = vunpack.c.l.b16 %v2636
      %v2695 = vunpack.c.h.b16 %v2636
      %v2696 = vunpack.c.l.b16 %v2637
      %v2697 = vpack.c.b16 %v1438, %v2691
      %v2698 = vpack.c.b16 %v1439, %v2692
      %v2699 = vpack.c.b16 %v1440, %v2693
      %v2700 = vpack.c.b16 %v2694, %v1495
      %v2701 = vpack.c.b16 %v2695, %v1496
      %v2702 = vpack.c.b16 %v2696, %v1497
      %vm2703 = vcmask 1046528
      %v2704 = vrot.slane %v2697, 1
      %v2705 = vrot.slane %v1504, 1
      %v2706 = vsel %vm2703, %v2704, %v2705
      %v2707 = vrot.slane %v2698, 1
      %v2708 = vrot.slane %v1505, 1
      %v2709 = vsel %vm2703, %v2707, %v2708
      %v2710 = vrot.slane %v2699, 1
      %v2711 = vrot.slane %v1506, 1
      %v2712 = vsel %vm2703, %v2710, %v2711
      %v2713 = vrot.slane %v1507, 1
      %v2714 = vsel %vm2703, %v2705, %v2713
      %v2715 = vrot.slane %v1508, 1
      %v2716 = vsel %vm2703, %v2708, %v2715
      %v2717 = vrot.slane %v1509, 1
      %v2718 = vsel %vm2703, %v2711, %v2717
      %v2719 = vrot.slane %v1510, 1
      %v2720 = vsel %vm2703, %v2713, %v2719
      %v2721 = vrot.slane %v1511, 1
      %v2722 = vsel %vm2703, %v2715, %v2721
      %v2723 = vrot.slane %v1512, 1
      %v2724 = vsel %vm2703, %v2717, %v2723
      %v2725 = vrot.slane %v1513, 1
      %v2726 = vsel %vm2703, %v2719, %v2725
      %v2727 = vrot.slane %v1514, 1
      %v2728 = vsel %vm2703, %v2721, %v2727
      %v2729 = vrot.slane %v1515, 1
      %v2730 = vsel %vm2703, %v2723, %v2729
      %v2731 = vrot.slane %v1516, 1
      %v2732 = vsel %vm2703, %v2725, %v2731
      %v2733 = vrot.slane %v1517, 1
      %v2734 = vsel %vm2703, %v2727, %v2733
      %v2735 = vrot.slane %v1518, 1
      %v2736 = vsel %vm2703, %v2729, %v2735
      %v2737 = vrot.slane %v1519, 1
      %v2738 = vsel %vm2703, %v2731, %v2737
      %v2739 = vrot.slane %v1520, 1
      %v2740 = vsel %vm2703, %v2733, %v2739
      %v2741 = vrot.slane %v1521, 1
      %v2742 = vsel %vm2703, %v2735, %v2741
      %v2743 = vrot.slane %v1522, 1
      %v2744 = vsel %vm2703, %v2737, %v2743
      %v2745 = vrot.slane %v1523, 1
      %v2746 = vsel %vm2703, %v2739, %v2745
      %v2747 = vrot.slane %v1524, 1
      %v2748 = vsel %vm2703, %v2741, %v2747
      %v2749 = vrot.slane %v1525, 1
      %v2750 = vsel %vm2703, %v2743, %v2749
      %v2751 = vrot.slane %v1526, 1
      %v2752 = vsel %vm2703, %v2745, %v2751
      %v2753 = vrot.slane %v1527, 1
      %v2754 = vsel %vm2703, %v2747, %v2753
      %v2755 = vrot.slane %v1528, 1
      %v2756 = vsel %vm2703, %v2749, %v2755
      %v2757 = vrot.slane %v1529, 1
      %v2758 = vsel %vm2703, %v2751, %v2757
      %v2759 = vrot.slane %v1530, 1
      %v2760 = vsel %vm2703, %v2753, %v2759
      %v2761 = vrot.slane %v2700, 1
      %v2762 = vsel %vm2703, %v2755, %v2761
      %v2763 = vrot.slane %v2701, 1
      %v2764 = vsel %vm2703, %v2757, %v2763
      %v2765 = vrot.slane %v2702, 1
      %v2766 = vsel %vm2703, %v2759, %v2765
      %v2848 = vunpack.c.l.b16 %v2639
      %v2849 = vunpack.c.l.b16 %v2640
      %v2850 = vunpack.c.l.b16 %v2641
      %v2851 = vunpack.c.l.b16 %v2642
      %v2852 = vunpack.c.l.b16 %v2643
      %v2853 = vunpack.c.l.b16 %v2644
      %v2854 = vunpack.c.l.b16 %v2645
      %v2855 = vunpack.c.l.b16 %v2646
      %v2856 = vunpack.c.l.b16 %v2647
      %v2857 = vunpack.c.l.b16 %v2648
      %v2858 = vunpack.c.l.b16 %v2649
      %v2859 = vunpack.c.l.b16 %v2650
      %v2860 = vunpack.c.l.b16 %v2651
      %v2861 = vunpack.c.l.b16 %v2652
      %v2862 = vunpack.c.l.b16 %v2653
      %v2863 = vunpack.c.l.b16 %v2654
      %v2864 = vunpack.c.l.b16 %v2655
      %v2865 = vunpack.c.l.b16 %v2656
      %v2866 = vunpack.c.l.b16 %v2657
      %v2867 = vunpack.c.l.b16 %v2658
      %v2868 = vunpack.c.l.b16 %v2659
      %v2869 = vunpack.c.l.b16 %v2660
      %v2870 = vunpack.c.l.b16 %v2661
      %v2871 = vunpack.c.l.b16 %v2662
      %v2872 = vunpack.c.l.b16 %v2663
      %v2873 = vunpack.c.l.b16 %v2664
      %v2874 = vunpack.c.l.b16 %v2665
      %v2875 = vunpack.c.l.b16 %v2666
      %v2876 = vunpack.c.l.b16 %v2667
      %v2877 = vunpack.c.l.b16 %v2668
      %v2878 = vunpack.c.l.b16 %v2669
      %v2879 = vunpack.c.l.b16 %v2670
      %v2880 = vunpack.c.l.b16 %v2671
      %v2881 = vunpack.c.l.b16 %v2672
      %v2882 = vunpack.c.l.b16 %v2673
      %v2883 = vunpack.c.l.b16 %v2674
      %v2884 = vunpack.c.l.b16 %v2675
      %v2885 = vunpack.c.l.b16 %v2676
      %v2886 = vunpack.c.l.b16 %v2677
      %v2887 = vunpack.c.l.b16 %v2678
      %v2888 = vunpack.c.l.b16 %v2679
      %v2889 = vunpack.c.l.b16 %v2680
      %v2890 = vunpack.c.l.b16 %v2681
      %v2891 = vunpack.c.l.b16 %v2682
      %v2892 = vunpack.c.l.b16 %v2683
      %v2893 = vunpack.c.l.b16 %v2684
      %v2894 = vunpack.c.l.b16 %v2685
      %v2895 = vunpack.c.l.b16 %v2686
      %v2896 = vpack.c.b16 %v2849, %v2848
      %v2897 = vpack.c.b16 %v2851, %v2850
      %v2898 = vpack.c.b16 %v2853, %v2852
      %v2899 = vpack.c.b16 %v2855, %v2854
      %v2900 = vpack.c.b16 %v2857, %v2856
      %v2901 = vpack.c.b16 %v2859, %v2858
      %v2902 = vpack.c.b16 %v2861, %v2860
      %v2903 = vpack.c.b16 %v2863, %v2862
      %v2904 = vpack.c.b16 %v2865, %v2864
      %v2905 = vpack.c.b16 %v2867, %v2866
      %v2906 = vpack.c.b16 %v2869, %v2868
      %v2907 = vpack.c.b16 %v2871, %v2870
      %v2908 = vpack.c.b16 %v2873, %v2872
      %v2909 = vpack.c.b16 %v2875, %v2874
      %v2910 = vpack.c.b16 %v2877, %v2876
      %v2911 = vpack.c.b16 %v2879, %v2878
      %v2912 = vpack.c.b16 %v2881, %v2880
      %v2913 = vpack.c.b16 %v2883, %v2882
      %v2914 = vpack.c.b16 %v2885, %v2884
      %v2915 = vpack.c.b16 %v2887, %v2886
      %v2916 = vpack.c.b16 %v2889, %v2888
      %v2917 = vpack.c.b16 %v2891, %v2890
      %v2918 = vpack.c.b16 %v2893, %v2892
      %v2919 = vpack.c.b16 %v2895, %v2894
      %2944 = vmatprep.subr.bf16.mxu0 0
      %2945 = vmatpush1.bf16.msra.mxu0 %v2896
      %2946 = vmatprep.subr.bf16.mxu0 0
      %2947 = vmatpush1.bf16.msra.mxu0 %v2897
      %2948 = vmatprep.subr.bf16.mxu0 0
      %2949 = vmatpush1.bf16.msra.mxu0 %v2898
      %2950 = vmatprep.subr.bf16.mxu0 0
      %2951 = vmatpush1.bf16.msra.mxu0 %v2899
      %2952 = vmatprep.subr.bf16.mxu0 0
      %2953 = vmatpush1.bf16.msra.mxu0 %v2900
      %2954 = vmatprep.subr.bf16.mxu0 0
      %2955 = vmatpush1.bf16.msra.mxu0 %v2901
      %2956 = vmatprep.subr.bf16.mxu0 0
      %2957 = vmatpush1.bf16.msra.mxu0 %v2902
      %2958 = vmatprep.subr.bf16.mxu0 0
      %2959 = vmatpush1.bf16.msra.mxu0 %v2903
      %2960 = vmatprep.subr.bf16.mxu0 0
      %2961 = vmatpush1.bf16.msra.mxu0 %v2904
      %2962 = vmatprep.subr.bf16.mxu0 0
      %2963 = vmatpush1.bf16.msra.mxu0 %v2905
      %2964 = vmatprep.subr.bf16.mxu0 0
      %2965 = vmatpush1.bf16.msra.mxu0 %v2906
      %2966 = vmatprep.subr.bf16.mxu0 0
      %2967 = vmatpush1.bf16.msra.mxu0 %v2907
      %2968 = vmatprep.subr.bf16.mxu0 0
      %2969 = vmatpush1.bf16.msra.mxu0 %v2908
      %2970 = vmatprep.subr.bf16.mxu0 0
      %2971 = vmatpush1.bf16.msra.mxu0 %v2909
      %2972 = vmatprep.subr.bf16.mxu0 0
      %2973 = vmatpush1.bf16.msra.mxu0 %v2910
      %2974 = vmatprep.subr.bf16.mxu0 0
      %2975 = vmatpush1.bf16.msra.mxu0 %v2911
      %2976 = vmatprep.mubr.bf16.mxu0 %v2709
      %2977 = vmatmul.mubr.bf16.gmra.mrb[0].mxu0 %v2706
      %v2978 = vpop.f32.mrb[0].mxu0
      %v2979 = vadd.f32 0.0, %v2978
      %v2980 = vpop.f32.mrb[0].mxu0
      %v2981 = vpop.f32.mrb[0].mxu0
      %v2982 = vadd.f32 0.0, %v2981
      %v2983 = vpop.f32.mrb[0].mxu0
      %2984 = vmatprep.mubr.bf16.mxu0 %v2716
      %2985 = vmatmul.mubr.bf16.gmra.mrb[0].mxu0 %v2714
      %v2986 = vpop.f32.mrb[0].mxu0
      %v2987 = vadd.f32 0.0, %v2986
      %v2988 = vpop.f32.mrb[0].mxu0
      %v2989 = vpop.f32.mrb[0].mxu0
      %v2990 = vadd.f32 0.0, %v2989
      %v2991 = vpop.f32.mrb[0].mxu0
      %2992 = vmatprep.mubr.bf16.mxu0 %v2722
      %2993 = vmatmul.mubr.bf16.gmra.mrb[0].mxu0 %v2720
      %v2994 = vpop.f32.mrb[0].mxu0
      %v2995 = vadd.f32 0.0, %v2994
      %v2996 = vpop.f32.mrb[0].mxu0
      %v2997 = vpop.f32.mrb[0].mxu0
      %v2998 = vadd.f32 0.0, %v2997
      %v2999 = vpop.f32.mrb[0].mxu0
      %3000 = vmatprep.mubr.bf16.mxu0 %v2728
      %3001 = vmatmul.mubr.bf16.gmra.mrb[0].mxu0 %v2726
      %v3002 = vpop.f32.mrb[0].mxu0
      %v3003 = vadd.f32 0.0, %v3002
      %v3004 = vpop.f32.mrb[0].mxu0
      %v3005 = vpop.f32.mrb[0].mxu0
      %v3006 = vadd.f32 0.0, %v3005
      %v3007 = vpop.f32.mrb[0].mxu0
      %3008 = vmatprep.mubr.bf16.mxu0 %v2734
      %3009 = vmatmul.mubr.bf16.gmra.mrb[0].mxu0 %v2732
      %v3010 = vpop.f32.mrb[0].mxu0
      %v3011 = vadd.f32 0.0, %v3010
      %v3012 = vpop.f32.mrb[0].mxu0
      %v3013 = vpop.f32.mrb[0].mxu0
      %v3014 = vadd.f32 0.0, %v3013
      %v3015 = vpop.f32.mrb[0].mxu0
      %3016 = vmatprep.mubr.bf16.mxu0 %v2740
      %3017 = vmatmul.mubr.bf16.gmra.mrb[0].mxu0 %v2738
      %v3018 = vpop.f32.mrb[0].mxu0
      %v3019 = vadd.f32 0.0, %v3018
      %v3020 = vpop.f32.mrb[0].mxu0
      %v3021 = vpop.f32.mrb[0].mxu0
      %v3022 = vadd.f32 0.0, %v3021
      %v3023 = vpop.f32.mrb[0].mxu0
      %3024 = vmatprep.mubr.bf16.mxu0 %v2746
      %3025 = vmatmul.mubr.bf16.gmra.mrb[0].mxu0 %v2744
      %v3026 = vpop.f32.mrb[0].mxu0
      %v3027 = vadd.f32 0.0, %v3026
      %v3028 = vpop.f32.mrb[0].mxu0
      %v3029 = vpop.f32.mrb[0].mxu0
      %v3030 = vadd.f32 0.0, %v3029
      %v3031 = vpop.f32.mrb[0].mxu0
      %3032 = vmatprep.mubr.bf16.mxu0 %v2752
      %3033 = vmatmul.mubr.bf16.gmra.mrb[0].mxu0 %v2750
      %v3034 = vpop.f32.mrb[0].mxu0
      %v3035 = vadd.f32 0.0, %v3034
      %v3036 = vpop.f32.mrb[0].mxu0
      %v3037 = vpop.f32.mrb[0].mxu0
      %v3038 = vadd.f32 0.0, %v3037
      %v3039 = vpop.f32.mrb[0].mxu0
      %3040 = vmatprep.mubr.bf16.mxu0 %v2758
      %3041 = vmatmul.mubr.bf16.gmra.mrb[0].mxu0 %v2756
      %v3042 = vpop.f32.mrb[0].mxu0
      %v3043 = vadd.f32 0.0, %v3042
      %v3044 = vpop.f32.mrb[0].mxu0
      %v3045 = vpop.f32.mrb[0].mxu0
      %v3046 = vadd.f32 0.0, %v3045
      %v3047 = vpop.f32.mrb[0].mxu0
      %3048 = vmatprep.mubr.bf16.mxu0 %v2764
      %3049 = vmatmul.mubr.bf16.gmra.mrb[0].mxu0 %v2762
      %v3050 = vpop.f32.mrb[0].mxu0
      %v3051 = vadd.f32 0.0, %v3050
      %v3052 = vpop.f32.mrb[0].mxu0
      %v3053 = vpop.f32.mrb[0].mxu0
      %v3054 = vadd.f32 0.0, %v3053
      %v3055 = vpop.f32.mrb[0].mxu0
      %3056 = vmatprep.mubr.bf16.mxu0 %v2763
      %3057 = vmatmul.mubr.bf16.gmra.mrb[0].mxu0 %v2761
      %v3058 = vpop.f32.mrb[0].mxu0
      %v3059 = vadd.f32 0.0, %v3058
      %v3060 = vpop.f32.mrb[0].mxu0
      %v3061 = vpop.f32.mrb[0].mxu0
      %v3062 = vadd.f32 0.0, %v3061
      %v3063 = vpop.f32.mrb[0].mxu0
      %3064 = vdwg.mxu0
      %3065 = vmatprep.subr.bf16.mxu0 0
      %3066 = vmatpush1.bf16.msra.mxu0 %v2912
      %3067 = vmatprep.subr.bf16.mxu0 0
      %3068 = vmatpush1.bf16.msra.mxu0 %v2913
      %3069 = vmatprep.subr.bf16.mxu0 0
      %3070 = vmatpush1.bf16.msra.mxu0 %v2914
      %3071 = vmatprep.subr.bf16.mxu0 0
      %3072 = vmatpush1.bf16.msra.mxu0 %v2915
      %3073 = vmatprep.subr.bf16.mxu0 0
      %3074 = vmatpush1.bf16.msra.mxu0 %v2916
      %3075 = vmatprep.subr.bf16.mxu0 0
      %3076 = vmatpush1.bf16.msra.mxu0 %v2917
      %3077 = vmatprep.subr.bf16.mxu0 0
      %3078 = vmatpush1.bf16.msra.mxu0 %v2918
      %3079 = vmatprep.subr.bf16.mxu0 0
      %3080 = vmatpush1.bf16.msra.mxu0 %v2919
      %3081 = vmatprep.subr.bf16.mxu0 0
      %3082 = vmatpush1.bf16.msra.mxu0 0
      %3083 = vmatprep.subr.bf16.mxu0 0
      %3084 = vmatpush1.bf16.msra.mxu0 0
      %3085 = vmatprep.subr.bf16.mxu0 0
      %3086 = vmatpush1.bf16.msra.mxu0 0
      %3087 = vmatprep.subr.bf16.mxu0 0
      %3088 = vmatpush1.bf16.msra.mxu0 0
      %3089 = vmatprep.subr.bf16.mxu0 0
      %3090 = vmatpush1.bf16.msra.mxu0 0
      %3091 = vmatprep.subr.bf16.mxu0 0
      %3092 = vmatpush1.bf16.msra.mxu0 0
      %3093 = vmatprep.subr.bf16.mxu0 0
      %3094 = vmatpush1.bf16.msra.mxu0 0
      %3095 = vmatprep.subr.bf16.mxu0 0
      %3096 = vmatpush1.bf16.msra.mxu0 0
      %3097 = vmatprep.mubr.bf16.mxu0 0
      %3098 = vmatmul.mubr.bf16.gmra.mrb[0].mxu0 %v2712
      %v3099 = vpop.f32.mrb[0].mxu0
      %v3100 = vadd.f32 %v2979, %v3099
      %v3101 = vpop.f32.mrb[0].mxu0
      %v3102 = vpop.f32.mrb[0].mxu0
      %v3103 = vadd.f32 %v2982, %v3102
      %v3104 = vpop.f32.mrb[0].mxu0
      %3105 = vmatprep.mubr.bf16.mxu0 0
      %3106 = vmatmul.mubr.bf16.gmra.mrb[0].mxu0 %v2718
      %v3107 = vpop.f32.mrb[0].mxu0
      %v3108 = vadd.f32 %v2987, %v3107
      %v3109 = vpop.f32.mrb[0].mxu0
      %v3110 = vpop.f32.mrb[0].mxu0
      %v3111 = vadd.f32 %v2990, %v3110
      %v3112 = vpop.f32.mrb[0].mxu0
      %3113 = vmatprep.mubr.bf16.mxu0 0
      %3114 = vmatmul.mubr.bf16.gmra.mrb[0].mxu0 %v2724
      %v3115 = vpop.f32.mrb[0].mxu0
      %v3116 = vadd.f32 %v2995, %v3115
      %v3117 = vpop.f32.mrb[0].mxu0
      %v3118 = vpop.f32.mrb[0].mxu0
      %v3119 = vadd.f32 %v2998, %v3118
      %v3120 = vpop.f32.mrb[0].mxu0
      %3121 = vmatprep.mubr.bf16.mxu0 0
      %3122 = vmatmul.mubr.bf16.gmra.mrb[0].mxu0 %v2730
      %v3123 = vpop.f32.mrb[0].mxu0
      %v3124 = vadd.f32 %v3003, %v3123
      %v3125 = vpop.f32.mrb[0].mxu0
      %v3126 = vpop.f32.mrb[0].mxu0
      %v3127 = vadd.f32 %v3006, %v3126
      %v3128 = vpop.f32.mrb[0].mxu0
      %3129 = vmatprep.mubr.bf16.mxu0 0
      %3130 = vmatmul.mubr.bf16.gmra.mrb[0].mxu0 %v2736
      %v3131 = vpop.f32.mrb[0].mxu0
      %v3132 = vadd.f32 %v3011, %v3131
      %v3133 = vpop.f32.mrb[0].mxu0
      %v3134 = vpop.f32.mrb[0].mxu0
      %v3135 = vadd.f32 %v3014, %v3134
      %v3136 = vpop.f32.mrb[0].mxu0
      %3137 = vmatprep.mubr.bf16.mxu0 0
      %3138 = vmatmul.mubr.bf16.gmra.mrb[0].mxu0 %v2742
      %v3139 = vpop.f32.mrb[0].mxu0
      %v3140 = vadd.f32 %v3019, %v3139
      %v3141 = vpop.f32.mrb[0].mxu0
      %v3142 = vpop.f32.mrb[0].mxu0
      %v3143 = vadd.f32 %v3022, %v3142
      %v3144 = vpop.f32.mrb[0].mxu0
      %3145 = vmatprep.mubr.bf16.mxu0 0
      %3146 = vmatmul.mubr.bf16.gmra.mrb[0].mxu0 %v2748
      %v3147 = vpop.f32.mrb[0].mxu0
      %v3148 = vadd.f32 %v3027, %v3147
      %v3149 = vpop.f32.mrb[0].mxu0
      %v3150 = vpop.f32.mrb[0].mxu0
      %v3151 = vadd.f32 %v3030, %v3150
      %v3152 = vpop.f32.mrb[0].mxu0
      %3153 = vmatprep.mubr.bf16.mxu0 0
      %3154 = vmatmul.mubr.bf16.gmra.mrb[0].mxu0 %v2754
      %v3155 = vpop.f32.mrb[0].mxu0
      %v3156 = vadd.f32 %v3035, %v3155
      %v3157 = vpop.f32.mrb[0].mxu0
      %v3158 = vpop.f32.mrb[0].mxu0
      %v3159 = vadd.f32 %v3038, %v3158
      %v3160 = vpop.f32.mrb[0].mxu0
      %3161 = vmatprep.mubr.bf16.mxu0 0
      %3162 = vmatmul.mubr.bf16.gmra.mrb[0].mxu0 %v2760
      %v3163 = vpop.f32.mrb[0].mxu0
      %v3164 = vadd.f32 %v3043, %v3163
      %v3165 = vpop.f32.mrb[0].mxu0
      %v3166 = vpop.f32.mrb[0].mxu0
      %v3167 = vadd.f32 %v3046, %v3166
      %v3168 = vpop.f32.mrb[0].mxu0
      %3169 = vmatprep.mubr.bf16.mxu0 0
      %3170 = vmatmul.mubr.bf16.gmra.mrb[0].mxu0 %v2766
      %v3171 = vpop.f32.mrb[0].mxu0
      %v3172 = vadd.f32 %v3051, %v3171
      %v3173 = vpop.f32.mrb[0].mxu0
      %v3174 = vpop.f32.mrb[0].mxu0
      %v3175 = vadd.f32 %v3054, %v3174
      %v3176 = vpop.f32.mrb[0].mxu0
      %3177 = vmatprep.mubr.bf16.mxu0 0
      %3178 = vmatmul.mubr.bf16.gmra.mrb[0].mxu0 %v2765
      %v3179 = vpop.f32.mrb[0].mxu0
      %v3180 = vadd.f32 %v3059, %v3179
      %v3181 = vpop.f32.mrb[0].mxu0
      %v3182 = vpop.f32.mrb[0].mxu0
      %v3183 = vadd.f32 %v3062, %v3182
      %v3184 = vpop.f32.mrb[0].mxu0
      %3185 = vdwg.mxu0
      %v3186 = vadd.f32 %v2548, %v3100
      %v3187 = vadd.f32 %v2551, %v3103
      %v3188 = vadd.f32 %v2556, %v3108
      %v3189 = vadd.f32 %v2559, %v3111
      %v3190 = vadd.f32 %v2564, %v3116
      %v3191 = vadd.f32 %v2567, %v3119
      %v3192 = vadd.f32 %v2572, %v3124
      %v3193 = vadd.f32 %v2575, %v3127
      %v3194 = vadd.f32 %v2580, %v3132
      %v3195 = vadd.f32 %v2583, %v3135
      %v3196 = vadd.f32 %v2588, %v3140
      %v3197 = vadd.f32 %v2591, %v3143
      %v3198 = vadd.f32 %v2596, %v3148
      %v3199 = vadd.f32 %v2599, %v3151
      %v3200 = vadd.f32 %v2604, %v3156
      %v3201 = vadd.f32 %v2607, %v3159
      %v3202 = vadd.f32 %v2612, %v3164
      %v3203 = vadd.f32 %v2615, %v3167
      %v3204 = vadd.f32 %v2620, %v3172
      %v3205 = vadd.f32 %v2623, %v3175
      %v3206 = vadd.f32 %v2628, %v3180
      %v3207 = vadd.f32 %v2631, %v3183
      %v3208 = vld [vmem:[%s2] sm:$0x1]
      %v3210 = vlaneseq
      %v3211 = vshrl.u32 %v3210, 7
      %v3212 = vsub.s32 0, %v3211
      %v3213 = vrot.slane %v3208, %v3212
      %v3215 = vadd.f32 %v3186, %v3213
      %v3216 = vadd.f32 %v3187, %v3213
      %v3217 = vadd.f32 %v3188, %v3213
      %v3218 = vadd.f32 %v3189, %v3213
      %v3219 = vadd.f32 %v3190, %v3213
      %v3220 = vadd.f32 %v3191, %v3213
      %v3221 = vadd.f32 %v3192, %v3213
      %v3222 = vadd.f32 %v3193, %v3213
      %v3223 = vadd.f32 %v3194, %v3213
      %v3224 = vadd.f32 %v3195, %v3213
      %v3225 = vadd.f32 %v3196, %v3213
      %v3226 = vadd.f32 %v3197, %v3213
      %v3227 = vadd.f32 %v3198, %v3213
      %v3228 = vadd.f32 %v3199, %v3213
      %v3229 = vadd.f32 %v3200, %v3213
      %v3230 = vadd.f32 %v3201, %v3213
      %v3231 = vadd.f32 %v3202, %v3213
      %v3232 = vadd.f32 %v3203, %v3213
      %v3233 = vadd.f32 %v3204, %v3213
      %v3234 = vadd.f32 %v3205, %v3213
      %v3235 = vadd.f32 %v3206, %v3213
      %v3236 = vadd.f32 %v3207, %v3213
      %v3237 = vmax.f32 %v3215, 0.0
      %v3238 = vmax.f32 %v3216, 0.0
      %v3239 = vmax.f32 %v3217, 0.0
      %v3240 = vmax.f32 %v3218, 0.0
      %v3241 = vmax.f32 %v3219, 0.0
      %v3242 = vmax.f32 %v3220, 0.0
      %v3243 = vmax.f32 %v3221, 0.0
      %v3244 = vmax.f32 %v3222, 0.0
      %v3245 = vmax.f32 %v3223, 0.0
      %v3246 = vmax.f32 %v3224, 0.0
      %v3247 = vmax.f32 %v3225, 0.0
      %v3248 = vmax.f32 %v3226, 0.0
      %v3249 = vmax.f32 %v3227, 0.0
      %v3250 = vmax.f32 %v3228, 0.0
      %v3251 = vmax.f32 %v3229, 0.0
      %v3252 = vmax.f32 %v3230, 0.0
      %v3253 = vmax.f32 %v3231, 0.0
      %v3254 = vmax.f32 %v3232, 0.0
      %v3255 = vmax.f32 %v3233, 0.0
      %v3256 = vmax.f32 %v3234, 0.0
      %v3257 = vmax.f32 %v3235, 0.0
      %v3258 = vmax.f32 %v3236, 0.0
      %v3259 = vpack.c.bf16 %v3238, %v3237
      %v3260 = vpack.c.bf16 %v3240, %v3239
      %v3261 = vpack.c.bf16 %v3242, %v3241
      %v3262 = vpack.c.bf16 %v3244, %v3243
      %v3263 = vpack.c.bf16 %v3246, %v3245
      %v3264 = vpack.c.bf16 %v3248, %v3247
      %v3265 = vpack.c.bf16 %v3250, %v3249
      %v3266 = vpack.c.bf16 %v3252, %v3251
      %v3267 = vpack.c.bf16 %v3254, %v3253
      %v3268 = vpack.c.bf16 %v3256, %v3255
      %v3269 = vpack.c.bf16 %v3258, %v3257
      %v3281 = vunpack.c.l.b16 %v3259
      %v3282 = vunpack.c.h.b16 %v3259
      %v3283 = vunpack.c.l.b16 %v3260
      %v3284 = vunpack.c.h.b16 %v3260
      %v3285 = vunpack.c.l.b16 %v3261
      %v3286 = vunpack.c.h.b16 %v3261
      %v3287 = vunpack.c.l.b16 %v3262
      %v3288 = vunpack.c.h.b16 %v3262
      %v3289 = vunpack.c.l.b16 %v3263
      %v3290 = vunpack.c.h.b16 %v3263
      %v3291 = vunpack.c.l.b16 %v3264
      %v3292 = vunpack.c.h.b16 %v3264
      %v3293 = vunpack.c.l.b16 %v3265
      %v3294 = vunpack.c.h.b16 %v3265
      %v3295 = vunpack.c.l.b16 %v3266
      %v3296 = vunpack.c.h.b16 %v3266
      %v3297 = vunpack.c.l.b16 %v3267
      %v3298 = vunpack.c.h.b16 %v3267
      %v3299 = vunpack.c.l.b16 %v3268
      %v3300 = vunpack.c.h.b16 %v3268
      %v3301 = vunpack.c.l.b16 %v3269
      %v3302 = vunpack.c.h.b16 %v3269
      %v3303 = vpack.c.b16 %v3281, %v3281
      %v3304 = vpack.c.b16 %v3282, %v3282
      %v3305 = vpack.c.b16 %v3283, %v3283
      %v3306 = vpack.c.b16 %v3284, %v3284
      %v3307 = vpack.c.b16 %v3285, %v3285
      %v3308 = vpack.c.b16 %v3286, %v3286
      %v3309 = vpack.c.b16 %v3287, %v3287
      %v3310 = vpack.c.b16 %v3288, %v3288
      %v3311 = vpack.c.b16 %v3289, %v3289
      %v3312 = vpack.c.b16 %v3290, %v3290
      %v3313 = vpack.c.b16 %v3291, %v3291
      %v3314 = vpack.c.b16 %v3292, %v3292
      %v3315 = vpack.c.b16 %v3293, %v3293
      %v3316 = vpack.c.b16 %v3294, %v3294
      %v3317 = vpack.c.b16 %v3295, %v3295
      %v3318 = vpack.c.b16 %v3296, %v3296
      %v3319 = vpack.c.b16 %v3297, %v3297
      %v3320 = vpack.c.b16 %v3298, %v3298
      %v3321 = vpack.c.b16 %v3299, %v3299
      %v3322 = vpack.c.b16 %v3300, %v3300
      %v3323 = vpack.c.b16 %v3301, %v3301
      %v3324 = vpack.c.b16 %v3302, %v3302
      %3347 = vst [vmem:[#allocation3] sm:$0xf] %v3303
      %3348 = vst [vmem:[#allocation3 + $0x4] sm:$0xf] %v3304
      %3349 = vst [vmem:[#allocation3 + $0x8] sm:$0xf] %v3305
      %3350 = vst [vmem:[#allocation3 + $0xc] sm:$0xf] %v3306
      %3351 = vst [vmem:[#allocation3 + $0x10] sm:$0xf] %v3307
      %3352 = vst [vmem:[#allocation3 + $0x14] sm:$0xf] %v3308
      %3353 = vst [vmem:[#allocation3 + $0x18] sm:$0xf] %v3309
      %3354 = vst [vmem:[#allocation3 + $0x1c] sm:$0xf] %v3310
      %3355 = vst [vmem:[#allocation3 + $0x20] sm:$0xf] %v3311
      %3356 = vst [vmem:[#allocation3 + $0x24] sm:$0xf] %v3312
      %3357 = vst [vmem:[#allocation3 + $0x28] sm:$0xf] %v3313
      %3358 = vst [vmem:[#allocation3 + $0x2c] sm:$0xf] %v3314
      %3359 = vst [vmem:[#allocation3 + $0x30] sm:$0xf] %v3315
      %3360 = vst [vmem:[#allocation3 + $0x34] sm:$0xf] %v3316
      %3361 = vst [vmem:[#allocation3 + $0x38] sm:$0xf] %v3317
      %3362 = vst [vmem:[#allocation3 + $0x3c] sm:$0xf] %v3318
      %3363 = vst [vmem:[#allocation3 + $0x40] sm:$0xf] %v3319
      %3364 = vst [vmem:[#allocation3 + $0x44] sm:$0xf] %v3320
      %3365 = vst [vmem:[#allocation3 + $0x48] sm:$0xf] %v3321
      %3366 = vst [vmem:[#allocation3 + $0x4c] sm:$0xf] %v3322
      %3367 = vst [vmem:[#allocation3 + $0x50] sm:$0xf] %v3323
      %v3368 = vld [vmem:[#allocation3 + $0x54] sm:$0x1]
      %v3369 = vsel %vm343, %v3324, %v3368
      %3370 = vst [vmem:[#allocation3 + $0x54] sm:$0x1] %v3369
      // Predicated region
      $region89: #{double_conv3d_forward.1} parent=39 // pred_check
        _
      $region90: #{double_conv3d_forward.1} parent=39 // pred_check_branch
        %3372 = sbr.rel (%p408) target = $region92
      $region91: #{double_conv3d_forward.1} parent=39 // pred_region
        %v3373 = vld [vmem:[#allocation3] sm:$0xf]
        %v3374 = vld [vmem:[#allocation3 + $0x4] sm:$0xf]
        %vm3375 = vsmask.f32 4368
        %vm3376 = vmor %vm342, %vm3375
        %v3378 = vshrl.u32 %v3373, 16
        %v3380 = vrot.slane %v3378, 7
        %v3381 = vshll.u32 %v3373, 16
        %v3383 = vor.u32 %v3380, %v3381
        %v3384 = vrot.slane %v3380, 4
        %v3386 = vshrl.u32 %v3374, 16
        %v3388 = vrot.slane %v3386, 7
        %v3389 = vshll.u32 %v3374, 16
        %v3391 = vor.u32 %v3388, %v3389
        %v3392 = vsel %vm3376, %v3384, %v3391
        %v3393 = vrot.slane %v3388, 4
        %vm3397 = vcmask 1043456
        %vm3398 = vsmask.f32 7938
        %vm3399 = vmand %vm3397, %vm3398
        %v3400 = vld [vmem:[#allocation4] sm:$0xf]
        %v3401 = vsel %vm3399, %v3383, %v3400
        %3402 = vst [vmem:[#allocation4] sm:$0xf] %v3401
        %3403 = vst [vmem:[#allocation4 + $0xc] sm:$0xf] %v3392
        %v3404 = vld [vmem:[#allocation4 + $0x18] sm:$0x1]
        %v3405 = vsel %vm343, %v3393, %v3404
        %3406 = vst [vmem:[#allocation4 + $0x18] sm:$0x1] %v3405
      $region92: #{double_conv3d_forward.1} parent=39 // pred_fallthru
        _
      // Predicated region
      $region93: #{double_conv3d_forward.1} parent=39 // pred_check
        _
      $region94: #{double_conv3d_forward.1} parent=39 // pred_check_branch
        %3408 = sbr.rel (%p474) target = $region96
      $region95: #{double_conv3d_forward.1} parent=39 // pred_region
        %v3409 = vld [vmem:[#allocation3 + $0x8] sm:$0xf]
        %v3410 = vld [vmem:[#allocation3 + $0xc] sm:$0xf]
        %v3411 = vld [vmem:[#allocation3 + $0x10] sm:$0x1]
        %vm3412 = vsmask.f32 4368
        %vm3413 = vmor %vm342, %vm3412
        %v3415 = vshrl.u32 %v3409, 16
        %v3417 = vrot.slane %v3415, 7
        %v3418 = vshll.u32 %v3409, 16
        %v3420 = vor.u32 %v3417, %v3418
        %v3421 = vrot.slane %v3417, 4
        %v3423 = vshrl.u32 %v3410, 16
        %v3425 = vrot.slane %v3423, 7
        %v3426 = vshll.u32 %v3410, 16
        %v3428 = vor.u32 %v3425, %v3426
        %v3429 = vsel %vm3413, %v3421, %v3428
        %v3430 = vrot.slane %v3425, 4
        %v3432 = vshll.u32 %v3411, 16
        %v3434 = vsel %vm3413, %v3430, %v3432
        %3438 = vst [vmem:[#allocation4 + $0x18] sm:$0xe] %v3420
        %3439 = vst [vmem:[#allocation4 + $0x24] sm:$0xf] %v3429
        %3440 = vst [vmem:[#allocation4 + $0x30] sm:$0x1] %v3434
        %vm3441 = vcmask 1043456
        %vm3442 = vsmask.f32 7938
        %vm3443 = vmand %vm3441, %vm3442
        %v3444 = vld [vmem:[#allocation4 + $0x4] sm:$0xf]
        %v3445 = vsel %vm3443, %v3409, %v3444
        %3446 = vst [vmem:[#allocation4 + $0x4] sm:$0xf] %v3445
        %3447 = vst [vmem:[#allocation4 + $0x10] sm:$0xf] %v3410
        %v3448 = vld [vmem:[#allocation4 + $0x1c] sm:$0x1]
        %v3449 = vsel %vm343, %v3411, %v3448
        %3450 = vst [vmem:[#allocation4 + $0x1c] sm:$0x1] %v3449
      $region96: #{double_conv3d_forward.1} parent=39 // pred_fallthru
        _
      // Predicated region
      $region97: #{double_conv3d_forward.1} parent=39 // pred_check
        _
      $region98: #{double_conv3d_forward.1} parent=39 // pred_check_branch
        %3452 = sbr.rel (%p567) target = $region100
      $region99: #{double_conv3d_forward.1} parent=39 // pred_region
        %v3453 = vld [vmem:[#allocation3 + $0x10] sm:$0xe]
        %v3454 = vld [vmem:[#allocation3 + $0x14] sm:$0xf]
        %v3455 = vld [vmem:[#allocation3 + $0x18] sm:$0x1]
        %vm3456 = vsmask.f32 4368
        %vm3457 = vmor %vm342, %vm3456
        %v3459 = vshrl.u32 %v3453, 16
        %v3461 = vrot.slane %v3459, 7
        %v3462 = vshll.u32 %v3453, 16
        %v3464 = vor.u32 %v3461, %v3462
        %v3465 = vrot.slane %v3461, 4
        %v3467 = vshrl.u32 %v3454, 16
        %v3469 = vrot.slane %v3467, 7
        %v3470 = vshll.u32 %v3454, 16
        %v3472 = vor.u32 %v3469, %v3470
        %v3473 = vsel %vm3457, %v3465, %v3472
        %v3474 = vrot.slane %v3469, 4
        %v3476 = vshrl.u32 %v3455, 16
        %v3478 = vrot.slane %v3476, 7
        %v3479 = vshll.u32 %v3455, 16
        %v3481 = vor.u32 %v3478, %v3479
        %v3482 = vsel %vm3457, %v3474, %v3481
        %vm3486 = vcmask 1043457
        %vm3487 = vsmask.f32 7942
        %vm3488 = vmand %vm3486, %vm3487
        %v3489 = vld [vmem:[#allocation4 + $0x30] sm:$0xe]
        %v3490 = vsel %vm3488, %v3464, %v3489
        %3491 = vst [vmem:[#allocation4 + $0x30] sm:$0xe] %v3490
        %3492 = vst [vmem:[#allocation4 + $0x3c] sm:$0xf] %v3473
        %v3493 = vld [vmem:[#allocation4 + $0x48] sm:$0x3]
        %v3494 = vsel %vm296, %v3482, %v3493
        %3495 = vst [vmem:[#allocation4 + $0x48] sm:$0x3] %v3494
        %3496 = vst [vmem:[#allocation4 + $0x1c] sm:$0xe] %v3453
        %3497 = vst [vmem:[#allocation4 + $0x28] sm:$0xf] %v3454
        %3498 = vst [vmem:[#allocation4 + $0x34] sm:$0x1] %v3455
        %vm3499 = vsmask.f32 3328
        %vm3500 = vsmask.f32 7440
        %vm3501 = vmor %vm3499, %vm3500
        %v3502 = vrot.slane %v3459, 4
        %v3503 = vrot.slane %v3462, 5
        %v3504 = vor.u32 %v3502, %v3503
        %v3505 = vrot.slane %v3504, 4
        %v3506 = vrot.slane %v3470, 5
        %v3507 = vsel %vm3501, %v3505, %v3506
        %v3508 = vrot.slane %v3467, 4
        %v3509 = vor.u32 %v3508, %v3506
        %v3510 = vrot.slane %v3509, 4
        %v3511 = vrot.slane %v3479, 5
        %v3512 = vsel %vm3501, %v3510, %v3511
        %v3513 = vrot.slane %v3476, 4
        %v3514 = vrot.slane %v3513, 4
        %vm3518 = vcmask 1043456
        %vm3519 = vsmask.f32 7938
        %vm3520 = vmand %vm3518, %vm3519
        %v3521 = vld [vmem:[#allocation4 + $0x8] sm:$0xf]
        %v3522 = vsel %vm3520, %v3507, %v3521
        %3523 = vst [vmem:[#allocation4 + $0x8] sm:$0xf] %v3522
        %3524 = vst [vmem:[#allocation4 + $0x14] sm:$0xf] %v3512
        %v3525 = vld [vmem:[#allocation4 + $0x20] sm:$0x1]
        %v3526 = vsel %vm343, %v3514, %v3525
        %3527 = vst [vmem:[#allocation4 + $0x20] sm:$0x1] %v3526
      $region100: #{double_conv3d_forward.1} parent=39 // pred_fallthru
        _
      // Predicated region
      $region101: #{double_conv3d_forward.1} parent=39 // pred_check
        _
      $region102: #{double_conv3d_forward.1} parent=39 // pred_check_branch
        %3529 = sbr.rel (%p650) target = $region104
      $region103: #{double_conv3d_forward.1} parent=39 // pred_region
        %v3530 = vld [vmem:[#allocation3 + $0x18] sm:$0xe]
        %v3531 = vld [vmem:[#allocation3 + $0x1c] sm:$0xf]
        %v3532 = vld [vmem:[#allocation3 + $0x20] sm:$0x3]
        %vm3533 = vsmask.f32 4368
        %vm3534 = vmor %vm342, %vm3533
        %v3536 = vshrl.u32 %v3530, 16
        %v3538 = vrot.slane %v3536, 7
        %v3539 = vshll.u32 %v3530, 16
        %v3541 = vor.u32 %v3538, %v3539
        %v3542 = vrot.slane %v3538, 4
        %v3544 = vshrl.u32 %v3531, 16
        %v3546 = vrot.slane %v3544, 7
        %v3547 = vshll.u32 %v3531, 16
        %v3549 = vor.u32 %v3546, %v3547
        %v3550 = vsel %vm3534, %v3542, %v3549
        %v3551 = vrot.slane %v3546, 4
        %v3553 = vshrl.u32 %v3532, 16
        %v3555 = vrot.slane %v3553, 7
        %v3556 = vshll.u32 %v3532, 16
        %v3558 = vor.u32 %v3555, %v3556
        %v3559 = vsel %vm3534, %v3551, %v3558
        %3563 = vst [vmem:[#allocation4 + $0x48] sm:$0xc] %v3541
        %3564 = vst [vmem:[#allocation4 + $0x54] sm:$0xf] %v3550
        %3565 = vst [vmem:[#allocation4 + $0x60] sm:$0x3] %v3559
        %vm3566 = vcmask 1043457
        %vm3567 = vsmask.f32 7942
        %vm3568 = vmand %vm3566, %vm3567
        %v3569 = vld [vmem:[#allocation4 + $0x34] sm:$0xe]
        %v3570 = vsel %vm3568, %v3530, %v3569
        %3571 = vst [vmem:[#allocation4 + $0x34] sm:$0xe] %v3570
        %3572 = vst [vmem:[#allocation4 + $0x40] sm:$0xf] %v3531
        %v3573 = vld [vmem:[#allocation4 + $0x4c] sm:$0x3]
        %v3574 = vsel %vm296, %v3532, %v3573
        %3575 = vst [vmem:[#allocation4 + $0x4c] sm:$0x3] %v3574
        %vm3576 = vsmask.f32 3328
        %vm3577 = vsmask.f32 7440
        %vm3578 = vmor %vm3576, %vm3577
        %v3579 = vrot.slane %v3536, 4
        %v3580 = vrot.slane %v3539, 5
        %v3581 = vor.u32 %v3579, %v3580
        %v3582 = vrot.slane %v3581, 4
        %v3583 = vrot.slane %v3547, 5
        %v3584 = vsel %vm3578, %v3582, %v3583
        %v3585 = vrot.slane %v3544, 4
        %v3586 = vor.u32 %v3585, %v3583
        %v3587 = vrot.slane %v3586, 4
        %v3588 = vrot.slane %v3556, 5
        %v3589 = vsel %vm3578, %v3587, %v3588
        %v3590 = vrot.slane %v3553, 4
        %v3591 = vor.u32 %v3590, %v3588
        %v3592 = vrot.slane %v3591, 4
        %3596 = vst [vmem:[#allocation4 + $0x20] sm:$0xe] %v3584
        %3597 = vst [vmem:[#allocation4 + $0x2c] sm:$0xf] %v3589
        %3598 = vst [vmem:[#allocation4 + $0x38] sm:$0x1] %v3592
      $region104: #{double_conv3d_forward.1} parent=39 // pred_fallthru
        _
      // Predicated region
      $region105: #{double_conv3d_forward.1} parent=39 // pred_check
        _
      $region106: #{double_conv3d_forward.1} parent=39 // pred_check_branch
        %3600 = sbr.rel (%p746) target = $region108
      $region107: #{double_conv3d_forward.1} parent=39 // pred_region
        %v3601 = vld [vmem:[#allocation3 + $0x20] sm:$0xc]
        %v3602 = vld [vmem:[#allocation3 + $0x24] sm:$0xf]
        %v3603 = vld [vmem:[#allocation3 + $0x28] sm:$0x3]
        %vm3604 = vsmask.f32 4368
        %vm3605 = vmor %vm342, %vm3604
        %v3607 = vshrl.u32 %v3601, 16
        %v3609 = vrot.slane %v3607, 7
        %v3610 = vshll.u32 %v3601, 16
        %v3612 = vor.u32 %v3609, %v3610
        %v3613 = vrot.slane %v3609, 4
        %v3615 = vshrl.u32 %v3602, 16
        %v3617 = vrot.slane %v3615, 7
        %v3618 = vshll.u32 %v3602, 16
        %v3620 = vor.u32 %v3617, %v3618
        %v3621 = vsel %vm3605, %v3613, %v3620
        %v3622 = vrot.slane %v3617, 4
        %v3624 = vshrl.u32 %v3603, 16
        %v3626 = vrot.slane %v3624, 7
        %v3627 = vshll.u32 %v3603, 16
        %v3629 = vor.u32 %v3626, %v3627
        %v3630 = vsel %vm3605, %v3622, %v3629
        %vm3634 = vcmask 1043458
        %vm3635 = vsmask.f32 7946
        %vm3636 = vmand %vm3634, %vm3635
        %v3637 = vld [vmem:[#allocation4 + $0x60] sm:$0xc]
        %v3638 = vsel %vm3636, %v3612, %v3637
        %3639 = vst [vmem:[#allocation4 + $0x60] sm:$0xc] %v3638
        %3640 = vst [vmem:[#allocation4 + $0x6c] sm:$0xf] %v3621
        %vm3641 = vcmask 1042432
        %vm3642 = vsmask.f32 2304
        %vm3643 = vmand %vm3641, %vm3642
        %v3644 = vld [vmem:[#allocation4 + $0x78] sm:$0x7]
        %v3645 = vsel %vm3643, %v3630, %v3644
        %3646 = vst [vmem:[#allocation4 + $0x78] sm:$0x7] %v3645
        %3647 = vst [vmem:[#allocation4 + $0x4c] sm:$0xc] %v3601
        %3648 = vst [vmem:[#allocation4 + $0x58] sm:$0xf] %v3602
        %3649 = vst [vmem:[#allocation4 + $0x64] sm:$0x3] %v3603
        %vm3650 = vsmask.f32 3328
        %vm3651 = vsmask.f32 7440
        %vm3652 = vmor %vm3650, %vm3651
        %v3653 = vrot.slane %v3607, 4
        %v3654 = vrot.slane %v3610, 5
        %v3655 = vor.u32 %v3653, %v3654
        %v3656 = vrot.slane %v3655, 4
        %v3657 = vrot.slane %v3618, 5
        %v3658 = vsel %vm3652, %v3656, %v3657
        %v3659 = vrot.slane %v3615, 4
        %v3660 = vor.u32 %v3659, %v3657
        %v3661 = vrot.slane %v3660, 4
        %v3662 = vrot.slane %v3627, 5
        %v3663 = vsel %vm3652, %v3661, %v3662
        %v3664 = vrot.slane %v3624, 4
        %v3665 = vor.u32 %v3664, %v3662
        %v3666 = vrot.slane %v3665, 4
        %vm3670 = vcmask 1043457
        %vm3671 = vsmask.f32 7942
        %vm3672 = vmand %vm3670, %vm3671
        %v3673 = vld [vmem:[#allocation4 + $0x38] sm:$0xe]
        %v3674 = vsel %vm3672, %v3658, %v3673
        %3675 = vst [vmem:[#allocation4 + $0x38] sm:$0xe] %v3674
        %3676 = vst [vmem:[#allocation4 + $0x44] sm:$0xf] %v3663
        %v3677 = vld [vmem:[#allocation4 + $0x50] sm:$0x3]
        %v3678 = vsel %vm296, %v3666, %v3677
        %3679 = vst [vmem:[#allocation4 + $0x50] sm:$0x3] %v3678
      $region108: #{double_conv3d_forward.1} parent=39 // pred_fallthru
        _
      // Predicated region
      $region109: #{double_conv3d_forward.1} parent=39 // pred_check
        _
      $region110: #{double_conv3d_forward.1} parent=39 // pred_check_branch
        %3681 = sbr.rel (%p832) target = $region112
      $region111: #{double_conv3d_forward.1} parent=39 // pred_region
        %v3682 = vld [vmem:[#allocation3 + $0x28] sm:$0xc]
        %v3683 = vld [vmem:[#allocation3 + $0x2c] sm:$0xf]
        %v3684 = vld [vmem:[#allocation3 + $0x30] sm:$0x7]
        %vm3685 = vsmask.f32 4368
        %vm3686 = vmor %vm342, %vm3685
        %v3688 = vshrl.u32 %v3682, 16
        %v3690 = vrot.slane %v3688, 7
        %v3691 = vshll.u32 %v3682, 16
        %v3693 = vor.u32 %v3690, %v3691
        %v3694 = vrot.slane %v3690, 4
        %v3696 = vshrl.u32 %v3683, 16
        %v3698 = vrot.slane %v3696, 7
        %v3699 = vshll.u32 %v3683, 16
        %v3701 = vor.u32 %v3698, %v3699
        %v3702 = vsel %vm3686, %v3694, %v3701
        %v3703 = vrot.slane %v3698, 4
        %v3705 = vshrl.u32 %v3684, 16
        %v3707 = vrot.slane %v3705, 7
        %v3708 = vshll.u32 %v3684, 16
        %v3710 = vor.u32 %v3707, %v3708
        %v3711 = vsel %vm3686, %v3703, %v3710
        %3715 = vst [vmem:[#allocation4 + $0x78] sm:$0x8] %v3693
        %3716 = vst [vmem:[#allocation4 + $0x84] sm:$0xf] %v3702
        %3717 = vst [vmem:[#allocation4 + $0x90] sm:$0x7] %v3711
        %vm3718 = vcmask 1043458
        %vm3719 = vsmask.f32 7946
        %vm3720 = vmand %vm3718, %vm3719
        %v3721 = vld [vmem:[#allocation4 + $0x64] sm:$0xc]
        %v3722 = vsel %vm3720, %v3682, %v3721
        %3723 = vst [vmem:[#allocation4 + $0x64] sm:$0xc] %v3722
        %3724 = vst [vmem:[#allocation4 + $0x70] sm:$0xf] %v3683
        %vm3725 = vcmask 1042432
        %vm3726 = vsmask.f32 2304
        %vm3727 = vmand %vm3725, %vm3726
        %v3728 = vld [vmem:[#allocation4 + $0x7c] sm:$0x7]
        %v3729 = vsel %vm3727, %v3684, %v3728
        %3730 = vst [vmem:[#allocation4 + $0x7c] sm:$0x7] %v3729
        %vm3731 = vsmask.f32 3328
        %vm3732 = vsmask.f32 7440
        %vm3733 = vmor %vm3731, %vm3732
        %v3734 = vrot.slane %v3688, 4
        %v3735 = vrot.slane %v3691, 5
        %v3736 = vor.u32 %v3734, %v3735
        %v3737 = vrot.slane %v3736, 4
        %v3738 = vrot.slane %v3699, 5
        %v3739 = vsel %vm3733, %v3737, %v3738
        %v3740 = vrot.slane %v3696, 4
        %v3741 = vor.u32 %v3740, %v3738
        %v3742 = vrot.slane %v3741, 4
        %v3743 = vrot.slane %v3708, 5
        %v3744 = vsel %vm3733, %v3742, %v3743
        %v3745 = vrot.slane %v3705, 4
        %v3746 = vor.u32 %v3745, %v3743
        %v3747 = vrot.slane %v3746, 4
        %3751 = vst [vmem:[#allocation4 + $0x50] sm:$0xc] %v3739
        %3752 = vst [vmem:[#allocation4 + $0x5c] sm:$0xf] %v3744
        %3753 = vst [vmem:[#allocation4 + $0x68] sm:$0x3] %v3747
      $region112: #{double_conv3d_forward.1} parent=39 // pred_fallthru
        _
      // Predicated region
      $region113: #{double_conv3d_forward.1} parent=39 // pred_check
        _
      $region114: #{double_conv3d_forward.1} parent=39 // pred_check_branch
        %3755 = sbr.rel (%p931) target = $region116
      $region115: #{double_conv3d_forward.1} parent=39 // pred_region
        %v3756 = vld [vmem:[#allocation3 + $0x30] sm:$0x8]
        %v3757 = vld [vmem:[#allocation3 + $0x34] sm:$0xf]
        %v3758 = vld [vmem:[#allocation3 + $0x38] sm:$0x7]
        %vm3759 = vsmask.f32 4368
        %vm3760 = vmor %vm342, %vm3759
        %v3762 = vshll.u32 %v3756, 16
        %v3764 = vshrl.u32 %v3756, 16
        %v3766 = vrot.slane %v3764, 7
        %v3767 = vrot.slane %v3766, 4
        %v3769 = vshrl.u32 %v3757, 16
        %v3771 = vrot.slane %v3769, 7
        %v3772 = vshll.u32 %v3757, 16
        %v3774 = vor.u32 %v3771, %v3772
        %v3775 = vsel %vm3760, %v3767, %v3774
        %v3776 = vrot.slane %v3771, 4
        %v3778 = vshrl.u32 %v3758, 16
        %v3780 = vrot.slane %v3778, 7
        %v3781 = vshll.u32 %v3758, 16
        %v3783 = vor.u32 %v3780, %v3781
        %v3784 = vsel %vm3760, %v3776, %v3783
        %vm3788 = vcmask 1043459
        %vm3789 = vsmask.f32 7950
        %vm3790 = vmand %vm3788, %vm3789
        %v3791 = vld [vmem:[#allocation4 + $0x90] sm:$0x8]
        %v3792 = vsel %vm3790, %v3762, %v3791
        %3793 = vst [vmem:[#allocation4 + $0x90] sm:$0x8] %v3792
        %3794 = vst [vmem:[#allocation4 + $0x9c] sm:$0xf] %v3775
        %vm3795 = vcmask 1043456
        %vm3796 = vsmask.f32 3328
        %vm3797 = vmand %vm3795, %vm3796
        %v3798 = vld [vmem:[#allocation4 + $0xa8] sm:$0xf]
        %v3799 = vsel %vm3797, %v3784, %v3798
        %3800 = vst [vmem:[#allocation4 + $0xa8] sm:$0xf] %v3799
        %3801 = vst [vmem:[#allocation4 + $0x7c] sm:$0x8] %v3756
        %3802 = vst [vmem:[#allocation4 + $0x88] sm:$0xf] %v3757
        %3803 = vst [vmem:[#allocation4 + $0x94] sm:$0x7] %v3758
        %vm3804 = vsmask.f32 7440
        %vm3805 = vmor %vm3796, %vm3804
        %v3806 = vrot.slane %v3764, 4
        %v3807 = vrot.slane %v3762, 5
        %v3808 = vor.u32 %v3806, %v3807
        %v3809 = vrot.slane %v3808, 4
        %v3810 = vrot.slane %v3772, 5
        %v3811 = vsel %vm3805, %v3809, %v3810
        %v3812 = vrot.slane %v3769, 4
        %v3813 = vor.u32 %v3812, %v3810
        %v3814 = vrot.slane %v3813, 4
        %v3815 = vrot.slane %v3781, 5
        %v3816 = vsel %vm3805, %v3814, %v3815
        %v3817 = vrot.slane %v3778, 4
        %v3818 = vor.u32 %v3817, %v3815
        %v3819 = vrot.slane %v3818, 4
        %vm3823 = vcmask 1043458
        %vm3824 = vsmask.f32 7946
        %vm3825 = vmand %vm3823, %vm3824
        %v3826 = vld [vmem:[#allocation4 + $0x68] sm:$0xc]
        %v3827 = vsel %vm3825, %v3811, %v3826
        %3828 = vst [vmem:[#allocation4 + $0x68] sm:$0xc] %v3827
        %3829 = vst [vmem:[#allocation4 + $0x74] sm:$0xf] %v3816
        %vm3830 = vcmask 1042432
        %vm3831 = vsmask.f32 2304
        %vm3832 = vmand %vm3830, %vm3831
        %v3833 = vld [vmem:[#allocation4 + $0x80] sm:$0x7]
        %v3834 = vsel %vm3832, %v3819, %v3833
        %3835 = vst [vmem:[#allocation4 + $0x80] sm:$0x7] %v3834
      $region116: #{double_conv3d_forward.1} parent=39 // pred_fallthru
        _
      // Predicated region
      $region117: #{double_conv3d_forward.1} parent=39 // pred_check
        _
      $region118: #{double_conv3d_forward.1} parent=39 // pred_check_branch
        %3837 = sbr.rel (%p1005) target = $region120
      $region119: #{double_conv3d_forward.1} parent=39 // pred_region
        %v3838 = vld [vmem:[#allocation3 + $0x38] sm:$0x8]
        %v3839 = vld [vmem:[#allocation3 + $0x3c] sm:$0xf]
        %v3840 = vld [vmem:[#allocation3 + $0x40] sm:$0xf]
        %vm3841 = vsmask.f32 4368
        %vm3842 = vmor %vm342, %vm3841
        %v3844 = vshrl.u32 %v3838, 16
        %v3846 = vrot.slane %v3844, 7
        %v3847 = vrot.slane %v3846, 4
        %v3849 = vshrl.u32 %v3839, 16
        %v3851 = vrot.slane %v3849, 7
        %v3852 = vshll.u32 %v3839, 16
        %v3854 = vor.u32 %v3851, %v3852
        %v3855 = vsel %vm3842, %v3847, %v3854
        %v3856 = vrot.slane %v3851, 4
        %v3858 = vshrl.u32 %v3840, 16
        %v3860 = vrot.slane %v3858, 7
        %v3861 = vshll.u32 %v3840, 16
        %v3863 = vor.u32 %v3860, %v3861
        %v3864 = vsel %vm3842, %v3856, %v3863
        %3867 = vst [vmem:[#allocation4 + $0xb4] sm:$0xf] %v3855
        %3868 = vst [vmem:[#allocation4 + $0xc0] sm:$0xf] %v3864
        %vm3869 = vcmask 1043459
        %vm3870 = vsmask.f32 7950
        %vm3871 = vmand %vm3869, %vm3870
        %v3872 = vld [vmem:[#allocation4 + $0x94] sm:$0x8]
        %v3873 = vsel %vm3871, %v3838, %v3872
        %3874 = vst [vmem:[#allocation4 + $0x94] sm:$0x8] %v3873
        %3875 = vst [vmem:[#allocation4 + $0xa0] sm:$0xf] %v3839
        %vm3876 = vcmask 1043456
        %vm3877 = vsmask.f32 3328
        %vm3878 = vmand %vm3876, %vm3877
        %v3879 = vld [vmem:[#allocation4 + $0xac] sm:$0xf]
        %v3880 = vsel %vm3878, %v3840, %v3879
        %3881 = vst [vmem:[#allocation4 + $0xac] sm:$0xf] %v3880
        %vm3882 = vsmask.f32 7440
        %vm3883 = vmor %vm3877, %vm3882
        %v3884 = vrot.slane %v3844, 4
        %v3885 = vrot.slane %v3884, 4
        %v3886 = vrot.slane %v3852, 5
        %v3887 = vsel %vm3883, %v3885, %v3886
        %v3888 = vrot.slane %v3849, 4
        %v3889 = vor.u32 %v3888, %v3886
        %v3890 = vrot.slane %v3889, 4
        %v3891 = vrot.slane %v3861, 5
        %v3892 = vsel %vm3883, %v3890, %v3891
        %v3893 = vrot.slane %v3858, 4
        %v3894 = vor.u32 %v3893, %v3891
        %v3895 = vrot.slane %v3894, 4
        %3899 = vst [vmem:[#allocation4 + $0x80] sm:$0x8] %v3887
        %3900 = vst [vmem:[#allocation4 + $0x8c] sm:$0xf] %v3892
        %3901 = vst [vmem:[#allocation4 + $0x98] sm:$0x7] %v3895
      $region120: #{double_conv3d_forward.1} parent=39 // pred_fallthru
        _
      // Predicated region
      $region121: #{double_conv3d_forward.1} parent=39 // pred_check
        _
      $region122: #{double_conv3d_forward.1} parent=39 // pred_check_branch
        %3903 = sbr.rel (%p1084) target = $region124
      $region123: #{double_conv3d_forward.1} parent=39 // pred_region
        %v3904 = vld [vmem:[#allocation3 + $0x44] sm:$0xf]
        %v3905 = vld [vmem:[#allocation3 + $0x48] sm:$0xf]
        %3906 = vst [vmem:[#allocation4 + $0xb8] sm:$0xf] %v3904
        %3907 = vst [vmem:[#allocation4 + $0xc4] sm:$0xf] %v3905
        %vm3908 = vsmask.f32 3328
        %vm3909 = vsmask.f32 7440
        %vm3910 = vmor %vm3908, %vm3909
        %v3912 = vshll.u32 %v3904, 16
        %v3914 = vrot.slane %v3912, 5
        %v3915 = vshrl.u32 %v3904, 16
        %v3917 = vrot.slane %v3915, 4
        %v3918 = vor.u32 %v3917, %v3914
        %v3919 = vrot.slane %v3918, 4
        %v3921 = vshll.u32 %v3905, 16
        %v3923 = vrot.slane %v3921, 5
        %v3924 = vsel %vm3910, %v3919, %v3923
        %v3925 = vshrl.u32 %v3905, 16
        %v3927 = vrot.slane %v3925, 4
        %v3928 = vor.u32 %v3927, %v3923
        %v3929 = vrot.slane %v3928, 4
        %vm3933 = vcmask 1043459
        %vm3934 = vsmask.f32 7950
        %vm3935 = vmand %vm3933, %vm3934
        %v3936 = vld [vmem:[#allocation4 + $0x98] sm:$0x8]
        %v3937 = vsel %vm3935, %v3914, %v3936
        %3938 = vst [vmem:[#allocation4 + $0x98] sm:$0x8] %v3937
        %3939 = vst [vmem:[#allocation4 + $0xa4] sm:$0xf] %v3924
        %vm3940 = vcmask 1043456
        %vm3941 = vmand %vm3940, %vm3908
        %v3942 = vld [vmem:[#allocation4 + $0xb0] sm:$0xf]
        %v3943 = vsel %vm3941, %v3929, %v3942
        %3944 = vst [vmem:[#allocation4 + $0xb0] sm:$0xf] %v3943
      $region124: #{double_conv3d_forward.1} parent=39 // pred_fallthru
        _
      // Predicated region
      $region125: #{double_conv3d_forward.1} parent=39 // pred_check
        _
      $region126: #{double_conv3d_forward.1} parent=39 // pred_check_branch
        %3946 = sbr.rel (%p1153) target = $region128
      $region127: #{double_conv3d_forward.1} parent=39 // pred_region
        %v3947 = vld [vmem:[#allocation3 + $0x4c] sm:$0xf]
        %v3948 = vld [vmem:[#allocation3 + $0x50] sm:$0xf]
        %v3949 = vld [vmem:[#allocation3 + $0x54] sm:$0x1]
        %vm3950 = vsmask.f32 3328
        %vm3951 = vsmask.f32 7440
        %vm3952 = vmor %vm3950, %vm3951
        %v3954 = vshrl.u32 %v3947, 16
        %v3956 = vrot.slane %v3954, 4
        %v3957 = vshll.u32 %v3947, 16
        %v3959 = vrot.slane %v3957, 5
        %v3960 = vor.u32 %v3956, %v3959
        %v3961 = vrot.slane %v3960, 4
        %v3963 = vshll.u32 %v3948, 16
        %v3965 = vrot.slane %v3963, 5
        %v3966 = vsel %vm3952, %v3961, %v3965
        %v3967 = vshrl.u32 %v3948, 16
        %v3969 = vrot.slane %v3967, 4
        %v3970 = vor.u32 %v3969, %v3965
        %v3971 = vrot.slane %v3970, 4
        %v3973 = vshll.u32 %v3949, 16
        %v3975 = vrot.slane %v3973, 5
        %v3976 = vsel %vm3952, %v3971, %v3975
        %3979 = vst [vmem:[#allocation4 + $0xbc] sm:$0xf] %v3966
        %3980 = vst [vmem:[#allocation4 + $0xc8] sm:$0xf] %v3976
      $region128: #{double_conv3d_forward.1} parent=39 // pred_fallthru
        _
      %v3981 = vld [vmem:[#allocation4] sm:$0xff]
      %v3982 = vld [vmem:[#allocation4 + $0x8] sm:$0xf]
      %v3983 = vld [vmem:[#allocation4 + $0xc] sm:$0xff]
      %v3984 = vld [vmem:[#allocation4 + $0x14] sm:$0xf]
      %v3985 = vld [vmem:[#allocation4 + $0x18] sm:$0xff]
      %v3986 = vld [vmem:[#allocation4 + $0x20] sm:$0xf]
      %v3987 = vld [vmem:[#allocation4 + $0x24] sm:$0xff]
      %v3988 = vld [vmem:[#allocation4 + $0x2c] sm:$0xf]
      %v3989 = vld [vmem:[#allocation4 + $0x30] sm:$0xff]
      %v3990 = vld [vmem:[#allocation4 + $0x38] sm:$0xf]
      %v3991 = vld [vmem:[#allocation4 + $0x3c] sm:$0xff]
      %v3992 = vld [vmem:[#allocation4 + $0x44] sm:$0xf]
      %v3993 = vld [vmem:[#allocation4 + $0x48] sm:$0xff]
      %v3994 = vld [vmem:[#allocation4 + $0x50] sm:$0xf]
      %v3995 = vld [vmem:[#allocation4 + $0x54] sm:$0xff]
      %v3996 = vld [vmem:[#allocation4 + $0x5c] sm:$0xf]
      %v3997 = vld [vmem:[#allocation4 + $0x60] sm:$0xff]
      %v3998 = vld [vmem:[#allocation4 + $0x68] sm:$0xf]
      %v3999 = vld [vmem:[#allocation4 + $0x6c] sm:$0xff]
      %v4000 = vld [vmem:[#allocation4 + $0x74] sm:$0xf]
      %v4001 = vld [vmem:[#allocation4 + $0x78] sm:$0xff]
      %v4002 = vld [vmem:[#allocation4 + $0x80] sm:$0xf]
      %v4003 = vld [vmem:[#allocation4 + $0x84] sm:$0xff]
      %v4004 = vld [vmem:[#allocation4 + $0x8c] sm:$0xf]
      %v4005 = vld [vmem:[#allocation4 + $0x90] sm:$0xff]
      %v4006 = vld [vmem:[#allocation4 + $0x98] sm:$0xf]
      %v4007 = vld [vmem:[#allocation4 + $0x9c] sm:$0xff]
      %v4008 = vld [vmem:[#allocation4 + $0xa4] sm:$0xf]
      %v4009 = vld [vmem:[#allocation4 + $0xa8] sm:$0xff]
      %v4010 = vld [vmem:[#allocation4 + $0xb0] sm:$0xf]
      %v4011 = vld [vmem:[#allocation4 + $0xb4] sm:$0xff]
      %v4012 = vld [vmem:[#allocation4 + $0xbc] sm:$0xf]
      %v4013 = vld [vmem:[#allocation4 + $0xc0] sm:$0xff]
      %v4014 = vld [vmem:[#allocation4 + $0xc8] sm:$0xf]
      %v4015 = vld [vmem:[%s3] sm:$0xf]
      %v4016 = vld [vmem:[%s3 + $0x4] sm:$0xf]
      %v4017 = vld [vmem:[%s3 + $0x8] sm:$0xf]
      %v4018 = vld [vmem:[%s3 + $0xc] sm:$0xf]
      %v4019 = vld [vmem:[%s3 + $0x10] sm:$0xf]
      %v4020 = vld [vmem:[%s3 + $0x14] sm:$0xf]
      %v4021 = vld [vmem:[%s3 + $0x18] sm:$0xf]
      %v4022 = vld [vmem:[%s3 + $0x1c] sm:$0xf]
      %v4023 = vld [vmem:[%s3 + $0x20] sm:$0xf]
      %v4024 = vld [vmem:[%s3 + $0x24] sm:$0xf]
      %v4025 = vld [vmem:[%s3 + $0x28] sm:$0xf]
      %v4026 = vld [vmem:[%s3 + $0x2c] sm:$0xf]
      %v4027 = vld [vmem:[%s3 + $0x30] sm:$0xf]
      %v4028 = vld [vmem:[%s3 + $0x34] sm:$0xf]
      %v4029 = vld [vmem:[%s3 + $0x38] sm:$0xf]
      %v4030 = vld [vmem:[%s3 + $0x3c] sm:$0xf]
      %v4031 = vld [vmem:[%s3 + $0x40] sm:$0xf]
      %v4032 = vld [vmem:[%s3 + $0x44] sm:$0xf]
      %v4033 = vld [vmem:[%s3 + $0x48] sm:$0xf]
      %v4034 = vld [vmem:[%s3 + $0x4c] sm:$0xf]
      %v4035 = vld [vmem:[%s3 + $0x50] sm:$0xf]
      %v4036 = vld [vmem:[%s3 + $0x54] sm:$0xf]
      %v4037 = vld [vmem:[%s3 + $0x58] sm:$0xf]
      %v4038 = vld [vmem:[%s3 + $0x5c] sm:$0xf]
      %v4039 = vld [vmem:[%s3 + $0x60] sm:$0xf]
      %v4040 = vld [vmem:[%s3 + $0x64] sm:$0xf]
      %v4041 = vld [vmem:[%s3 + $0x68] sm:$0xf]
      %v4042 = vld [vmem:[%s3 + $0x6c] sm:$0xf]
      %v4043 = vld [vmem:[%s3 + $0x70] sm:$0xf]
      %v4044 = vld [vmem:[%s3 + $0x74] sm:$0xf]
      %v4045 = vld [vmem:[%s3 + $0x78] sm:$0xf]
      %v4046 = vld [vmem:[%s3 + $0x7c] sm:$0xf]
      %v4047 = vld [vmem:[%s3 + $0x80] sm:$0xf]
      %v4048 = vld [vmem:[%s3 + $0x84] sm:$0xf]
      %v4049 = vld [vmem:[%s3 + $0x88] sm:$0xf]
      %v4050 = vld [vmem:[%s3 + $0x8c] sm:$0xf]
      %v4051 = vld [vmem:[%s3 + $0x90] sm:$0xf]
      %v4052 = vld [vmem:[%s3 + $0x94] sm:$0xf]
      %v4053 = vld [vmem:[%s3 + $0x98] sm:$0xf]
      %v4054 = vld [vmem:[%s3 + $0x9c] sm:$0xf]
      %v4055 = vld [vmem:[%s3 + $0xa0] sm:$0xf]
      %v4056 = vld [vmem:[%s3 + $0xa4] sm:$0xf]
      %v4057 = vld [vmem:[%s3 + $0xa8] sm:$0xf]
      %v4058 = vld [vmem:[%s3 + $0xac] sm:$0xf]
      %v4059 = vld [vmem:[%s3 + $0xb0] sm:$0xf]
      %v4060 = vld [vmem:[%s3 + $0xb4] sm:$0xf]
      %v4061 = vld [vmem:[%s3 + $0xb8] sm:$0xf]
      %v4062 = vld [vmem:[%s3 + $0xbc] sm:$0xf]
      %s4063 = scalar_lea.vmem %s3, 192
      %v4064 = vld [vmem:[%s4063] sm:$0xf]
      %v4065 = vld [vmem:[%s4063 + $0x4] sm:$0xf]
      %v4066 = vld [vmem:[%s4063 + $0x8] sm:$0xf]
      %v4067 = vld [vmem:[%s4063 + $0xc] sm:$0xf]
      %v4068 = vld [vmem:[%s4063 + $0x10] sm:$0xf]
      %v4069 = vld [vmem:[%s4063 + $0x14] sm:$0xf]
      %v4070 = vld [vmem:[%s4063 + $0x18] sm:$0xf]
      %v4071 = vld [vmem:[%s4063 + $0x1c] sm:$0xf]
      %v4072 = vld [vmem:[%s4063 + $0x20] sm:$0xf]
      %v4073 = vld [vmem:[%s4063 + $0x24] sm:$0xf]
      %v4074 = vld [vmem:[%s4063 + $0x28] sm:$0xf]
      %v4075 = vld [vmem:[%s4063 + $0x2c] sm:$0xf]
      %v4076 = vld [vmem:[%s4063 + $0x30] sm:$0xf]
      %v4077 = vld [vmem:[%s4063 + $0x34] sm:$0xf]
      %v4078 = vld [vmem:[%s4063 + $0x38] sm:$0xf]
      %v4079 = vld [vmem:[%s4063 + $0x3c] sm:$0xf]
      %v4080 = vld [vmem:[%s4063 + $0x40] sm:$0xf]
      %v4081 = vld [vmem:[%s4063 + $0x44] sm:$0xf]
      %v4082 = vld [vmem:[%s4063 + $0x48] sm:$0xf]
      %v4083 = vld [vmem:[%s4063 + $0x4c] sm:$0xf]
      %v4084 = vld [vmem:[%s4063 + $0x50] sm:$0xf]
      %v4085 = vld [vmem:[%s4063 + $0x54] sm:$0xf]
      %v4086 = vld [vmem:[%s4063 + $0x58] sm:$0xf]
      %v4087 = vld [vmem:[%s4063 + $0x5c] sm:$0xf]
      %v4088 = vld [vmem:[%s4063 + $0x60] sm:$0xf]
      %v4089 = vld [vmem:[%s4063 + $0x64] sm:$0xf]
      %v4090 = vld [vmem:[%s4063 + $0x68] sm:$0xf]
      %v4091 = vld [vmem:[%s4063 + $0x6c] sm:$0xf]
      %v4092 = vld [vmem:[%s4063 + $0x70] sm:$0xf]
      %v4093 = vld [vmem:[%s4063 + $0x74] sm:$0xf]
      %v4094 = vld [vmem:[%s4063 + $0x78] sm:$0xf]
      %v4095 = vld [vmem:[%s4063 + $0x7c] sm:$0xf]
      %v4096 = vld [vmem:[%s4063 + $0x80] sm:$0xf]
      %v4097 = vld [vmem:[%s4063 + $0x84] sm:$0xf]
      %v4098 = vld [vmem:[%s4063 + $0x88] sm:$0xf]
      %v4099 = vld [vmem:[%s4063 + $0x8c] sm:$0xf]
      %v4100 = vld [vmem:[%s4063 + $0x90] sm:$0xf]
      %v4101 = vld [vmem:[%s4063 + $0x94] sm:$0xf]
      %v4102 = vld [vmem:[%s4063 + $0x98] sm:$0xf]
      %v4103 = vld [vmem:[%s4063 + $0x9c] sm:$0xf]
      %v4104 = vld [vmem:[%s4063 + $0xa0] sm:$0xf]
      %v4105 = vld [vmem:[%s4063 + $0xa4] sm:$0xf]
      %v4106 = vld [vmem:[%s4063 + $0xa8] sm:$0xf]
      %v4107 = vld [vmem:[%s4063 + $0xac] sm:$0xf]
      %v4108 = vld [vmem:[%s4063 + $0xb0] sm:$0xf]
      %v4109 = vld [vmem:[%s4063 + $0xb4] sm:$0xf]
      %v4110 = vld [vmem:[%s4063 + $0xb8] sm:$0xf]
      %v4111 = vld [vmem:[%s4063 + $0xbc] sm:$0xf]
      %v4146 = vunpack.c.l.b16 %v3981
      %v4147 = vunpack.c.h.b16 %v3981
      %v4148 = vunpack.c.l.b16 %v3982
      %v4149 = vunpack.c.l.b16 %v3983
      %v4150 = vunpack.c.h.b16 %v3983
      %v4151 = vunpack.c.l.b16 %v3984
      %v4152 = vunpack.c.l.b16 %v3985
      %v4153 = vunpack.c.h.b16 %v3985
      %v4154 = vunpack.c.l.b16 %v3986
      %v4155 = vunpack.c.l.b16 %v3987
      %v4156 = vunpack.c.h.b16 %v3987
      %v4157 = vunpack.c.l.b16 %v3988
      %v4158 = vunpack.c.l.b16 %v3989
      %v4159 = vunpack.c.h.b16 %v3989
      %v4160 = vunpack.c.l.b16 %v3990
      %v4161 = vunpack.c.l.b16 %v3991
      %v4162 = vunpack.c.h.b16 %v3991
      %v4163 = vunpack.c.l.b16 %v3992
      %v4164 = vunpack.c.l.b16 %v3993
      %v4165 = vunpack.c.h.b16 %v3993
      %v4166 = vunpack.c.l.b16 %v3994
      %v4167 = vunpack.c.l.b16 %v3995
      %v4168 = vunpack.c.h.b16 %v3995
      %v4169 = vunpack.c.l.b16 %v3996
      %v4170 = vunpack.c.l.b16 %v3997
      %v4171 = vunpack.c.h.b16 %v3997
      %v4172 = vunpack.c.l.b16 %v3998
      %v4173 = vunpack.c.l.b16 %v3999
      %v4174 = vunpack.c.h.b16 %v3999
      %v4175 = vunpack.c.l.b16 %v4000
      %v4176 = vunpack.c.l.b16 %v4001
      %v4177 = vunpack.c.h.b16 %v4001
      %v4178 = vunpack.c.l.b16 %v4002
      %v4179 = vunpack.c.l.b16 %v4003
      %v4180 = vunpack.c.h.b16 %v4003
      %v4181 = vunpack.c.l.b16 %v4004
      %v4182 = vunpack.c.l.b16 %v4005
      %v4183 = vunpack.c.h.b16 %v4005
      %v4184 = vunpack.c.l.b16 %v4006
      %v4185 = vunpack.c.l.b16 %v4007
      %v4186 = vunpack.c.h.b16 %v4007
      %v4187 = vunpack.c.l.b16 %v4008
      %v4188 = vunpack.c.l.b16 %v4009
      %v4189 = vunpack.c.h.b16 %v4009
      %v4190 = vunpack.c.l.b16 %v4010
      %v4191 = vunpack.c.l.b16 %v4011
      %v4192 = vunpack.c.h.b16 %v4011
      %v4193 = vunpack.c.l.b16 %v4012
      %v4194 = vunpack.c.l.b16 %v4013
      %v4195 = vunpack.c.h.b16 %v4013
      %v4196 = vunpack.c.l.b16 %v4014
      %v4197 = vpack.c.b16 %v4149, %v4146
      %v4198 = vpack.c.b16 %v4150, %v4147
      %v4199 = vpack.c.b16 %v4151, %v4148
      %v4200 = vpack.c.b16 %v4155, %v4152
      %v4201 = vpack.c.b16 %v4156, %v4153
      %v4202 = vpack.c.b16 %v4157, %v4154
      %v4203 = vpack.c.b16 %v4161, %v4158
      %v4204 = vpack.c.b16 %v4162, %v4159
      %v4205 = vpack.c.b16 %v4163, %v4160
      %v4206 = vpack.c.b16 %v4167, %v4164
      %v4207 = vpack.c.b16 %v4168, %v4165
      %v4208 = vpack.c.b16 %v4169, %v4166
      %v4209 = vpack.c.b16 %v4173, %v4170
      %v4210 = vpack.c.b16 %v4174, %v4171
      %v4211 = vpack.c.b16 %v4175, %v4172
      %v4212 = vpack.c.b16 %v4179, %v4176
      %v4213 = vpack.c.b16 %v4180, %v4177
      %v4214 = vpack.c.b16 %v4181, %v4178
      %v4215 = vpack.c.b16 %v4185, %v4182
      %v4216 = vpack.c.b16 %v4186, %v4183
      %v4217 = vpack.c.b16 %v4187, %v4184
      %v4218 = vpack.c.b16 %v4191, %v4188
      %v4219 = vpack.c.b16 %v4192, %v4189
      %v4220 = vpack.c.b16 %v4193, %v4190
      %v4221 = vpack.c.b16 %v4194, %v4194
      %v4222 = vpack.c.b16 %v4195, %v4195
      %v4223 = vpack.c.b16 %v4196, %v4196
      %v4225 = vshrl.u32 %v4197, 16
      %v4227 = vshll.u32 %v4197, 16
      %v4229 = vrot.slane %v4227, 1
      %v4230 = vor.u32 %v4225, %v4229
      %v4232 = vshll.u32 %v4200, 16
      %v4234 = vrot.slane %v4232, 1
      %v4235 = vsel %vm1534, %v4230, %v4234
      %v4237 = vshrl.u32 %v4198, 16
      %v4239 = vshll.u32 %v4198, 16
      %v4241 = vrot.slane %v4239, 1
      %v4242 = vor.u32 %v4237, %v4241
      %v4244 = vshll.u32 %v4201, 16
      %v4246 = vrot.slane %v4244, 1
      %v4247 = vsel %vm1534, %v4242, %v4246
      %v4249 = vshrl.u32 %v4199, 16
      %v4251 = vshll.u32 %v4199, 16
      %v4253 = vrot.slane %v4251, 1
      %v4254 = vor.u32 %v4249, %v4253
      %v4256 = vshll.u32 %v4202, 16
      %v4258 = vrot.slane %v4256, 1
      %v4259 = vsel %vm1534, %v4254, %v4258
      %v4260 = vshrl.u32 %v4200, 16
      %v4262 = vor.u32 %v4260, %v4234
      %v4264 = vshll.u32 %v4203, 16
      %v4266 = vrot.slane %v4264, 1
      %v4267 = vsel %vm1534, %v4262, %v4266
      %v4268 = vshrl.u32 %v4201, 16
      %v4270 = vor.u32 %v4268, %v4246
      %v4272 = vshll.u32 %v4204, 16
      %v4274 = vrot.slane %v4272, 1
      %v4275 = vsel %vm1534, %v4270, %v4274
      %v4276 = vshrl.u32 %v4202, 16
      %v4278 = vor.u32 %v4276, %v4258
      %v4280 = vshll.u32 %v4205, 16
      %v4282 = vrot.slane %v4280, 1
      %v4283 = vsel %vm1534, %v4278, %v4282
      %v4284 = vshrl.u32 %v4203, 16
      %v4286 = vor.u32 %v4284, %v4266
      %v4288 = vshll.u32 %v4206, 16
      %v4290 = vrot.slane %v4288, 1
      %v4291 = vsel %vm1534, %v4286, %v4290
      %v4292 = vshrl.u32 %v4204, 16
      %v4294 = vor.u32 %v4292, %v4274
      %v4296 = vshll.u32 %v4207, 16
      %v4298 = vrot.slane %v4296, 1
      %v4299 = vsel %vm1534, %v4294, %v4298
      %v4300 = vshrl.u32 %v4205, 16
      %v4302 = vor.u32 %v4300, %v4282
      %v4304 = vshll.u32 %v4208, 16
      %v4306 = vrot.slane %v4304, 1
      %v4307 = vsel %vm1534, %v4302, %v4306
      %v4308 = vshrl.u32 %v4206, 16
      %v4310 = vor.u32 %v4308, %v4290
      %v4312 = vshll.u32 %v4209, 16
      %v4314 = vrot.slane %v4312, 1
      %v4315 = vsel %vm1534, %v4310, %v4314
      %v4316 = vshrl.u32 %v4207, 16
      %v4318 = vor.u32 %v4316, %v4298
      %v4320 = vshll.u32 %v4210, 16
      %v4322 = vrot.slane %v4320, 1
      %v4323 = vsel %vm1534, %v4318, %v4322
      %v4324 = vshrl.u32 %v4208, 16
      %v4326 = vor.u32 %v4324, %v4306
      %v4328 = vshll.u32 %v4211, 16
      %v4330 = vrot.slane %v4328, 1
      %v4331 = vsel %vm1534, %v4326, %v4330
      %v4332 = vshrl.u32 %v4209, 16
      %v4334 = vor.u32 %v4332, %v4314
      %v4336 = vshll.u32 %v4212, 16
      %v4338 = vrot.slane %v4336, 1
      %v4339 = vsel %vm1534, %v4334, %v4338
      %v4340 = vshrl.u32 %v4210, 16
      %v4342 = vor.u32 %v4340, %v4322
      %v4344 = vshll.u32 %v4213, 16
      %v4346 = vrot.slane %v4344, 1
      %v4347 = vsel %vm1534, %v4342, %v4346
      %v4348 = vshrl.u32 %v4211, 16
      %v4350 = vor.u32 %v4348, %v4330
      %v4352 = vshll.u32 %v4214, 16
      %v4354 = vrot.slane %v4352, 1
      %v4355 = vsel %vm1534, %v4350, %v4354
      %v4356 = vshrl.u32 %v4212, 16
      %v4358 = vor.u32 %v4356, %v4338
      %v4360 = vshll.u32 %v4215, 16
      %v4362 = vrot.slane %v4360, 1
      %v4363 = vsel %vm1534, %v4358, %v4362
      %v4364 = vshrl.u32 %v4213, 16
      %v4366 = vor.u32 %v4364, %v4346
      %v4368 = vshll.u32 %v4216, 16
      %v4370 = vrot.slane %v4368, 1
      %v4371 = vsel %vm1534, %v4366, %v4370
      %v4372 = vshrl.u32 %v4214, 16
      %v4374 = vor.u32 %v4372, %v4354
      %v4376 = vshll.u32 %v4217, 16
      %v4378 = vrot.slane %v4376, 1
      %v4379 = vsel %vm1534, %v4374, %v4378
      %v4380 = vshrl.u32 %v4215, 16
      %v4382 = vor.u32 %v4380, %v4362
      %v4384 = vshll.u32 %v4218, 16
      %v4386 = vrot.slane %v4384, 1
      %v4387 = vsel %vm1534, %v4382, %v4386
      %v4388 = vshrl.u32 %v4216, 16
      %v4390 = vor.u32 %v4388, %v4370
      %v4392 = vshll.u32 %v4219, 16
      %v4394 = vrot.slane %v4392, 1
      %v4395 = vsel %vm1534, %v4390, %v4394
      %v4396 = vshrl.u32 %v4217, 16
      %v4398 = vor.u32 %v4396, %v4378
      %v4400 = vshll.u32 %v4220, 16
      %v4402 = vrot.slane %v4400, 1
      %v4403 = vsel %vm1534, %v4398, %v4402
      %v4404 = vshrl.u32 %v4218, 16
      %v4406 = vor.u32 %v4404, %v4386
      %v4408 = vshll.u32 %v4221, 16
      %v4410 = vrot.slane %v4408, 1
      %v4411 = vsel %vm1534, %v4406, %v4410
      %v4412 = vshrl.u32 %v4219, 16
      %v4414 = vor.u32 %v4412, %v4394
      %v4416 = vshll.u32 %v4222, 16
      %v4418 = vrot.slane %v4416, 1
      %v4419 = vsel %vm1534, %v4414, %v4418
      %v4420 = vshrl.u32 %v4220, 16
      %v4422 = vor.u32 %v4420, %v4402
      %v4424 = vshll.u32 %v4223, 16
      %v4426 = vrot.slane %v4424, 1
      %v4427 = vsel %vm1534, %v4422, %v4426
      %v4428 = vshrl.u32 %v4221, 16
      %v4430 = vor.u32 %v4428, %v4410
      %v4431 = vshrl.u32 %v4222, 16
      %v4433 = vor.u32 %v4431, %v4418
      %v4434 = vshrl.u32 %v4223, 16
      %v4436 = vor.u32 %v4434, %v4426
      %v4512 = vunpack.c.l.b16 %v4064
      %v4513 = vunpack.c.l.b16 %v4065
      %v4514 = vunpack.c.l.b16 %v4066
      %v4515 = vunpack.c.l.b16 %v4067
      %v4516 = vunpack.c.l.b16 %v4068
      %v4517 = vunpack.c.l.b16 %v4069
      %v4518 = vunpack.c.l.b16 %v4070
      %v4519 = vunpack.c.l.b16 %v4071
      %v4520 = vunpack.c.l.b16 %v4072
      %v4521 = vunpack.c.l.b16 %v4073
      %v4522 = vunpack.c.l.b16 %v4074
      %v4523 = vunpack.c.l.b16 %v4075
      %v4524 = vunpack.c.l.b16 %v4076
      %v4525 = vunpack.c.l.b16 %v4077
      %v4526 = vunpack.c.l.b16 %v4078
      %v4527 = vunpack.c.l.b16 %v4079
      %v4528 = vunpack.c.l.b16 %v4080
      %v4529 = vunpack.c.l.b16 %v4081
      %v4530 = vunpack.c.l.b16 %v4082
      %v4531 = vunpack.c.l.b16 %v4083
      %v4532 = vunpack.c.l.b16 %v4084
      %v4533 = vunpack.c.l.b16 %v4085
      %v4534 = vunpack.c.l.b16 %v4086
      %v4535 = vunpack.c.l.b16 %v4087
      %v4536 = vunpack.c.l.b16 %v4088
      %v4537 = vunpack.c.l.b16 %v4089
      %v4538 = vunpack.c.l.b16 %v4090
      %v4539 = vunpack.c.l.b16 %v4091
      %v4540 = vunpack.c.l.b16 %v4092
      %v4541 = vunpack.c.l.b16 %v4093
      %v4542 = vunpack.c.l.b16 %v4094
      %v4543 = vunpack.c.l.b16 %v4095
      %v4544 = vunpack.c.l.b16 %v4096
      %v4545 = vunpack.c.l.b16 %v4097
      %v4546 = vunpack.c.l.b16 %v4098
      %v4547 = vunpack.c.l.b16 %v4099
      %v4548 = vunpack.c.l.b16 %v4100
      %v4549 = vunpack.c.l.b16 %v4101
      %v4550 = vunpack.c.l.b16 %v4102
      %v4551 = vunpack.c.l.b16 %v4103
      %v4552 = vunpack.c.l.b16 %v4104
      %v4553 = vunpack.c.l.b16 %v4105
      %v4554 = vunpack.c.l.b16 %v4106
      %v4555 = vunpack.c.l.b16 %v4107
      %v4556 = vunpack.c.l.b16 %v4108
      %v4557 = vunpack.c.l.b16 %v4109
      %v4558 = vunpack.c.l.b16 %v4110
      %v4559 = vunpack.c.l.b16 %v4111
      %v4560 = vpack.c.b16 %v4513, %v4512
      %v4561 = vpack.c.b16 %v4515, %v4514
      %v4562 = vpack.c.b16 %v4517, %v4516
      %v4563 = vpack.c.b16 %v4519, %v4518
      %v4564 = vpack.c.b16 %v4521, %v4520
      %v4565 = vpack.c.b16 %v4523, %v4522
      %v4566 = vpack.c.b16 %v4525, %v4524
      %v4567 = vpack.c.b16 %v4527, %v4526
      %v4568 = vpack.c.b16 %v4529, %v4528
      %v4569 = vpack.c.b16 %v4531, %v4530
      %v4570 = vpack.c.b16 %v4533, %v4532
      %v4571 = vpack.c.b16 %v4535, %v4534
      %v4572 = vpack.c.b16 %v4537, %v4536
      %v4573 = vpack.c.b16 %v4539, %v4538
      %v4574 = vpack.c.b16 %v4541, %v4540
      %v4575 = vpack.c.b16 %v4543, %v4542
      %v4576 = vpack.c.b16 %v4545, %v4544
      %v4577 = vpack.c.b16 %v4547, %v4546
      %v4578 = vpack.c.b16 %v4549, %v4548
      %v4579 = vpack.c.b16 %v4551, %v4550
      %v4580 = vpack.c.b16 %v4553, %v4552
      %v4581 = vpack.c.b16 %v4555, %v4554
      %v4582 = vpack.c.b16 %v4557, %v4556
      %v4583 = vpack.c.b16 %v4559, %v4558
      %4608 = vmatprep.subr.bf16.mxu0 0
      %4609 = vmatpush1.bf16.msra.mxu0 %v4560
      %4610 = vmatprep.subr.bf16.mxu0 0
      %4611 = vmatpush1.bf16.msra.mxu0 %v4561
      %4612 = vmatprep.subr.bf16.mxu0 0
      %4613 = vmatpush1.bf16.msra.mxu0 %v4562
      %4614 = vmatprep.subr.bf16.mxu0 0
      %4615 = vmatpush1.bf16.msra.mxu0 %v4563
      %4616 = vmatprep.subr.bf16.mxu0 0
      %4617 = vmatpush1.bf16.msra.mxu0 %v4564
      %4618 = vmatprep.subr.bf16.mxu0 0
      %4619 = vmatpush1.bf16.msra.mxu0 %v4565
      %4620 = vmatprep.subr.bf16.mxu0 0
      %4621 = vmatpush1.bf16.msra.mxu0 %v4566
      %4622 = vmatprep.subr.bf16.mxu0 0
      %4623 = vmatpush1.bf16.msra.mxu0 %v4567
      %4624 = vmatprep.subr.bf16.mxu0 0
      %4625 = vmatpush1.bf16.msra.mxu0 %v4568
      %4626 = vmatprep.subr.bf16.mxu0 0
      %4627 = vmatpush1.bf16.msra.mxu0 %v4569
      %4628 = vmatprep.subr.bf16.mxu0 0
      %4629 = vmatpush1.bf16.msra.mxu0 %v4570
      %4630 = vmatprep.subr.bf16.mxu0 0
      %4631 = vmatpush1.bf16.msra.mxu0 %v4571
      %4632 = vmatprep.subr.bf16.mxu0 0
      %4633 = vmatpush1.bf16.msra.mxu0 %v4572
      %4634 = vmatprep.subr.bf16.mxu0 0
      %4635 = vmatpush1.bf16.msra.mxu0 %v4573
      %4636 = vmatprep.subr.bf16.mxu0 0
      %4637 = vmatpush1.bf16.msra.mxu0 %v4574
      %4638 = vmatprep.subr.bf16.mxu0 0
      %4639 = vmatpush1.bf16.msra.mxu0 %v4575
      %4640 = vmatprep.mubr.bf16.mxu0 %v4247
      %4641 = vmatmul.mubr.bf16.gmra.mrb[0].mxu0 %v4235
      %v4642 = vpop.f32.mrb[0].mxu0
      %v4643 = vadd.f32 0.0, %v4642
      %v4644 = vpop.f32.mrb[0].mxu0
      %v4645 = vpop.f32.mrb[0].mxu0
      %v4646 = vadd.f32 0.0, %v4645
      %v4647 = vpop.f32.mrb[0].mxu0
      %4648 = vmatprep.mubr.bf16.mxu0 %v4275
      %4649 = vmatmul.mubr.bf16.gmra.mrb[0].mxu0 %v4267
      %v4650 = vpop.f32.mrb[0].mxu0
      %v4651 = vadd.f32 0.0, %v4650
      %v4652 = vpop.f32.mrb[0].mxu0
      %v4653 = vpop.f32.mrb[0].mxu0
      %v4654 = vadd.f32 0.0, %v4653
      %v4655 = vpop.f32.mrb[0].mxu0
      %4656 = vmatprep.mubr.bf16.mxu0 %v4299
      %4657 = vmatmul.mubr.bf16.gmra.mrb[0].mxu0 %v4291
      %v4658 = vpop.f32.mrb[0].mxu0
      %v4659 = vadd.f32 0.0, %v4658
      %v4660 = vpop.f32.mrb[0].mxu0
      %v4661 = vpop.f32.mrb[0].mxu0
      %v4662 = vadd.f32 0.0, %v4661
      %v4663 = vpop.f32.mrb[0].mxu0
      %4664 = vmatprep.mubr.bf16.mxu0 %v4323
      %4665 = vmatmul.mubr.bf16.gmra.mrb[0].mxu0 %v4315
      %v4666 = vpop.f32.mrb[0].mxu0
      %v4667 = vadd.f32 0.0, %v4666
      %v4668 = vpop.f32.mrb[0].mxu0
      %v4669 = vpop.f32.mrb[0].mxu0
      %v4670 = vadd.f32 0.0, %v4669
      %v4671 = vpop.f32.mrb[0].mxu0
      %4672 = vmatprep.mubr.bf16.mxu0 %v4347
      %4673 = vmatmul.mubr.bf16.gmra.mrb[0].mxu0 %v4339
      %v4674 = vpop.f32.mrb[0].mxu0
      %v4675 = vadd.f32 0.0, %v4674
      %v4676 = vpop.f32.mrb[0].mxu0
      %v4677 = vpop.f32.mrb[0].mxu0
      %v4678 = vadd.f32 0.0, %v4677
      %v4679 = vpop.f32.mrb[0].mxu0
      %4680 = vmatprep.mubr.bf16.mxu0 %v4371
      %4681 = vmatmul.mubr.bf16.gmra.mrb[0].mxu0 %v4363
      %v4682 = vpop.f32.mrb[0].mxu0
      %v4683 = vadd.f32 0.0, %v4682
      %v4684 = vpop.f32.mrb[0].mxu0
      %v4685 = vpop.f32.mrb[0].mxu0
      %v4686 = vadd.f32 0.0, %v4685
      %v4687 = vpop.f32.mrb[0].mxu0
      %4688 = vmatprep.mubr.bf16.mxu0 %v4395
      %4689 = vmatmul.mubr.bf16.gmra.mrb[0].mxu0 %v4387
      %v4690 = vpop.f32.mrb[0].mxu0
      %v4691 = vadd.f32 0.0, %v4690
      %v4692 = vpop.f32.mrb[0].mxu0
      %v4693 = vpop.f32.mrb[0].mxu0
      %v4694 = vadd.f32 0.0, %v4693
      %v4695 = vpop.f32.mrb[0].mxu0
      %4696 = vmatprep.mubr.bf16.mxu0 %v4419
      %4697 = vmatmul.mubr.bf16.gmra.mrb[0].mxu0 %v4411
      %v4698 = vpop.f32.mrb[0].mxu0
      %v4699 = vadd.f32 0.0, %v4698
      %v4700 = vpop.f32.mrb[0].mxu0
      %v4701 = vpop.f32.mrb[0].mxu0
      %v4702 = vadd.f32 0.0, %v4701
      %v4703 = vpop.f32.mrb[0].mxu0
      %4704 = vmatprep.mubr.bf16.mxu0 %v4433
      %4705 = vmatmul.mubr.bf16.gmra.mrb[0].mxu0 %v4430
      %v4706 = vpop.f32.mrb[0].mxu0
      %v4707 = vadd.f32 0.0, %v4706
      %v4708 = vpop.f32.mrb[0].mxu0
      %v4709 = vpop.f32.mrb[0].mxu0
      %v4710 = vpop.f32.mrb[0].mxu0
      %4711 = vdwg.mxu0
      %4712 = vmatprep.subr.bf16.mxu0 0
      %4713 = vmatpush1.bf16.msra.mxu0 %v4576
      %4714 = vmatprep.subr.bf16.mxu0 0
      %4715 = vmatpush1.bf16.msra.mxu0 %v4577
      %4716 = vmatprep.subr.bf16.mxu0 0
      %4717 = vmatpush1.bf16.msra.mxu0 %v4578
      %4718 = vmatprep.subr.bf16.mxu0 0
      %4719 = vmatpush1.bf16.msra.mxu0 %v4579
      %4720 = vmatprep.subr.bf16.mxu0 0
      %4721 = vmatpush1.bf16.msra.mxu0 %v4580
      %4722 = vmatprep.subr.bf16.mxu0 0
      %4723 = vmatpush1.bf16.msra.mxu0 %v4581
      %4724 = vmatprep.subr.bf16.mxu0 0
      %4725 = vmatpush1.bf16.msra.mxu0 %v4582
      %4726 = vmatprep.subr.bf16.mxu0 0
      %4727 = vmatpush1.bf16.msra.mxu0 %v4583
      %4728 = vmatprep.subr.bf16.mxu0 0
      %4729 = vmatpush1.bf16.msra.mxu0 0
      %4730 = vmatprep.subr.bf16.mxu0 0
      %4731 = vmatpush1.bf16.msra.mxu0 0
      %4732 = vmatprep.subr.bf16.mxu0 0
      %4733 = vmatpush1.bf16.msra.mxu0 0
      %4734 = vmatprep.subr.bf16.mxu0 0
      %4735 = vmatpush1.bf16.msra.mxu0 0
      %4736 = vmatprep.subr.bf16.mxu0 0
      %4737 = vmatpush1.bf16.msra.mxu0 0
      %4738 = vmatprep.subr.bf16.mxu0 0
      %4739 = vmatpush1.bf16.msra.mxu0 0
      %4740 = vmatprep.subr.bf16.mxu0 0
      %4741 = vmatpush1.bf16.msra.mxu0 0
      %4742 = vmatprep.subr.bf16.mxu0 0
      %4743 = vmatpush1.bf16.msra.mxu0 0
      %4744 = vmatprep.mubr.bf16.mxu0 0
      %4745 = vmatmul.mubr.bf16.gmra.mrb[0].mxu0 %v4259
      %v4746 = vpop.f32.mrb[0].mxu0
      %v4747 = vadd.f32 %v4643, %v4746
      %v4748 = vpop.f32.mrb[0].mxu0
      %v4749 = vpop.f32.mrb[0].mxu0
      %v4750 = vadd.f32 %v4646, %v4749
      %v4751 = vpop.f32.mrb[0].mxu0
      %4752 = vmatprep.mubr.bf16.mxu0 0
      %4753 = vmatmul.mubr.bf16.gmra.mrb[0].mxu0 %v4283
      %v4754 = vpop.f32.mrb[0].mxu0
      %v4755 = vadd.f32 %v4651, %v4754
      %v4756 = vpop.f32.mrb[0].mxu0
      %v4757 = vpop.f32.mrb[0].mxu0
      %v4758 = vadd.f32 %v4654, %v4757
      %v4759 = vpop.f32.mrb[0].mxu0
      %4760 = vmatprep.mubr.bf16.mxu0 0
      %4761 = vmatmul.mubr.bf16.gmra.mrb[0].mxu0 %v4307
      %v4762 = vpop.f32.mrb[0].mxu0
      %v4763 = vadd.f32 %v4659, %v4762
      %v4764 = vpop.f32.mrb[0].mxu0
      %v4765 = vpop.f32.mrb[0].mxu0
      %v4766 = vadd.f32 %v4662, %v4765
      %v4767 = vpop.f32.mrb[0].mxu0
      %4768 = vmatprep.mubr.bf16.mxu0 0
      %4769 = vmatmul.mubr.bf16.gmra.mrb[0].mxu0 %v4331
      %v4770 = vpop.f32.mrb[0].mxu0
      %v4771 = vadd.f32 %v4667, %v4770
      %v4772 = vpop.f32.mrb[0].mxu0
      %v4773 = vpop.f32.mrb[0].mxu0
      %v4774 = vadd.f32 %v4670, %v4773
      %v4775 = vpop.f32.mrb[0].mxu0
      %4776 = vmatprep.mubr.bf16.mxu0 0
      %4777 = vmatmul.mubr.bf16.gmra.mrb[0].mxu0 %v4355
      %v4778 = vpop.f32.mrb[0].mxu0
      %v4779 = vadd.f32 %v4675, %v4778
      %v4780 = vpop.f32.mrb[0].mxu0
      %v4781 = vpop.f32.mrb[0].mxu0
      %v4782 = vadd.f32 %v4678, %v4781
      %v4783 = vpop.f32.mrb[0].mxu0
      %4784 = vmatprep.mubr.bf16.mxu0 0
      %4785 = vmatmul.mubr.bf16.gmra.mrb[0].mxu0 %v4379
      %v4786 = vpop.f32.mrb[0].mxu0
      %v4787 = vadd.f32 %v4683, %v4786
      %v4788 = vpop.f32.mrb[0].mxu0
      %v4789 = vpop.f32.mrb[0].mxu0
      %v4790 = vadd.f32 %v4686, %v4789
      %v4791 = vpop.f32.mrb[0].mxu0
      %4792 = vmatprep.mubr.bf16.mxu0 0
      %4793 = vmatmul.mubr.bf16.gmra.mrb[0].mxu0 %v4403
      %v4794 = vpop.f32.mrb[0].mxu0
      %v4795 = vadd.f32 %v4691, %v4794
      %v4796 = vpop.f32.mrb[0].mxu0
      %v4797 = vpop.f32.mrb[0].mxu0
      %v4798 = vadd.f32 %v4694, %v4797
      %v4799 = vpop.f32.mrb[0].mxu0
      %4800 = vmatprep.mubr.bf16.mxu0 0
      %4801 = vmatmul.mubr.bf16.gmra.mrb[0].mxu0 %v4427
      %v4802 = vpop.f32.mrb[0].mxu0
      %v4803 = vadd.f32 %v4699, %v4802
      %v4804 = vpop.f32.mrb[0].mxu0
      %v4805 = vpop.f32.mrb[0].mxu0
      %v4806 = vadd.f32 %v4702, %v4805
      %v4807 = vpop.f32.mrb[0].mxu0
      %4808 = vmatprep.mubr.bf16.mxu0 0
      %4809 = vmatmul.mubr.bf16.gmra.mrb[0].mxu0 %v4436
      %v4810 = vpop.f32.mrb[0].mxu0
      %v4811 = vadd.f32 %v4707, %v4810
      %v4812 = vpop.f32.mrb[0].mxu0
      %v4813 = vpop.f32.mrb[0].mxu0
      %v4814 = vpop.f32.mrb[0].mxu0
      %4815 = vdwg.mxu0
      %v4891 = vunpack.c.l.b16 %v4015
      %v4892 = vunpack.c.l.b16 %v4016
      %v4893 = vunpack.c.l.b16 %v4017
      %v4894 = vunpack.c.l.b16 %v4018
      %v4895 = vunpack.c.l.b16 %v4019
      %v4896 = vunpack.c.l.b16 %v4020
      %v4897 = vunpack.c.l.b16 %v4021
      %v4898 = vunpack.c.l.b16 %v4022
      %v4899 = vunpack.c.l.b16 %v4023
      %v4900 = vunpack.c.l.b16 %v4024
      %v4901 = vunpack.c.l.b16 %v4025
      %v4902 = vunpack.c.l.b16 %v4026
      %v4903 = vunpack.c.l.b16 %v4027
      %v4904 = vunpack.c.l.b16 %v4028
      %v4905 = vunpack.c.l.b16 %v4029
      %v4906 = vunpack.c.l.b16 %v4030
      %v4907 = vunpack.c.l.b16 %v4031
      %v4908 = vunpack.c.l.b16 %v4032
      %v4909 = vunpack.c.l.b16 %v4033
      %v4910 = vunpack.c.l.b16 %v4034
      %v4911 = vunpack.c.l.b16 %v4035
      %v4912 = vunpack.c.l.b16 %v4036
      %v4913 = vunpack.c.l.b16 %v4037
      %v4914 = vunpack.c.l.b16 %v4038
      %v4915 = vunpack.c.l.b16 %v4039
      %v4916 = vunpack.c.l.b16 %v4040
      %v4917 = vunpack.c.l.b16 %v4041
      %v4918 = vunpack.c.l.b16 %v4042
      %v4919 = vunpack.c.l.b16 %v4043
      %v4920 = vunpack.c.l.b16 %v4044
      %v4921 = vunpack.c.l.b16 %v4045
      %v4922 = vunpack.c.l.b16 %v4046
      %v4923 = vunpack.c.l.b16 %v4047
      %v4924 = vunpack.c.l.b16 %v4048
      %v4925 = vunpack.c.l.b16 %v4049
      %v4926 = vunpack.c.l.b16 %v4050
      %v4927 = vunpack.c.l.b16 %v4051
      %v4928 = vunpack.c.l.b16 %v4052
      %v4929 = vunpack.c.l.b16 %v4053
      %v4930 = vunpack.c.l.b16 %v4054
      %v4931 = vunpack.c.l.b16 %v4055
      %v4932 = vunpack.c.l.b16 %v4056
      %v4933 = vunpack.c.l.b16 %v4057
      %v4934 = vunpack.c.l.b16 %v4058
      %v4935 = vunpack.c.l.b16 %v4059
      %v4936 = vunpack.c.l.b16 %v4060
      %v4937 = vunpack.c.l.b16 %v4061
      %v4938 = vunpack.c.l.b16 %v4062
      %v4939 = vpack.c.b16 %v4892, %v4891
      %v4940 = vpack.c.b16 %v4894, %v4893
      %v4941 = vpack.c.b16 %v4896, %v4895
      %v4942 = vpack.c.b16 %v4898, %v4897
      %v4943 = vpack.c.b16 %v4900, %v4899
      %v4944 = vpack.c.b16 %v4902, %v4901
      %v4945 = vpack.c.b16 %v4904, %v4903
      %v4946 = vpack.c.b16 %v4906, %v4905
      %v4947 = vpack.c.b16 %v4908, %v4907
      %v4948 = vpack.c.b16 %v4910, %v4909
      %v4949 = vpack.c.b16 %v4912, %v4911
      %v4950 = vpack.c.b16 %v4914, %v4913
      %v4951 = vpack.c.b16 %v4916, %v4915
      %v4952 = vpack.c.b16 %v4918, %v4917
      %v4953 = vpack.c.b16 %v4920, %v4919
      %v4954 = vpack.c.b16 %v4922, %v4921
      %v4955 = vpack.c.b16 %v4924, %v4923
      %v4956 = vpack.c.b16 %v4926, %v4925
      %v4957 = vpack.c.b16 %v4928, %v4927
      %v4958 = vpack.c.b16 %v4930, %v4929
      %v4959 = vpack.c.b16 %v4932, %v4931
      %v4960 = vpack.c.b16 %v4934, %v4933
      %v4961 = vpack.c.b16 %v4936, %v4935
      %v4962 = vpack.c.b16 %v4938, %v4937
      %4987 = vmatprep.subr.bf16.mxu0 0
      %4988 = vmatpush1.bf16.msra.mxu0 %v4939
      %4989 = vmatprep.subr.bf16.mxu0 0
      %4990 = vmatpush1.bf16.msra.mxu0 %v4940
      %4991 = vmatprep.subr.bf16.mxu0 0
      %4992 = vmatpush1.bf16.msra.mxu0 %v4941
      %4993 = vmatprep.subr.bf16.mxu0 0
      %4994 = vmatpush1.bf16.msra.mxu0 %v4942
      %4995 = vmatprep.subr.bf16.mxu0 0
      %4996 = vmatpush1.bf16.msra.mxu0 %v4943
      %4997 = vmatprep.subr.bf16.mxu0 0
      %4998 = vmatpush1.bf16.msra.mxu0 %v4944
      %4999 = vmatprep.subr.bf16.mxu0 0
      %5000 = vmatpush1.bf16.msra.mxu0 %v4945
      %5001 = vmatprep.subr.bf16.mxu0 0
      %5002 = vmatpush1.bf16.msra.mxu0 %v4946
      %5003 = vmatprep.subr.bf16.mxu0 0
      %5004 = vmatpush1.bf16.msra.mxu0 %v4947
      %5005 = vmatprep.subr.bf16.mxu0 0
      %5006 = vmatpush1.bf16.msra.mxu0 %v4948
      %5007 = vmatprep.subr.bf16.mxu0 0
      %5008 = vmatpush1.bf16.msra.mxu0 %v4949
      %5009 = vmatprep.subr.bf16.mxu0 0
      %5010 = vmatpush1.bf16.msra.mxu0 %v4950
      %5011 = vmatprep.subr.bf16.mxu0 0
      %5012 = vmatpush1.bf16.msra.mxu0 %v4951
      %5013 = vmatprep.subr.bf16.mxu0 0
      %5014 = vmatpush1.bf16.msra.mxu0 %v4952
      %5015 = vmatprep.subr.bf16.mxu0 0
      %5016 = vmatpush1.bf16.msra.mxu0 %v4953
      %5017 = vmatprep.subr.bf16.mxu0 0
      %5018 = vmatpush1.bf16.msra.mxu0 %v4954
      %5019 = vmatprep.mubr.bf16.mxu0 %v4198
      %5020 = vmatmul.mubr.bf16.gmra.mrb[0].mxu0 %v4197
      %v5021 = vpop.f32.mrb[0].mxu0
      %v5022 = vadd.f32 %v4747, %v5021
      %v5023 = vpop.f32.mrb[0].mxu0
      %v5024 = vpop.f32.mrb[0].mxu0
      %v5025 = vadd.f32 %v4750, %v5024
      %v5026 = vpop.f32.mrb[0].mxu0
      %5027 = vmatprep.mubr.bf16.mxu0 %v4201
      %5028 = vmatmul.mubr.bf16.gmra.mrb[0].mxu0 %v4200
      %v5029 = vpop.f32.mrb[0].mxu0
      %v5030 = vadd.f32 %v4755, %v5029
      %v5031 = vpop.f32.mrb[0].mxu0
      %v5032 = vpop.f32.mrb[0].mxu0
      %v5033 = vadd.f32 %v4758, %v5032
      %v5034 = vpop.f32.mrb[0].mxu0
      %5035 = vmatprep.mubr.bf16.mxu0 %v4204
      %5036 = vmatmul.mubr.bf16.gmra.mrb[0].mxu0 %v4203
      %v5037 = vpop.f32.mrb[0].mxu0
      %v5038 = vadd.f32 %v4763, %v5037
      %v5039 = vpop.f32.mrb[0].mxu0
      %v5040 = vpop.f32.mrb[0].mxu0
      %v5041 = vadd.f32 %v4766, %v5040
      %v5042 = vpop.f32.mrb[0].mxu0
      %5043 = vmatprep.mubr.bf16.mxu0 %v4207
      %5044 = vmatmul.mubr.bf16.gmra.mrb[0].mxu0 %v4206
      %v5045 = vpop.f32.mrb[0].mxu0
      %v5046 = vadd.f32 %v4771, %v5045
      %v5047 = vpop.f32.mrb[0].mxu0
      %v5048 = vpop.f32.mrb[0].mxu0
      %v5049 = vadd.f32 %v4774, %v5048
      %v5050 = vpop.f32.mrb[0].mxu0
      %5051 = vmatprep.mubr.bf16.mxu0 %v4210
      %5052 = vmatmul.mubr.bf16.gmra.mrb[0].mxu0 %v4209
      %v5053 = vpop.f32.mrb[0].mxu0
      %v5054 = vadd.f32 %v4779, %v5053
      %v5055 = vpop.f32.mrb[0].mxu0
      %v5056 = vpop.f32.mrb[0].mxu0
      %v5057 = vadd.f32 %v4782, %v5056
      %v5058 = vpop.f32.mrb[0].mxu0
      %5059 = vmatprep.mubr.bf16.mxu0 %v4213
      %5060 = vmatmul.mubr.bf16.gmra.mrb[0].mxu0 %v4212
      %v5061 = vpop.f32.mrb[0].mxu0
      %v5062 = vadd.f32 %v4787, %v5061
      %v5063 = vpop.f32.mrb[0].mxu0
      %v5064 = vpop.f32.mrb[0].mxu0
      %v5065 = vadd.f32 %v4790, %v5064
      %v5066 = vpop.f32.mrb[0].mxu0
      %5067 = vmatprep.mubr.bf16.mxu0 %v4216
      %5068 = vmatmul.mubr.bf16.gmra.mrb[0].mxu0 %v4215
      %v5069 = vpop.f32.mrb[0].mxu0
      %v5070 = vadd.f32 %v4795, %v5069
      %v5071 = vpop.f32.mrb[0].mxu0
      %v5072 = vpop.f32.mrb[0].mxu0
      %v5073 = vadd.f32 %v4798, %v5072
      %v5074 = vpop.f32.mrb[0].mxu0
      %5075 = vmatprep.mubr.bf16.mxu0 %v4219
      %5076 = vmatmul.mubr.bf16.gmra.mrb[0].mxu0 %v4218
      %v5077 = vpop.f32.mrb[0].mxu0
      %v5078 = vadd.f32 %v4803, %v5077
      %v5079 = vpop.f32.mrb[0].mxu0
      %v5080 = vpop.f32.mrb[0].mxu0
      %v5081 = vadd.f32 %v4806, %v5080
      %v5082 = vpop.f32.mrb[0].mxu0
      %5083 = vmatprep.mubr.bf16.mxu0 %v4222
      %5084 = vmatmul.mubr.bf16.gmra.mrb[0].mxu0 %v4221
      %v5085 = vpop.f32.mrb[0].mxu0
      %v5086 = vadd.f32 %v4811, %v5085
      %v5087 = vpop.f32.mrb[0].mxu0
      %v5088 = vpop.f32.mrb[0].mxu0
      %v5089 = vpop.f32.mrb[0].mxu0
      %5090 = vdwg.mxu0
      %5091 = vmatprep.subr.bf16.mxu0 0
      %5092 = vmatpush1.bf16.msra.mxu0 %v4955
      %5093 = vmatprep.subr.bf16.mxu0 0
      %5094 = vmatpush1.bf16.msra.mxu0 %v4956
      %5095 = vmatprep.subr.bf16.mxu0 0
      %5096 = vmatpush1.bf16.msra.mxu0 %v4957
      %5097 = vmatprep.subr.bf16.mxu0 0
      %5098 = vmatpush1.bf16.msra.mxu0 %v4958
      %5099 = vmatprep.subr.bf16.mxu0 0
      %5100 = vmatpush1.bf16.msra.mxu0 %v4959
      %5101 = vmatprep.subr.bf16.mxu0 0
      %5102 = vmatpush1.bf16.msra.mxu0 %v4960
      %5103 = vmatprep.subr.bf16.mxu0 0
      %5104 = vmatpush1.bf16.msra.mxu0 %v4961
      %5105 = vmatprep.subr.bf16.mxu0 0
      %5106 = vmatpush1.bf16.msra.mxu0 %v4962
      %5107 = vmatprep.subr.bf16.mxu0 0
      %5108 = vmatpush1.bf16.msra.mxu0 0
      %5109 = vmatprep.subr.bf16.mxu0 0
      %5110 = vmatpush1.bf16.msra.mxu0 0
      %5111 = vmatprep.subr.bf16.mxu0 0
      %5112 = vmatpush1.bf16.msra.mxu0 0
      %5113 = vmatprep.subr.bf16.mxu0 0
      %5114 = vmatpush1.bf16.msra.mxu0 0
      %5115 = vmatprep.subr.bf16.mxu0 0
      %5116 = vmatpush1.bf16.msra.mxu0 0
      %5117 = vmatprep.subr.bf16.mxu0 0
      %5118 = vmatpush1.bf16.msra.mxu0 0
      %5119 = vmatprep.subr.bf16.mxu0 0
      %5120 = vmatpush1.bf16.msra.mxu0 0
      %5121 = vmatprep.subr.bf16.mxu0 0
      %5122 = vmatpush1.bf16.msra.mxu0 0
      %5123 = vmatprep.mubr.bf16.mxu0 0
      %5124 = vmatmul.mubr.bf16.gmra.mrb[0].mxu0 %v4199
      %v5125 = vpop.f32.mrb[0].mxu0
      %v5126 = vadd.f32 %v5022, %v5125
      %v5127 = vpop.f32.mrb[0].mxu0
      %v5128 = vpop.f32.mrb[0].mxu0
      %v5129 = vadd.f32 %v5025, %v5128
      %v5130 = vpop.f32.mrb[0].mxu0
      %5131 = vmatprep.mubr.bf16.mxu0 0
      %5132 = vmatmul.mubr.bf16.gmra.mrb[0].mxu0 %v4202
      %v5133 = vpop.f32.mrb[0].mxu0
      %v5134 = vadd.f32 %v5030, %v5133
      %v5135 = vpop.f32.mrb[0].mxu0
      %v5136 = vpop.f32.mrb[0].mxu0
      %v5137 = vadd.f32 %v5033, %v5136
      %v5138 = vpop.f32.mrb[0].mxu0
      %5139 = vmatprep.mubr.bf16.mxu0 0
      %5140 = vmatmul.mubr.bf16.gmra.mrb[0].mxu0 %v4205
      %v5141 = vpop.f32.mrb[0].mxu0
      %v5142 = vadd.f32 %v5038, %v5141
      %v5143 = vpop.f32.mrb[0].mxu0
      %v5144 = vpop.f32.mrb[0].mxu0
      %v5145 = vadd.f32 %v5041, %v5144
      %v5146 = vpop.f32.mrb[0].mxu0
      %5147 = vmatprep.mubr.bf16.mxu0 0
      %5148 = vmatmul.mubr.bf16.gmra.mrb[0].mxu0 %v4208
      %v5149 = vpop.f32.mrb[0].mxu0
      %v5150 = vadd.f32 %v5046, %v5149
      %v5151 = vpop.f32.mrb[0].mxu0
      %v5152 = vpop.f32.mrb[0].mxu0
      %v5153 = vadd.f32 %v5049, %v5152
      %v5154 = vpop.f32.mrb[0].mxu0
      %5155 = vmatprep.mubr.bf16.mxu0 0
      %5156 = vmatmul.mubr.bf16.gmra.mrb[0].mxu0 %v4211
      %v5157 = vpop.f32.mrb[0].mxu0
      %v5158 = vadd.f32 %v5054, %v5157
      %v5159 = vpop.f32.mrb[0].mxu0
      %v5160 = vpop.f32.mrb[0].mxu0
      %v5161 = vadd.f32 %v5057, %v5160
      %v5162 = vpop.f32.mrb[0].mxu0
      %5163 = vmatprep.mubr.bf16.mxu0 0
      %5164 = vmatmul.mubr.bf16.gmra.mrb[0].mxu0 %v4214
      %v5165 = vpop.f32.mrb[0].mxu0
      %v5166 = vadd.f32 %v5062, %v5165
      %v5167 = vpop.f32.mrb[0].mxu0
      %v5168 = vpop.f32.mrb[0].mxu0
      %v5169 = vadd.f32 %v5065, %v5168
      %v5170 = vpop.f32.mrb[0].mxu0
      %5171 = vmatprep.mubr.bf16.mxu0 0
      %5172 = vmatmul.mubr.bf16.gmra.mrb[0].mxu0 %v4217
      %v5173 = vpop.f32.mrb[0].mxu0
      %v5174 = vadd.f32 %v5070, %v5173
      %v5175 = vpop.f32.mrb[0].mxu0
      %v5176 = vpop.f32.mrb[0].mxu0
      %v5177 = vadd.f32 %v5073, %v5176
      %v5178 = vpop.f32.mrb[0].mxu0
      %5179 = vmatprep.mubr.bf16.mxu0 0
      %5180 = vmatmul.mubr.bf16.gmra.mrb[0].mxu0 %v4220
      %v5181 = vpop.f32.mrb[0].mxu0
      %v5182 = vadd.f32 %v5078, %v5181
      %v5183 = vpop.f32.mrb[0].mxu0
      %v5184 = vpop.f32.mrb[0].mxu0
      %v5185 = vadd.f32 %v5081, %v5184
      %v5186 = vpop.f32.mrb[0].mxu0
      %5187 = vmatprep.mubr.bf16.mxu0 0
      %5188 = vmatmul.mubr.bf16.gmra.mrb[0].mxu0 %v4223
      %v5189 = vpop.f32.mrb[0].mxu0
      %v5190 = vadd.f32 %v5086, %v5189
      %v5191 = vpop.f32.mrb[0].mxu0
      %v5192 = vpop.f32.mrb[0].mxu0
      %v5193 = vpop.f32.mrb[0].mxu0
      %5194 = vdwg.mxu0
      %v5195 = vld [vmem:[#allocation4] sm:$0xee]
      %v5196 = vld [vmem:[#allocation4 + $0x8] sm:$0xe]
      %v5197 = vld [vmem:[#allocation4 + $0xc] sm:$0xff]
      %v5198 = vld [vmem:[#allocation4 + $0x14] sm:$0xf]
      %v5199 = vld [vmem:[#allocation4 + $0x18] sm:$0xff]
      %v5200 = vld [vmem:[#allocation4 + $0x20] sm:$0xf]
      %v5201 = vld [vmem:[#allocation4 + $0x24] sm:$0xff]
      %v5202 = vld [vmem:[#allocation4 + $0x2c] sm:$0xf]
      %v5203 = vld [vmem:[#allocation4 + $0x30] sm:$0xff]
      %v5204 = vld [vmem:[#allocation4 + $0x38] sm:$0xf]
      %v5205 = vld [vmem:[#allocation4 + $0x3c] sm:$0xff]
      %v5206 = vld [vmem:[#allocation4 + $0x44] sm:$0xf]
      %v5207 = vld [vmem:[#allocation4 + $0x48] sm:$0xff]
      %v5208 = vld [vmem:[#allocation4 + $0x50] sm:$0xf]
      %v5209 = vld [vmem:[#allocation4 + $0x54] sm:$0xff]
      %v5210 = vld [vmem:[#allocation4 + $0x5c] sm:$0xf]
      %v5211 = vld [vmem:[#allocation4 + $0x60] sm:$0xff]
      %v5212 = vld [vmem:[#allocation4 + $0x68] sm:$0xf]
      %v5213 = vld [vmem:[#allocation4 + $0x6c] sm:$0xff]
      %v5214 = vld [vmem:[#allocation4 + $0x74] sm:$0xf]
      %v5215 = vld [vmem:[#allocation4 + $0x78] sm:$0xff]
      %v5216 = vld [vmem:[#allocation4 + $0x80] sm:$0xf]
      %v5217 = vld [vmem:[#allocation4 + $0x84] sm:$0xff]
      %v5218 = vld [vmem:[#allocation4 + $0x8c] sm:$0xf]
      %v5219 = vld [vmem:[#allocation4 + $0x90] sm:$0xff]
      %v5220 = vld [vmem:[#allocation4 + $0x98] sm:$0xf]
      %v5221 = vld [vmem:[#allocation4 + $0x9c] sm:$0xff]
      %v5222 = vld [vmem:[#allocation4 + $0xa4] sm:$0xf]
      %v5223 = vld [vmem:[#allocation4 + $0xa8] sm:$0xff]
      %v5224 = vld [vmem:[#allocation4 + $0xb0] sm:$0xf]
      %v5225 = vld [vmem:[#allocation4 + $0xb4] sm:$0xff]
      %v5226 = vld [vmem:[#allocation4 + $0xbc] sm:$0xf]
      %v5227 = vld [vmem:[#allocation4 + $0xc0] sm:$0xff]
      %v5228 = vld [vmem:[#allocation4 + $0xc8] sm:$0xf]
      %v5229 = vld [vmem:[#allocation4 + $0xcc] sm:$0x11]
      %v5230 = vld [vmem:[#allocation4 + $0xd4] sm:$0x1]
      %s5231 = scalar_lea.vmem %s3, 384
      %v5232 = vld [vmem:[%s5231] sm:$0xf]
      %v5233 = vld [vmem:[%s5231 + $0x4] sm:$0xf]
      %v5234 = vld [vmem:[%s5231 + $0x8] sm:$0xf]
      %v5235 = vld [vmem:[%s5231 + $0xc] sm:$0xf]
      %v5236 = vld [vmem:[%s5231 + $0x10] sm:$0xf]
      %v5237 = vld [vmem:[%s5231 + $0x14] sm:$0xf]
      %v5238 = vld [vmem:[%s5231 + $0x18] sm:$0xf]
      %v5239 = vld [vmem:[%s5231 + $0x1c] sm:$0xf]
      %v5240 = vld [vmem:[%s5231 + $0x20] sm:$0xf]
      %v5241 = vld [vmem:[%s5231 + $0x24] sm:$0xf]
      %v5242 = vld [vmem:[%s5231 + $0x28] sm:$0xf]
      %v5243 = vld [vmem:[%s5231 + $0x2c] sm:$0xf]
      %v5244 = vld [vmem:[%s5231 + $0x30] sm:$0xf]
      %v5245 = vld [vmem:[%s5231 + $0x34] sm:$0xf]
      %v5246 = vld [vmem:[%s5231 + $0x38] sm:$0xf]
      %v5247 = vld [vmem:[%s5231 + $0x3c] sm:$0xf]
      %v5248 = vld [vmem:[%s5231 + $0x40] sm:$0xf]
      %v5249 = vld [vmem:[%s5231 + $0x44] sm:$0xf]
      %v5250 = vld [vmem:[%s5231 + $0x48] sm:$0xf]
      %v5251 = vld [vmem:[%s5231 + $0x4c] sm:$0xf]
      %v5252 = vld [vmem:[%s5231 + $0x50] sm:$0xf]
      %v5253 = vld [vmem:[%s5231 + $0x54] sm:$0xf]
      %v5254 = vld [vmem:[%s5231 + $0x58] sm:$0xf]
      %v5255 = vld [vmem:[%s5231 + $0x5c] sm:$0xf]
      %v5256 = vld [vmem:[%s5231 + $0x60] sm:$0xf]
      %v5257 = vld [vmem:[%s5231 + $0x64] sm:$0xf]
      %v5258 = vld [vmem:[%s5231 + $0x68] sm:$0xf]
      %v5259 = vld [vmem:[%s5231 + $0x6c] sm:$0xf]
      %v5260 = vld [vmem:[%s5231 + $0x70] sm:$0xf]
      %v5261 = vld [vmem:[%s5231 + $0x74] sm:$0xf]
      %v5262 = vld [vmem:[%s5231 + $0x78] sm:$0xf]
      %v5263 = vld [vmem:[%s5231 + $0x7c] sm:$0xf]
      %v5264 = vld [vmem:[%s5231 + $0x80] sm:$0xf]
      %v5265 = vld [vmem:[%s5231 + $0x84] sm:$0xf]
      %v5266 = vld [vmem:[%s5231 + $0x88] sm:$0xf]
      %v5267 = vld [vmem:[%s5231 + $0x8c] sm:$0xf]
      %v5268 = vld [vmem:[%s5231 + $0x90] sm:$0xf]
      %v5269 = vld [vmem:[%s5231 + $0x94] sm:$0xf]
      %v5270 = vld [vmem:[%s5231 + $0x98] sm:$0xf]
      %v5271 = vld [vmem:[%s5231 + $0x9c] sm:$0xf]
      %v5272 = vld [vmem:[%s5231 + $0xa0] sm:$0xf]
      %v5273 = vld [vmem:[%s5231 + $0xa4] sm:$0xf]
      %v5274 = vld [vmem:[%s5231 + $0xa8] sm:$0xf]
      %v5275 = vld [vmem:[%s5231 + $0xac] sm:$0xf]
      %v5276 = vld [vmem:[%s5231 + $0xb0] sm:$0xf]
      %v5277 = vld [vmem:[%s5231 + $0xb4] sm:$0xf]
      %v5278 = vld [vmem:[%s5231 + $0xb8] sm:$0xf]
      %v5279 = vld [vmem:[%s5231 + $0xbc] sm:$0xf]
      %v5316 = vunpack.c.l.b16 %v5195
      %v5317 = vunpack.c.h.b16 %v5195
      %v5318 = vunpack.c.l.b16 %v5196
      %v5319 = vunpack.c.l.b16 %v5197
      %v5320 = vunpack.c.h.b16 %v5197
      %v5321 = vunpack.c.l.b16 %v5198
      %v5322 = vunpack.c.l.b16 %v5199
      %v5323 = vunpack.c.h.b16 %v5199
      %v5324 = vunpack.c.l.b16 %v5200
      %v5325 = vunpack.c.l.b16 %v5201
      %v5326 = vunpack.c.h.b16 %v5201
      %v5327 = vunpack.c.l.b16 %v5202
      %v5328 = vunpack.c.l.b16 %v5203
      %v5329 = vunpack.c.h.b16 %v5203
      %v5330 = vunpack.c.l.b16 %v5204
      %v5331 = vunpack.c.l.b16 %v5205
      %v5332 = vunpack.c.h.b16 %v5205
      %v5333 = vunpack.c.l.b16 %v5206
      %v5334 = vunpack.c.l.b16 %v5207
      %v5335 = vunpack.c.h.b16 %v5207
      %v5336 = vunpack.c.l.b16 %v5208
      %v5337 = vunpack.c.l.b16 %v5209
      %v5338 = vunpack.c.h.b16 %v5209
      %v5339 = vunpack.c.l.b16 %v5210
      %v5340 = vunpack.c.l.b16 %v5211
      %v5341 = vunpack.c.h.b16 %v5211
      %v5342 = vunpack.c.l.b16 %v5212
      %v5343 = vunpack.c.l.b16 %v5213
      %v5344 = vunpack.c.h.b16 %v5213
      %v5345 = vunpack.c.l.b16 %v5214
      %v5346 = vunpack.c.l.b16 %v5215
      %v5347 = vunpack.c.h.b16 %v5215
      %v5348 = vunpack.c.l.b16 %v5216
      %v5349 = vunpack.c.l.b16 %v5217
      %v5350 = vunpack.c.h.b16 %v5217
      %v5351 = vunpack.c.l.b16 %v5218
      %v5352 = vunpack.c.l.b16 %v5219
      %v5353 = vunpack.c.h.b16 %v5219
      %v5354 = vunpack.c.l.b16 %v5220
      %v5355 = vunpack.c.l.b16 %v5221
      %v5356 = vunpack.c.h.b16 %v5221
      %v5357 = vunpack.c.l.b16 %v5222
      %v5358 = vunpack.c.l.b16 %v5223
      %v5359 = vunpack.c.h.b16 %v5223
      %v5360 = vunpack.c.l.b16 %v5224
      %v5361 = vunpack.c.l.b16 %v5225
      %v5362 = vunpack.c.h.b16 %v5225
      %v5363 = vunpack.c.l.b16 %v5226
      %v5364 = vunpack.c.l.b16 %v5227
      %v5365 = vunpack.c.h.b16 %v5227
      %v5366 = vunpack.c.l.b16 %v5228
      %v5367 = vunpack.c.l.b16 %v5229
      %v5368 = vunpack.c.h.b16 %v5229
      %v5369 = vunpack.c.l.b16 %v5230
      %v5370 = vpack.c.b16 %v5319, %v5316
      %v5371 = vpack.c.b16 %v5320, %v5317
      %v5372 = vpack.c.b16 %v5321, %v5318
      %v5373 = vpack.c.b16 %v5325, %v5322
      %v5374 = vpack.c.b16 %v5326, %v5323
      %v5375 = vpack.c.b16 %v5327, %v5324
      %v5376 = vpack.c.b16 %v5331, %v5328
      %v5377 = vpack.c.b16 %v5332, %v5329
      %v5378 = vpack.c.b16 %v5333, %v5330
      %v5379 = vpack.c.b16 %v5337, %v5334
      %v5380 = vpack.c.b16 %v5338, %v5335
      %v5381 = vpack.c.b16 %v5339, %v5336
      %v5382 = vpack.c.b16 %v5343, %v5340
      %v5383 = vpack.c.b16 %v5344, %v5341
      %v5384 = vpack.c.b16 %v5345, %v5342
      %v5385 = vpack.c.b16 %v5349, %v5346
      %v5386 = vpack.c.b16 %v5350, %v5347
      %v5387 = vpack.c.b16 %v5351, %v5348
      %v5388 = vpack.c.b16 %v5355, %v5352
      %v5389 = vpack.c.b16 %v5356, %v5353
      %v5390 = vpack.c.b16 %v5357, %v5354
      %v5391 = vpack.c.b16 %v5361, %v5358
      %v5392 = vpack.c.b16 %v5362, %v5359
      %v5393 = vpack.c.b16 %v5363, %v5360
      %v5394 = vpack.c.b16 %v5367, %v5364
      %v5395 = vpack.c.b16 %v5368, %v5365
      %v5396 = vpack.c.b16 %v5369, %v5366
      %v5397 = vrot.slane %v5370, 1
      %v5398 = vrot.slane %v5373, 1
      %v5399 = vsel %vm2703, %v5397, %v5398
      %v5400 = vrot.slane %v5371, 1
      %v5401 = vrot.slane %v5374, 1
      %v5402 = vsel %vm2703, %v5400, %v5401
      %v5403 = vrot.slane %v5372, 1
      %v5404 = vrot.slane %v5375, 1
      %v5405 = vsel %vm2703, %v5403, %v5404
      %v5406 = vrot.slane %v5376, 1
      %v5407 = vsel %vm2703, %v5398, %v5406
      %v5408 = vrot.slane %v5377, 1
      %v5409 = vsel %vm2703, %v5401, %v5408
      %v5410 = vrot.slane %v5378, 1
      %v5411 = vsel %vm2703, %v5404, %v5410
      %v5412 = vrot.slane %v5379, 1
      %v5413 = vsel %vm2703, %v5406, %v5412
      %v5414 = vrot.slane %v5380, 1
      %v5415 = vsel %vm2703, %v5408, %v5414
      %v5416 = vrot.slane %v5381, 1
      %v5417 = vsel %vm2703, %v5410, %v5416
      %v5418 = vrot.slane %v5382, 1
      %v5419 = vsel %vm2703, %v5412, %v5418
      %v5420 = vrot.slane %v5383, 1
      %v5421 = vsel %vm2703, %v5414, %v5420
      %v5422 = vrot.slane %v5384, 1
      %v5423 = vsel %vm2703, %v5416, %v5422
      %v5424 = vrot.slane %v5385, 1
      %v5425 = vsel %vm2703, %v5418, %v5424
      %v5426 = vrot.slane %v5386, 1
      %v5427 = vsel %vm2703, %v5420, %v5426
      %v5428 = vrot.slane %v5387, 1
      %v5429 = vsel %vm2703, %v5422, %v5428
      %v5430 = vrot.slane %v5388, 1
      %v5431 = vsel %vm2703, %v5424, %v5430
      %v5432 = vrot.slane %v5389, 1
      %v5433 = vsel %vm2703, %v5426, %v5432
      %v5434 = vrot.slane %v5390, 1
      %v5435 = vsel %vm2703, %v5428, %v5434
      %v5436 = vrot.slane %v5391, 1
      %v5437 = vsel %vm2703, %v5430, %v5436
      %v5438 = vrot.slane %v5392, 1
      %v5439 = vsel %vm2703, %v5432, %v5438
      %v5440 = vrot.slane %v5393, 1
      %v5441 = vsel %vm2703, %v5434, %v5440
      %v5442 = vrot.slane %v5394, 1
      %v5443 = vsel %vm2703, %v5436, %v5442
      %v5444 = vrot.slane %v5395, 1
      %v5445 = vsel %vm2703, %v5438, %v5444
      %v5446 = vrot.slane %v5396, 1
      %v5447 = vsel %vm2703, %v5440, %v5446
      %v5523 = vunpack.c.l.b16 %v5232
      %v5524 = vunpack.c.l.b16 %v5233
      %v5525 = vunpack.c.l.b16 %v5234
      %v5526 = vunpack.c.l.b16 %v5235
      %v5527 = vunpack.c.l.b16 %v5236
      %v5528 = vunpack.c.l.b16 %v5237
      %v5529 = vunpack.c.l.b16 %v5238
      %v5530 = vunpack.c.l.b16 %v5239
      %v5531 = vunpack.c.l.b16 %v5240
      %v5532 = vunpack.c.l.b16 %v5241
      %v5533 = vunpack.c.l.b16 %v5242
      %v5534 = vunpack.c.l.b16 %v5243
      %v5535 = vunpack.c.l.b16 %v5244
      %v5536 = vunpack.c.l.b16 %v5245
      %v5537 = vunpack.c.l.b16 %v5246
      %v5538 = vunpack.c.l.b16 %v5247
      %v5539 = vunpack.c.l.b16 %v5248
      %v5540 = vunpack.c.l.b16 %v5249
      %v5541 = vunpack.c.l.b16 %v5250
      %v5542 = vunpack.c.l.b16 %v5251
      %v5543 = vunpack.c.l.b16 %v5252
      %v5544 = vunpack.c.l.b16 %v5253
      %v5545 = vunpack.c.l.b16 %v5254
      %v5546 = vunpack.c.l.b16 %v5255
      %v5547 = vunpack.c.l.b16 %v5256
      %v5548 = vunpack.c.l.b16 %v5257
      %v5549 = vunpack.c.l.b16 %v5258
      %v5550 = vunpack.c.l.b16 %v5259
      %v5551 = vunpack.c.l.b16 %v5260
      %v5552 = vunpack.c.l.b16 %v5261
      %v5553 = vunpack.c.l.b16 %v5262
      %v5554 = vunpack.c.l.b16 %v5263
      %v5555 = vunpack.c.l.b16 %v5264
      %v5556 = vunpack.c.l.b16 %v5265
      %v5557 = vunpack.c.l.b16 %v5266
      %v5558 = vunpack.c.l.b16 %v5267
      %v5559 = vunpack.c.l.b16 %v5268
      %v5560 = vunpack.c.l.b16 %v5269
      %v5561 = vunpack.c.l.b16 %v5270
      %v5562 = vunpack.c.l.b16 %v5271
      %v5563 = vunpack.c.l.b16 %v5272
      %v5564 = vunpack.c.l.b16 %v5273
      %v5565 = vunpack.c.l.b16 %v5274
      %v5566 = vunpack.c.l.b16 %v5275
      %v5567 = vunpack.c.l.b16 %v5276
      %v5568 = vunpack.c.l.b16 %v5277
      %v5569 = vunpack.c.l.b16 %v5278
      %v5570 = vunpack.c.l.b16 %v5279
      %v5571 = vpack.c.b16 %v5524, %v5523
      %v5572 = vpack.c.b16 %v5526, %v5525
      %v5573 = vpack.c.b16 %v5528, %v5527
      %v5574 = vpack.c.b16 %v5530, %v5529
      %v5575 = vpack.c.b16 %v5532, %v5531
      %v5576 = vpack.c.b16 %v5534, %v5533
      %v5577 = vpack.c.b16 %v5536, %v5535
      %v5578 = vpack.c.b16 %v5538, %v5537
      %v5579 = vpack.c.b16 %v5540, %v5539
      %v5580 = vpack.c.b16 %v5542, %v5541
      %v5581 = vpack.c.b16 %v5544, %v5543
      %v5582 = vpack.c.b16 %v5546, %v5545
      %v5583 = vpack.c.b16 %v5548, %v5547
      %v5584 = vpack.c.b16 %v5550, %v5549
      %v5585 = vpack.c.b16 %v5552, %v5551
      %v5586 = vpack.c.b16 %v5554, %v5553
      %v5587 = vpack.c.b16 %v5556, %v5555
      %v5588 = vpack.c.b16 %v5558, %v5557
      %v5589 = vpack.c.b16 %v5560, %v5559
      %v5590 = vpack.c.b16 %v5562, %v5561
      %v5591 = vpack.c.b16 %v5564, %v5563
      %v5592 = vpack.c.b16 %v5566, %v5565
      %v5593 = vpack.c.b16 %v5568, %v5567
      %v5594 = vpack.c.b16 %v5570, %v5569
      %5619 = vmatprep.subr.bf16.mxu0 0
      %5620 = vmatpush1.bf16.msra.mxu0 %v5571
      %5621 = vmatprep.subr.bf16.mxu0 0
      %5622 = vmatpush1.bf16.msra.mxu0 %v5572
      %5623 = vmatprep.subr.bf16.mxu0 0
      %5624 = vmatpush1.bf16.msra.mxu0 %v5573
      %5625 = vmatprep.subr.bf16.mxu0 0
      %5626 = vmatpush1.bf16.msra.mxu0 %v5574
      %5627 = vmatprep.subr.bf16.mxu0 0
      %5628 = vmatpush1.bf16.msra.mxu0 %v5575
      %5629 = vmatprep.subr.bf16.mxu0 0
      %5630 = vmatpush1.bf16.msra.mxu0 %v5576
      %5631 = vmatprep.subr.bf16.mxu0 0
      %5632 = vmatpush1.bf16.msra.mxu0 %v5577
      %5633 = vmatprep.subr.bf16.mxu0 0
      %5634 = vmatpush1.bf16.msra.mxu0 %v5578
      %5635 = vmatprep.subr.bf16.mxu0 0
      %5636 = vmatpush1.bf16.msra.mxu0 %v5579
      %5637 = vmatprep.subr.bf16.mxu0 0
      %5638 = vmatpush1.bf16.msra.mxu0 %v5580
      %5639 = vmatprep.subr.bf16.mxu0 0
      %5640 = vmatpush1.bf16.msra.mxu0 %v5581
      %5641 = vmatprep.subr.bf16.mxu0 0
      %5642 = vmatpush1.bf16.msra.mxu0 %v5582
      %5643 = vmatprep.subr.bf16.mxu0 0
      %5644 = vmatpush1.bf16.msra.mxu0 %v5583
      %5645 = vmatprep.subr.bf16.mxu0 0
      %5646 = vmatpush1.bf16.msra.mxu0 %v5584
      %5647 = vmatprep.subr.bf16.mxu0 0
      %5648 = vmatpush1.bf16.msra.mxu0 %v5585
      %5649 = vmatprep.subr.bf16.mxu0 0
      %5650 = vmatpush1.bf16.msra.mxu0 %v5586
      %5651 = vmatprep.mubr.bf16.mxu0 %v5402
      %5652 = vmatmul.mubr.bf16.gmra.mrb[0].mxu0 %v5399
      %v5653 = vpop.f32.mrb[0].mxu0
      %v5654 = vadd.f32 0.0, %v5653
      %v5655 = vpop.f32.mrb[0].mxu0
      %v5656 = vpop.f32.mrb[0].mxu0
      %v5657 = vadd.f32 0.0, %v5656
      %v5658 = vpop.f32.mrb[0].mxu0
      %5659 = vmatprep.mubr.bf16.mxu0 %v5409
      %5660 = vmatmul.mubr.bf16.gmra.mrb[0].mxu0 %v5407
      %v5661 = vpop.f32.mrb[0].mxu0
      %v5662 = vadd.f32 0.0, %v5661
      %v5663 = vpop.f32.mrb[0].mxu0
      %v5664 = vpop.f32.mrb[0].mxu0
      %v5665 = vadd.f32 0.0, %v5664
      %v5666 = vpop.f32.mrb[0].mxu0
      %5667 = vmatprep.mubr.bf16.mxu0 %v5415
      %5668 = vmatmul.mubr.bf16.gmra.mrb[0].mxu0 %v5413
      %v5669 = vpop.f32.mrb[0].mxu0
      %v5670 = vadd.f32 0.0, %v5669
      %v5671 = vpop.f32.mrb[0].mxu0
      %v5672 = vpop.f32.mrb[0].mxu0
      %v5673 = vadd.f32 0.0, %v5672
      %v5674 = vpop.f32.mrb[0].mxu0
      %5675 = vmatprep.mubr.bf16.mxu0 %v5421
      %5676 = vmatmul.mubr.bf16.gmra.mrb[0].mxu0 %v5419
      %v5677 = vpop.f32.mrb[0].mxu0
      %v5678 = vadd.f32 0.0, %v5677
      %v5679 = vpop.f32.mrb[0].mxu0
      %v5680 = vpop.f32.mrb[0].mxu0
      %v5681 = vadd.f32 0.0, %v5680
      %v5682 = vpop.f32.mrb[0].mxu0
      %5683 = vmatprep.mubr.bf16.mxu0 %v5427
      %5684 = vmatmul.mubr.bf16.gmra.mrb[0].mxu0 %v5425
      %v5685 = vpop.f32.mrb[0].mxu0
      %v5686 = vadd.f32 0.0, %v5685
      %v5687 = vpop.f32.mrb[0].mxu0
      %v5688 = vpop.f32.mrb[0].mxu0
      %v5689 = vadd.f32 0.0, %v5688
      %v5690 = vpop.f32.mrb[0].mxu0
      %5691 = vmatprep.mubr.bf16.mxu0 %v5433
      %5692 = vmatmul.mubr.bf16.gmra.mrb[0].mxu0 %v5431
      %v5693 = vpop.f32.mrb[0].mxu0
      %v5694 = vadd.f32 0.0, %v5693
      %v5695 = vpop.f32.mrb[0].mxu0
      %v5696 = vpop.f32.mrb[0].mxu0
      %v5697 = vadd.f32 0.0, %v5696
      %v5698 = vpop.f32.mrb[0].mxu0
      %5699 = vmatprep.mubr.bf16.mxu0 %v5439
      %5700 = vmatmul.mubr.bf16.gmra.mrb[0].mxu0 %v5437
      %v5701 = vpop.f32.mrb[0].mxu0
      %v5702 = vadd.f32 0.0, %v5701
      %v5703 = vpop.f32.mrb[0].mxu0
      %v5704 = vpop.f32.mrb[0].mxu0
      %v5705 = vadd.f32 0.0, %v5704
      %v5706 = vpop.f32.mrb[0].mxu0
      %5707 = vmatprep.mubr.bf16.mxu0 %v5445
      %5708 = vmatmul.mubr.bf16.gmra.mrb[0].mxu0 %v5443
      %v5709 = vpop.f32.mrb[0].mxu0
      %v5710 = vadd.f32 0.0, %v5709
      %v5711 = vpop.f32.mrb[0].mxu0
      %v5712 = vpop.f32.mrb[0].mxu0
      %v5713 = vadd.f32 0.0, %v5712
      %v5714 = vpop.f32.mrb[0].mxu0
      %5715 = vmatprep.mubr.bf16.mxu0 %v5444
      %5716 = vmatmul.mubr.bf16.gmra.mrb[0].mxu0 %v5442
      %v5717 = vpop.f32.mrb[0].mxu0
      %v5718 = vadd.f32 0.0, %v5717
      %v5719 = vpop.f32.mrb[0].mxu0
      %v5720 = vpop.f32.mrb[0].mxu0
      %v5721 = vpop.f32.mrb[0].mxu0
      %5722 = vdwg.mxu0
      %5723 = vmatprep.subr.bf16.mxu0 0
      %5724 = vmatpush1.bf16.msra.mxu0 %v5587
      %5725 = vmatprep.subr.bf16.mxu0 0
      %5726 = vmatpush1.bf16.msra.mxu0 %v5588
      %5727 = vmatprep.subr.bf16.mxu0 0
      %5728 = vmatpush1.bf16.msra.mxu0 %v5589
      %5729 = vmatprep.subr.bf16.mxu0 0
      %5730 = vmatpush1.bf16.msra.mxu0 %v5590
      %5731 = vmatprep.subr.bf16.mxu0 0
      %5732 = vmatpush1.bf16.msra.mxu0 %v5591
      %5733 = vmatprep.subr.bf16.mxu0 0
      %5734 = vmatpush1.bf16.msra.mxu0 %v5592
      %5735 = vmatprep.subr.bf16.mxu0 0
      %5736 = vmatpush1.bf16.msra.mxu0 %v5593
      %5737 = vmatprep.subr.bf16.mxu0 0
      %5738 = vmatpush1.bf16.msra.mxu0 %v5594
      %5739 = vmatprep.subr.bf16.mxu0 0
      %5740 = vmatpush1.bf16.msra.mxu0 0
      %5741 = vmatprep.subr.bf16.mxu0 0
      %5742 = vmatpush1.bf16.msra.mxu0 0
      %5743 = vmatprep.subr.bf16.mxu0 0
      %5744 = vmatpush1.bf16.msra.mxu0 0
      %5745 = vmatprep.subr.bf16.mxu0 0
      %5746 = vmatpush1.bf16.msra.mxu0 0
      %5747 = vmatprep.subr.bf16.mxu0 0
      %5748 = vmatpush1.bf16.msra.mxu0 0
      %5749 = vmatprep.subr.bf16.mxu0 0
      %5750 = vmatpush1.bf16.msra.mxu0 0
      %5751 = vmatprep.subr.bf16.mxu0 0
      %5752 = vmatpush1.bf16.msra.mxu0 0
      %5753 = vmatprep.subr.bf16.mxu0 0
      %5754 = vmatpush1.bf16.msra.mxu0 0
      %5755 = vmatprep.mubr.bf16.mxu0 0
      %5756 = vmatmul.mubr.bf16.gmra.mrb[0].mxu0 %v5405
      %v5757 = vpop.f32.mrb[0].mxu0
      %v5758 = vadd.f32 %v5654, %v5757
      %v5759 = vpop.f32.mrb[0].mxu0
      %v5760 = vpop.f32.mrb[0].mxu0
      %v5761 = vadd.f32 %v5657, %v5760
      %v5762 = vpop.f32.mrb[0].mxu0
      %5763 = vmatprep.mubr.bf16.mxu0 0
      %5764 = vmatmul.mubr.bf16.gmra.mrb[0].mxu0 %v5411
      %v5765 = vpop.f32.mrb[0].mxu0
      %v5766 = vadd.f32 %v5662, %v5765
      %v5767 = vpop.f32.mrb[0].mxu0
      %v5768 = vpop.f32.mrb[0].mxu0
      %v5769 = vadd.f32 %v5665, %v5768
      %v5770 = vpop.f32.mrb[0].mxu0
      %5771 = vmatprep.mubr.bf16.mxu0 0
      %5772 = vmatmul.mubr.bf16.gmra.mrb[0].mxu0 %v5417
      %v5773 = vpop.f32.mrb[0].mxu0
      %v5774 = vadd.f32 %v5670, %v5773
      %v5775 = vpop.f32.mrb[0].mxu0
      %v5776 = vpop.f32.mrb[0].mxu0
      %v5777 = vadd.f32 %v5673, %v5776
      %v5778 = vpop.f32.mrb[0].mxu0
      %5779 = vmatprep.mubr.bf16.mxu0 0
      %5780 = vmatmul.mubr.bf16.gmra.mrb[0].mxu0 %v5423
      %v5781 = vpop.f32.mrb[0].mxu0
      %v5782 = vadd.f32 %v5678, %v5781
      %v5783 = vpop.f32.mrb[0].mxu0
      %v5784 = vpop.f32.mrb[0].mxu0
      %v5785 = vadd.f32 %v5681, %v5784
      %v5786 = vpop.f32.mrb[0].mxu0
      %5787 = vmatprep.mubr.bf16.mxu0 0
      %5788 = vmatmul.mubr.bf16.gmra.mrb[0].mxu0 %v5429
      %v5789 = vpop.f32.mrb[0].mxu0
      %v5790 = vadd.f32 %v5686, %v5789
      %v5791 = vpop.f32.mrb[0].mxu0
      %v5792 = vpop.f32.mrb[0].mxu0
      %v5793 = vadd.f32 %v5689, %v5792
      %v5794 = vpop.f32.mrb[0].mxu0
      %5795 = vmatprep.mubr.bf16.mxu0 0
      %5796 = vmatmul.mubr.bf16.gmra.mrb[0].mxu0 %v5435
      %v5797 = vpop.f32.mrb[0].mxu0
      %v5798 = vadd.f32 %v5694, %v5797
      %v5799 = vpop.f32.mrb[0].mxu0
      %v5800 = vpop.f32.mrb[0].mxu0
      %v5801 = vadd.f32 %v5697, %v5800
      %v5802 = vpop.f32.mrb[0].mxu0
      %5803 = vmatprep.mubr.bf16.mxu0 0
      %5804 = vmatmul.mubr.bf16.gmra.mrb[0].mxu0 %v5441
      %v5805 = vpop.f32.mrb[0].mxu0
      %v5806 = vadd.f32 %v5702, %v5805
      %v5807 = vpop.f32.mrb[0].mxu0
      %v5808 = vpop.f32.mrb[0].mxu0
      %v5809 = vadd.f32 %v5705, %v5808
      %v5810 = vpop.f32.mrb[0].mxu0
      %5811 = vmatprep.mubr.bf16.mxu0 0
      %5812 = vmatmul.mubr.bf16.gmra.mrb[0].mxu0 %v5447
      %v5813 = vpop.f32.mrb[0].mxu0
      %v5814 = vadd.f32 %v5710, %v5813
      %v5815 = vpop.f32.mrb[0].mxu0
      %v5816 = vpop.f32.mrb[0].mxu0
      %v5817 = vadd.f32 %v5713, %v5816
      %v5818 = vpop.f32.mrb[0].mxu0
      %5819 = vmatprep.mubr.bf16.mxu0 0
      %5820 = vmatmul.mubr.bf16.gmra.mrb[0].mxu0 %v5446
      %v5821 = vpop.f32.mrb[0].mxu0
      %v5822 = vadd.f32 %v5718, %v5821
      %v5823 = vpop.f32.mrb[0].mxu0
      %v5824 = vpop.f32.mrb[0].mxu0
      %v5825 = vpop.f32.mrb[0].mxu0
      %5826 = vdwg.mxu0
      %v5827 = vadd.f32 %v5126, %v5758
      %v5828 = vadd.f32 %v5129, %v5761
      %v5829 = vadd.f32 %v5134, %v5766
      %v5830 = vadd.f32 %v5137, %v5769
      %v5831 = vadd.f32 %v5142, %v5774
      %v5832 = vadd.f32 %v5145, %v5777
      %v5833 = vadd.f32 %v5150, %v5782
      %v5834 = vadd.f32 %v5153, %v5785
      %v5835 = vadd.f32 %v5158, %v5790
      %v5836 = vadd.f32 %v5161, %v5793
      %v5837 = vadd.f32 %v5166, %v5798
      %v5838 = vadd.f32 %v5169, %v5801
      %v5839 = vadd.f32 %v5174, %v5806
      %v5840 = vadd.f32 %v5177, %v5809
      %v5841 = vadd.f32 %v5182, %v5814
      %v5842 = vadd.f32 %v5185, %v5817
      %v5843 = vadd.f32 %v5190, %v5822
      %v5844 = vld [vmem:[%s4] sm:$0x1]
      %v5846 = vlaneseq
      %v5847 = vshrl.u32 %v5846, 7
      %v5848 = vsub.s32 0, %v5847
      %v5849 = vrot.slane %v5844, %v5848
      %v5851 = vadd.f32 %v5827, %v5849
      %v5852 = vadd.f32 %v5828, %v5849
      %v5853 = vadd.f32 %v5829, %v5849
      %v5854 = vadd.f32 %v5830, %v5849
      %v5855 = vadd.f32 %v5831, %v5849
      %v5856 = vadd.f32 %v5832, %v5849
      %v5857 = vadd.f32 %v5833, %v5849
      %v5858 = vadd.f32 %v5834, %v5849
      %v5859 = vadd.f32 %v5835, %v5849
      %v5860 = vadd.f32 %v5836, %v5849
      %v5861 = vadd.f32 %v5837, %v5849
      %v5862 = vadd.f32 %v5838, %v5849
      %v5863 = vadd.f32 %v5839, %v5849
      %v5864 = vadd.f32 %v5840, %v5849
      %v5865 = vadd.f32 %v5841, %v5849
      %v5866 = vadd.f32 %v5842, %v5849
      %v5867 = vadd.f32 %v5843, %v5849
      %v5868 = vmax.f32 %v5851, 0.0
      %v5869 = vmax.f32 %v5852, 0.0
      %v5870 = vmax.f32 %v5853, 0.0
      %v5871 = vmax.f32 %v5854, 0.0
      %v5872 = vmax.f32 %v5855, 0.0
      %v5873 = vmax.f32 %v5856, 0.0
      %v5874 = vmax.f32 %v5857, 0.0
      %v5875 = vmax.f32 %v5858, 0.0
      %v5876 = vmax.f32 %v5859, 0.0
      %v5877 = vmax.f32 %v5860, 0.0
      %v5878 = vmax.f32 %v5861, 0.0
      %v5879 = vmax.f32 %v5862, 0.0
      %v5880 = vmax.f32 %v5863, 0.0
      %v5881 = vmax.f32 %v5864, 0.0
      %v5882 = vmax.f32 %v5865, 0.0
      %v5883 = vmax.f32 %v5866, 0.0
      %v5884 = vmax.f32 %v5867, 0.0
      %5885 = vst [vmem:[%s248] sm:$0xff] %v5868
      %5886 = vst [vmem:[%s248 + $0x8] sm:$0xff] %v5869
      %s5887 = scalar_lea.vmem %s248, 16
      %5888 = vst [vmem:[%s5887 - $0x1] sm:$0xfe] %v5870
      %5889 = vst [vmem:[%s5887 + $0x7] sm:$0xff] %v5871
      %5890 = vst [vmem:[%s5887 + $0xf] sm:$0x1] %v5872
      %s5891 = scalar_lea.vmem %s248, 32
      %5892 = vst [vmem:[%s5891 - $0x2] sm:$0xfc] %v5872
      %5893 = vst [vmem:[%s5891 + $0x6] sm:$0xff] %v5873
      %5894 = vst [vmem:[%s5891 + $0xe] sm:$0x3] %v5874
      %s5895 = scalar_lea.vmem %s248, 48
      %5896 = vst [vmem:[%s5895 - $0x3] sm:$0xf8] %v5874
      %5897 = vst [vmem:[%s5895 + $0x5] sm:$0xff] %v5875
      %5898 = vst [vmem:[%s5895 + $0xd] sm:$0x7] %v5876
      %s5899 = scalar_lea.vmem %s248, 64
      %5900 = vst [vmem:[%s5899 - $0x4] sm:$0xf0] %v5876
      %5901 = vst [vmem:[%s5899 + $0x4] sm:$0xff] %v5877
      %5902 = vst [vmem:[%s5899 + $0xc] sm:$0xf] %v5878
      %s5903 = scalar_lea.vmem %s248, 80
      %5904 = vst [vmem:[%s5903 - $0x5] sm:$0xe0] %v5878
      %5905 = vst [vmem:[%s5903 + $0x3] sm:$0xff] %v5879
      %5906 = vst [vmem:[%s5903 + $0xb] sm:$0x1f] %v5880
      %s5907 = scalar_lea.vmem %s248, 96
      %5908 = vst [vmem:[%s5907 - $0x6] sm:$0xc0] %v5880
      %5909 = vst [vmem:[%s5907 + $0x2] sm:$0xff] %v5881
      %5910 = vst [vmem:[%s5907 + $0xa] sm:$0x3f] %v5882
      %s5911 = scalar_lea.vmem %s248, 112
      %5912 = vst [vmem:[%s5911 - $0x7] sm:$0x80] %v5882
      %5913 = vst [vmem:[%s5911 + $0x1] sm:$0xff] %v5883
      %5914 = vst [vmem:[%s5911 + $0x9] sm:$0x7f] %v5884
      %s5915 = smul.u32 8, %s21
      %p5916 = scmp.lt.s32.totalorder %s20, 1
      %s5917 = scalar_select %p5916, %s20, 1
      %p5918 = scmp.lt.s32.totalorder %s5915, 7
      %s5919 = scalar_select %p5918, %s5915, 7
      %s5920 = smul.addr %s5919, 2
      %s5921 = smul.addr %s5917, 16
      %s5922 = sadd.s32 %s5920, %s5921
      %s5923 = smul.addr %s5922, 8
      %s5924 = scalar_lea.vmem %s5, %s5923
      // Predicated region
      $region129: #{double_conv3d_forward.1} parent=39 // pred_check
        %p5925 = pneg %p158
      $region130: #{double_conv3d_forward.1} parent=39 // pred_check_branch
        %5927 = sbr.rel (%p5925) target = $region132
      $region131: #{double_conv3d_forward.1} parent=39 // pred_region
        %s5928 = smul.u32 8, %s21
      $region132: #{double_conv3d_forward.1} parent=39 // pred_fallthru
        _
    $region40: #{double_conv3d_forward.1} parent=5 // pred_fallthru
      _
    %p5929 = scmp.le.s32.totalorder 2, %s11
    // Predicated region
    $region133: #{double_conv3d_forward.1} parent=5 // pred_check
      %p5930 = pneg %p5929
    $region134: #{double_conv3d_forward.1} parent=5 // pred_check_branch
      %5932 = sbr.rel (%p5930) target = $region136
    $region135: #{double_conv3d_forward.1} parent=5 // pred_region
      %s5933 = ssub.s32 %s11, 2
      // Predicated region
      $region137: #{double_conv3d_forward.1} parent=135 // pred_check
        %p5934 = pneg %p164
      $region138: #{double_conv3d_forward.1} parent=135 // pred_check_branch
        %5936 = sbr.rel (%p5934) target = $region140
      $region139: #{double_conv3d_forward.1} parent=135 // pred_region
        %s5937 = smul.u32 8, %s23
        %p5938 = scmp.lt.s32.totalorder %s22, 1
        %s5939 = scalar_select %p5938, %s22, 1
        %p5940 = scmp.lt.s32.totalorder %s5937, 7
        %s5941 = scalar_select %p5940, %s5937, 7
        %s5942 = smul.addr %s5941, 2
        %s5943 = smul.addr %s5939, 16
        %s5944 = sadd.s32 %s5942, %s5943
        %s5945 = smul.addr %s5944, 8
        %s5946 = scalar_lea.vmem %s5, %s5945
      $region140: #{double_conv3d_forward.1} parent=135 // pred_fallthru
        _
    $region136: #{double_conv3d_forward.1} parent=5 // pred_fallthru
      _
  $region6: #{double_conv3d_forward.1} parent=0 // loop_footer
    %s15 = sadd.s32 1, %s11
  $region7: #{double_conv3d_forward.1} parent=0 // loop_footer_branch
    %10 = sbr.rel target = $region3
  $region8: #{double_conv3d_forward.1} parent=0 // loop_exit
    _

</llo_original>
